<compile_context>
chip_gen: v6e
topology: v6e:2x2x1
jax: 0.10.0
libtpu: 0.0.40
codegen_flags: <defaults>
</compile_context>

<pallas_src>
import functools

import jax
import jax.numpy as jnp
from jax.experimental import pallas as pl
from jax.experimental.pallas import tpu as pltpu

EPS = 1e-5  # BatchNorm eps


# ----------------------------------------------------------------------------
# Kernel 1: (rows x K) @ (K x N) + shift (+ReLU)  -- 1x1 convs with BN folded in
# ----------------------------------------------------------------------------
def _matmul_shift_kernel(x_ref, w_ref, shift_ref, o_ref, *, relu):
    y = jnp.dot(x_ref[...], w_ref[...], preferred_element_type=jnp.float32)
    y = y + shift_ref[...]
    if relu:
        y = jnp.maximum(y, 0.0)
    o_ref[...] = y.astype(o_ref.dtype)


def _pick_row_tile(M):
    # largest divisor-of-M tile (multiple of 8) that still gives >=2 grid steps
    for tm in (512, 256, 128, 64, 32, 16, 8):
        if M % tm == 0 and M // tm >= 2:
            return tm
    return M            # single block; equals full dim so the (8,128) rule is satisfied


def _pick_col_tile(N):
    if N <= 512:
        return N
    for tn in (512, 384, 256, 128):
        if N % tn == 0:
            return tn
    return N            # TODO(synk): widths not a multiple of 128 fall back to one block


def matmul_shift(x, w, shift, *, relu, out_dtype=jnp.bfloat16):
    """x: (M, K) bf16, w: (K, N) bf16 (BN scale pre-folded), shift: (N,) f32."""
    M, K = x.shape
    _, N = w.shape
    tm = _pick_row_tile(M)
    tn = _pick_col_tile(N)
    return pl.pallas_call(
        functools.partial(_matmul_shift_kernel, relu=relu),
        out_shape=jax.ShapeDtypeStruct((M, N), out_dtype),
        grid=(M // tm, N // tn),
        in_specs=[
            pl.BlockSpec((tm, K), lambda i, j: (i, 0)),
            pl.BlockSpec((K, tn), lambda i, j: (0, j)),
            pl.BlockSpec((1, tn), lambda i, j: (0, j)),
        ],
        out_specs=pl.BlockSpec((tm, tn), lambda i, j: (i, j)),
        compiler_params=pltpu.CompilerParams(
            dimension_semantics=("parallel", "parallel")),
    )(x, w, shift.reshape(1, N))


# ----------------------------------------------------------------------------
# Kernel 2: 3x3 stride-s conv + BN + ReLU, all 9 taps unrolled in-kernel
# ----------------------------------------------------------------------------
def _conv3x3_kernel(x_ref, w_ref, shift_ref, o_ref, *, s, Ho, Wo):
    # x_ref: (1, s, s, Hq, Wq, C) phase-decomposed padded window of one sample
    # w_ref: (9, C, Cout) resident weight (t = kh*3 + kw), shift_ref: (1, Cout)
    C = x_ref.shape[-1]
    Cout = w_ref.shape[-1]
    acc = jnp.zeros((Ho * Wo, Cout), jnp.float32)
    for kh in range(3):                       # fully unrolled 3x3 taps (traced once)
        for kw in range(3):
            patch = x_ref[0, kh % s, kw % s,
                          pl.ds(kh // s, Ho), pl.ds(kw // s, Wo), :]
            acc = acc + jnp.dot(patch.reshape(Ho * Wo, C), w_ref[kh * 3 + kw],
                                preferred_element_type=jnp.float32)
    y = jnp.maximum(acc + shift_ref[...], 0.0)
    o_ref[...] = y.reshape(1, Ho, Wo, Cout).astype(o_ref.dtype)


def conv3x3_bn_relu(h, w9, shift, *, stride):
    """h: (N,H,W,C) bf16; w9: (9,C,Cout) bf16 (t = kh*3+kw, BN scale folded);
    shift: (Cout,) f32.  Returns (N, Ho, Wo, Cout) bf16."""
    N, H, W, C = h.shape
    s = stride
    Cout = w9.shape[-1]
    Ho = (H - 1) // s + 1            # = (H + 2 - 3)//s + 1
    Wo = (W - 1) // s + 1
    hp = jnp.pad(h, ((0, 0), (1, 1), (1, 1), (0, 0)))            # pad=1
    Hp, Wp = H + 2, W + 2
    Hq, Wq = -(-Hp // s), -(-Wp // s)
    if Hq * s != Hp or Wq * s != Wp:
        hp = jnp.pad(hp, ((0, 0), (0, Hq * s - Hp), (0, Wq * s - Wp), (0, 0)))
    if s == 1:
        x6 = hp.reshape(N, 1, 1, Hq, Wq, C)                      # free reshape
    else:
        # one input-sized copy (vs 3x for column-tap im2col); all in-kernel tap
        # reads become contiguous windows of a stride phase.
        x6 = hp.reshape(N, Hq, s, Wq, s, C).transpose(0, 2, 4, 1, 3, 5)

    kern = functools.partial(_conv3x3_kernel, s=s, Ho=Ho, Wo=Wo)
    # TODO(synk): for very large Ho*Wo add an Ho row-tile grid axis (with kh halo).
    return pl.pallas_call(
        kern,
        out_shape=jax.ShapeDtypeStruct((N, Ho, Wo, Cout), jnp.bfloat16),
        grid=(N,),
        in_specs=[
            pl.BlockSpec((1, s, s, Hq, Wq, C), lambda n: (n, 0, 0, 0, 0, 0)),
            pl.BlockSpec((9, C, Cout), lambda n: (0, 0, 0)),     # resident weight
            pl.BlockSpec((1, Cout), lambda n: (0, 0)),
        ],
        out_specs=pl.BlockSpec((1, Ho, Wo, Cout), lambda n: (n, 0, 0, 0)),
        compiler_params=pltpu.CompilerParams(dimension_semantics=("parallel",)),
    )(x6, w9, shift.reshape(1, Cout))


# ----------------------------------------------------------------------------
# Kernel 3: 1x1 conv -> C4 + BN + ReLU fused with the SE squeeze (channel sums)
# ----------------------------------------------------------------------------
def _conv1x1_se_kernel(h_ref, w_ref, shift_ref, res_ref, sq_ref):
    _, Ho, Wo, Cmid = h_ref.shape
    C4 = w_ref.shape[-1]
    y = jnp.dot(h_ref[...].reshape(Ho * Wo, Cmid), w_ref[...],
                preferred_element_type=jnp.float32) + shift_ref[...]
    y = jnp.maximum(y, 0.0)
    res_ref[...] = y.reshape(1, Ho, Wo, C4).astype(res_ref.dtype)
    sq_ref[...] = jnp.sum(y, axis=0, keepdims=True).reshape(1, 1, C4)


def conv1x1_bn_relu_squeeze(h2, w, shift):
    """h2: (N,Ho,Wo,Cmid) bf16; w: (Cmid,C4) bf16; shift: (C4,) f32.
    Returns res (N,Ho,Wo,C4) bf16 and per-sample channel SUMS sq (N,1,C4) f32."""
    N, Ho, Wo, Cmid = h2.shape
    C4 = w.shape[1]
    return pl.pallas_call(
        _conv1x1_se_kernel,
        out_shape=(jax.ShapeDtypeStruct((N, Ho, Wo, C4), jnp.bfloat16),
                   jax.ShapeDtypeStruct((N, 1, C4), jnp.float32)),
        grid=(N,),
        in_specs=[
            pl.BlockSpec((1, Ho, Wo, Cmid), lambda n: (n, 0, 0, 0)),
            pl.BlockSpec((Cmid, C4), lambda n: (0, 0)),
            pl.BlockSpec((1, C4), lambda n: (0, 0)),
        ],
        out_specs=(pl.BlockSpec((1, Ho, Wo, C4), lambda n: (n, 0, 0, 0)),
                   pl.BlockSpec((1, 1, C4), lambda n: (n, 0, 0))),
        compiler_params=pltpu.CompilerParams(dimension_semantics=("parallel",)),
    )(h2, w, shift.reshape(1, C4))


# ----------------------------------------------------------------------------
# Kernel 4: strided 1x1 shortcut conv (stride folded into the BlockSpec DMA)
# ----------------------------------------------------------------------------
def _shortcut_kernel(x_ref, w_ref, shift_ref, o_ref, *, Cin, Ho, Wo):
    xv = x_ref[0, :, 0, :, :Cin]            # (Ho, Wo, Cin): H phase skipped by layout
    y = jnp.dot(xv.reshape(Ho * Wo, Cin), w_ref[...],
                preferred_element_type=jnp.float32) + shift_ref[...]
    o_ref[...] = y.reshape(1, Ho, Wo, -1).astype(o_ref.dtype)


def shortcut_conv(x, w, shift, *, stride):
    """1x1 conv, stride s, + BN shift (no ReLU). x: (N,H,W,Cin) bf16, w: (Cin,C4) bf16."""
    N, H, W, Cin = x.shape
    C4 = w.shape[1]
    s = stride
    if s == 1:
        y = matmul_shift(x.reshape(N * H * W, Cin), w, shift, relu=False)
        return y.reshape(N, H, W, C4)
    if H % s or W % s:
        # TODO(synk): odd spatial sizes fall back to a materialized strided slice.
        xs = x[:, ::s, ::s, :]
        Ho, Wo = xs.shape[1], xs.shape[2]
        y = matmul_shift(xs.reshape(N * Ho * Wo, Cin), w, shift, relu=False)
        return y.reshape(N, Ho, Wo, C4)
    Ho, Wo = H // s, W // s
    # Free reshape folds the H stride into the BlockSpec; the W phase stays merged with
    # Cin in the lane dim (s*Cin fetched, sliced in-kernel) to respect the 128-lane rule.
    x6 = x.reshape(N, Ho, s, Wo, s * Cin)
    kern = functools.partial(_shortcut_kernel, Cin=Cin, Ho=Ho, Wo=Wo)
    return pl.pallas_call(
        kern,
        out_shape=jax.ShapeDtypeStruct((N, Ho, Wo, C4), jnp.bfloat16),
        grid=(N,),
        in_specs=[
            pl.BlockSpec((1, Ho, 1, Wo, s * Cin), lambda n: (n, 0, 0, 0, 0)),
            pl.BlockSpec((Cin, C4), lambda n: (0, 0)),
            pl.BlockSpec((1, C4), lambda n: (0, 0)),
        ],
        out_specs=pl.BlockSpec((1, Ho, Wo, C4), lambda n: (n, 0, 0, 0)),
        compiler_params=pltpu.CompilerParams(dimension_semantics=("parallel",)),
    )(x6, w, shift.reshape(1, C4))


# ----------------------------------------------------------------------------
# Kernel 5: batched SE excitation (two tiny FCs + exact sigmoid), one call
# ----------------------------------------------------------------------------
def _excite_kernel(sq_ref, w1_ref, b1_ref, w2_ref, b2_ref, e_ref):
    e = jnp.dot(sq_ref[...], w1_ref[...], preferred_element_type=jnp.float32) + b1_ref[...]
    e = jnp.maximum(e, 0.0)
    e = jnp.dot(e, w2_ref[...], preferred_element_type=jnp.float32) + b2_ref[...]
    e_ref[...] = 1.0 / (1.0 + jnp.exp(-e))          # exact sigmoid


def se_excitation(sq, w1, b1, w2, b2):
    """sq: (N, C4) f32 channel sums (1/HW folded into w1); returns gate (N, C4) f32."""
    N, C4 = sq.shape
    hid = w1.shape[1]
    return pl.pallas_call(
        _excite_kernel,
        out_shape=jax.ShapeDtypeStruct((N, C4), jnp.float32),
        grid=(1,),
        in_specs=[
            pl.BlockSpec((N, C4), lambda i: (0, 0)),
            pl.BlockSpec((C4, hid), lambda i: (0, 0)),
            pl.BlockSpec((1, hid), lambda i: (0, 0)),
            pl.BlockSpec((hid, C4), lambda i: (0, 0)),
            pl.BlockSpec((1, C4), lambda i: (0, 0)),
        ],
        out_specs=pl.BlockSpec((N, C4), lambda i: (0, 0)),
    )(sq, w1, b1.reshape(1, hid), w2, b2.reshape(1, C4))


# ----------------------------------------------------------------------------
# Kernel 6: lane-dense  out = relu(res * gate + shortcut)   (last dim = Wo*C4)
# ----------------------------------------------------------------------------
def _scale_add_relu_kernel(res_ref, sc_ref, e_ref, o_ref):
    y = res_ref[...].astype(jnp.float32) * e_ref[...] + sc_ref[...].astype(jnp.float32)
    o_ref[...] = jnp.maximum(y, 0.0).astype(o_ref.dtype)


def _pick_row_div(Ho, L, elem_bytes=16, budget=4 << 20):
    # elem_bytes ~ res+sc+out bf16 plus f32 temporaries, x2 pipeline buffers
    if Ho * L * elem_bytes <= budget:
        return Ho
    for cand in range(Ho // 2, 0, -1):
        if Ho % cand == 0 and cand % 8 == 0 and cand * L * elem_bytes <= budget:
            return cand
    return Ho   # TODO(synk): no 8-aligned divisor fits -> keep full rows (still correct)


def se_scale_add_relu(res3, sc3, e_wide, out_dtype=jnp.bfloat16):
    """res3, sc3: (N, Ho, Wo*C4) bf16; e_wide: (N, 1, Wo*C4) f32 (gate tiled over Wo)."""
    N, Ho, L = res3.shape
    tr = _pick_row_div(Ho, L)
    return pl.pallas_call(
        _scale_add_relu_kernel,
        out_shape=jax.ShapeDtypeStruct((N, Ho, L), out_dtype),
        grid=(N, Ho // tr),
        in_specs=[
            pl.BlockSpec((1, tr, L), lambda n, r: (n, r, 0)),
            pl.BlockSpec((1, tr, L), lambda n, r: (n, r, 0)),
            pl.BlockSpec((1, 1, L), lambda n, r: (n, 0, 0)),
        ],
        out_specs=pl.BlockSpec((1, tr, L), lambda n, r: (n, r, 0)),
        compiler_params=pltpu.CompilerParams(
            dimension_semantics=("parallel", "parallel")),
    )(res3, sc3, e_wide)


# ----------------------------------------------------------------------------
# Forward pass (wrapper = layout glue; hot-path math lives in the Pallas kernels)
# ----------------------------------------------------------------------------
def bottleneck_se_forward(x_nchw, params, *, stride):
    x = jnp.transpose(x_nchw, (0, 2, 3, 1)).astype(jnp.bfloat16)        # NHWC bf16
    N, H, W, Cin = x.shape
    s = stride

    # ---- residual: Conv1x1 + BN + ReLU ----
    w1 = (params["conv1_w"][:, :, 0, 0].T
          * params["bn1_scale"][None, :]).astype(jnp.bfloat16)          # (Cin, Cmid)
    Cmid = w1.shape[1]
    h = matmul_shift(x.reshape(N * H * W, Cin), w1, params["bn1_shift"], relu=True)
    h = h.reshape(N, H, W, Cmid)

    # ---- residual: Conv3x3 (stride s, pad 1) + BN + ReLU, 9 taps unrolled in-kernel ----
    w2 = jnp.transpose(params["conv2_w"], (2, 3, 1, 0))                 # (kh, kw, Ci, Co)
    w2 = (w2 * params["bn2_scale"][None, None, None, :]).astype(jnp.bfloat16)
    w2 = w2.reshape(9, Cmid, Cmid)                                      # t = kh*3 + kw
    h2 = conv3x3_bn_relu(h, w2, params["bn2_shift"], stride=s)          # (N, Ho, Wo, Cmid)
    _, Ho, Wo, _ = h2.shape

    # ---- residual: Conv1x1 -> C4 + BN + ReLU, fused with SE squeeze ----
    w3 = (params["conv3_w"][:, :, 0, 0].T
          * params["bn3_scale"][None, :]).astype(jnp.bfloat16)          # (Cmid, C4)
    C4 = w3.shape[1]
    res, sq = conv1x1_bn_relu_squeeze(h2, w3, params["bn3_shift"])      # res bf16, sq sums

    # ---- shortcut ----
    if "sc_w" in params:
        wsc = (params["sc_w"][:, :, 0, 0].T
               * params["sc_bn_scale"][None, :]).astype(jnp.bfloat16)   # (Cin, C4)
        sc = shortcut_conv(x, wsc, params["sc_bn_shift"], stride=s)
    else:
        sc = x   # identity: only valid when stride==1 and Cin==C4 (guaranteed by init)

    # ---- SE excitation (1/HW folded into fc1 weight), then lane-dense epilogue ----
    w1fc = (params["fc1_w"].T / float(Ho * Wo)).astype(jnp.float32)     # (C4, hid)
    w2fc = params["fc2_w"].T.astype(jnp.float32)                        # (hid, C4)
    e = se_excitation(sq.reshape(N, C4), w1fc, params["fc1_b"], w2fc, params["fc2_b"])

    e_wide = jnp.broadcast_to(e[:, None, None, :], (N, 1, Wo, C4)).reshape(N, 1, Wo * C4)
    res3 = res.reshape(N, Ho, Wo * C4)                                  # free trailing merge
    sc3 = sc.reshape(N, Ho, Wo * C4)
    out3 = se_scale_add_relu(res3, sc3, e_wide)                         # bf16, lane-dense
    out = out3.reshape(N, Ho, Wo, C4)
    return jnp.transpose(out, (0, 3, 1, 2)).astype(jnp.float32)         # back to NCHW


# ----------------------------------------------------------------------------
# Deterministic parameter initialization (PyTorch shapes, BN folded to affine)
# ----------------------------------------------------------------------------
def init_params(key, in_c, out_c, stride, r=16):
    # TODO(synk): BatchNorm is folded to eval-mode affine (running_mean=0,
    # running_var=1); training-mode batch statistics are not reproduced.
    c4 = out_c * 4
    hid = c4 // r
    ks = jax.random.split(key, 16)

    def nrm(k, shape, sc=0.1):
        return sc * jax.random.normal(k, shape, jnp.float32)

    p = {
        "conv1_w": nrm(ks[0], (out_c, in_c, 1, 1)),
        "conv2_w": nrm(ks[1], (out_c, out_c, 3, 3)),
        "conv3_w": nrm(ks[2], (c4, out_c, 1, 1)),
        "fc1_w": nrm(ks[9], (hid, c4)),
        "fc1_b": nrm(ks[10], (hid,)),
        "fc2_w": nrm(ks[11], (c4, hid)),
        "fc2_b": nrm(ks[12], (c4,)),
    }
    for i, c in [(1, out_c), (2, out_c), (3, c4)]:
        gamma = 1.0 + 0.1 * jax.random.normal(ks[2 + i], (c,), jnp.float32)
        beta = 0.1 * jax.random.normal(ks[5 + i], (c,), jnp.float32)
        p[f"bn{i}_scale"] = gamma / jnp.sqrt(1.0 + EPS)   # running_var = 1
        p[f"bn{i}_shift"] = beta                          # running_mean = 0
    if stride != 1 or in_c != c4:
        p["sc_w"] = nrm(ks[13], (c4, in_c, 1, 1))
        gamma = 1.0 + 0.1 * jax.random.normal(ks[14], (c4,), jnp.float32)
        beta = 0.1 * jax.random.normal(ks[15], (c4,), jnp.float32)
        p["sc_bn_scale"] = gamma / jnp.sqrt(1.0 + EPS)
        p["sc_bn_shift"] = beta
    return p


# ----------------------------------------------------------------------------
# Pure-JAX reference (for correctness check)
# ----------------------------------------------------------------------------
def reference_forward(x_nchw, params, stride):
    x = jnp.transpose(x_nchw, (0, 2, 3, 1)).astype(jnp.float32)

    def conv(h, w, s, pad):
        return jax.lax.conv_general_dilated(
            h, jnp.transpose(w, (2, 3, 1, 0)), (s, s),
            ((pad, pad), (pad, pad)),
            dimension_numbers=("NHWC", "HWIO", "NHWC"),
            precision=jax.lax.Precision.HIGHEST)

    h = jax.nn.relu(conv(x, params["conv1_w"], 1, 0) * params["bn1_scale"]
                    + params["bn1_shift"])
    h = jax.nn.relu(conv(h, params["conv2_w"], stride, 1) * params["bn2_scale"]
                    + params["bn2_shift"])
    res = jax.nn.relu(conv(h, params["conv3_w"], 1, 0) * params["bn3_scale"]
                      + params["bn3_shift"])
    if "sc_w" in params:
        sc = (conv(x, params["sc_w"], stride, 0) * params["sc_bn_scale"]
              + params["sc_bn_shift"])
    else:
        sc = x
    sq = jnp.mean(res, axis=(1, 2))
    e = jax.nn.relu(sq @ params["fc1_w"].T + params["fc1_b"])
    e = jax.nn.sigmoid(e @ params["fc2_w"].T + params["fc2_b"])
    out = jax.nn.relu(res * e[:, None, None, :] + sc)
    return jnp.transpose(out, (0, 3, 1, 2))


if __name__ == "__main__":
    key = jax.random.PRNGKey(0)

    configs = [
        # (N, in_c, H, W, out_c, stride, r)
        (2, 4, 16, 16, 8, 2, 4),    # projection shortcut, stride 2
        (2, 32, 8, 8, 8, 1, 4),     # identity shortcut, stride 1
    ]
    for idx, (N, Cin, H, W, out_c, stride, r) in enumerate(configs):
        kx, kp = jax.random.split(jax.random.fold_in(key, idx))
        x = jax.random.normal(kx, (N, Cin, H, W), jnp.float32)  # NCHW like PyTorch
        params = init_params(kp, Cin, out_c, stride, r)

        fwd = jax.jit(functools.partial(bottleneck_se_forward, stride=stride))
        out = jax.block_until_ready(fwd(x, params))

        Ho = (H + 2 - 3) // stride + 1
        assert out.shape == (N, out_c * 4, Ho, Ho), out.shape

        ref = reference_forward(x, params, stride)
        max_err = float(jnp.max(jnp.abs(out - ref)))
        tol = 3e-2 * max(1.0, float(jnp.max(jnp.abs(ref))))     # bf16 activations
        assert max_err < tol, f"config {idx}: max abs error {max_err} (tol {tol})"

    print("KERNEL_OK")
</pallas_src>

<mosaic_0001>
module attributes {stable_mosaic.version = 11 : i64} {
  func.func @_shortcut_kernel(%arg0: i32, %arg1: memref<1x8x1x8x8xbf16, #tpu.memory_space<vmem>>, %arg2: memref<4x32xbf16, #tpu.memory_space<vmem>>, %arg3: memref<1x32xf32, #tpu.memory_space<vmem>>, %arg4: memref<1x8x8x32xbf16, #tpu.memory_space<vmem>>) attributes {dimension_semantics = [#tpu.dimension_semantics<parallel>], iteration_bounds = array<i64: 2>, scalar_prefetch = 0 : i64, scratch_operands = 0 : i64, tpu.core_type = #tpu.core_type<tc>, window_params = [{transform_indices = @transform_0, window_bounds = array<i64: 1, 8, 1, 8, 8>}, {pipeline_mode = #tpu.pipeline_mode<synchronous>, transform_indices = @transform_1, window_bounds = array<i64: 4, 32>}, {pipeline_mode = #tpu.pipeline_mode<synchronous>, transform_indices = @transform_2, window_bounds = array<i64: 1, 32>}, {transform_indices = @transform_3, window_bounds = array<i64: 1, 8, 8, 32>}]} {
    %c0 = arith.constant 0 : index
    %c0_0 = arith.constant 0 : index
    %c0_1 = arith.constant 0 : index
    %c0_2 = arith.constant 0 : index
    %c0_3 = arith.constant 0 : index
    %0 = vector.load %arg1[%c0, %c0_0, %c0_1, %c0_2, %c0_3] : memref<1x8x1x8x8xbf16, #tpu.memory_space<vmem>>, vector<1x8x1x8x4xbf16>
    %1 = vector.shape_cast %0 : vector<1x8x1x8x4xbf16> to vector<8x8x4xbf16>
    %2 = vector.shape_cast %1 : vector<8x8x4xbf16> to vector<64x4xbf16>
    %c0_4 = arith.constant 0 : index
    %c0_5 = arith.constant 0 : index
    %3 = vector.load %arg2[%c0_4, %c0_5] : memref<4x32xbf16, #tpu.memory_space<vmem>>, vector<4x32xbf16>
    %cst = arith.constant dense<0.000000e+00> : vector<64x32xf32>
    %4 = tpu.matmul %2, %3, %cst {dimension_numbers = #tpu.dot_dimension_numbers<[1], [0], [0], [1], [0, 0, 1, 1], [], []>} : vector<64x4xbf16>, vector<4x32xbf16>, vector<64x32xf32> -> vector<64x32xf32>
    %c0_6 = arith.constant 0 : index
    %c0_7 = arith.constant 0 : index
    %5 = vector.load %arg3[%c0_6, %c0_7] : memref<1x32xf32, #tpu.memory_space<vmem>>, vector<1x32xf32>
    %6 = vector.broadcast %5 : vector<1x32xf32> to vector<64x32xf32>
    %7 = arith.addf %4, %6 : vector<64x32xf32>
    %8 = vector.shape_cast %7 : vector<64x32xf32> to vector<1x8x8x32xf32>
    %9 = arith.truncf %8 : vector<1x8x8x32xf32> to vector<1x8x8x32xbf16>
    %c0_8 = arith.constant 0 : index
    %c0_9 = arith.constant 0 : index
    %c0_10 = arith.constant 0 : index
    %c0_11 = arith.constant 0 : index
    %10 = vector.load %arg4[%c0_8, %c0_9, %c0_10, %c0_11] : memref<1x8x8x32xbf16, #tpu.memory_space<vmem>>, vector<1x8x8x32xbf16>
    tpu.vector_store %arg4[%c0_8, %c0_9, %c0_10, %c0_11], %9 {strides = array<i32>} : memref<1x8x8x32xbf16, #tpu.memory_space<vmem>>, vector<1x8x8x32xbf16>,
    return
  }
  func.func @transform_0(%arg0: i32) -> (i32, i32, i32, i32, i32) {
    %c0_i32 = arith.constant 0 : i32
    %c0_i32_0 = arith.constant 0 : i32
    %c0_i32_1 = arith.constant 0 : i32
    %c0_i32_2 = arith.constant 0 : i32
    %c0_i32_3 = arith.constant 0 : i32
    return %arg0, %c0_i32, %c0_i32_0, %c0_i32_1, %c0_i32_2 : i32, i32, i32, i32, i32
  }
  func.func @transform_1(%arg0: i32) -> (i32, i32) {
    %c0_i32 = arith.constant 0 : i32
    %c0_i32_0 = arith.constant 0 : i32
    %c0_i32_1 = arith.constant 0 : i32
    return %c0_i32, %c0_i32_0 : i32, i32
  }
  func.func @transform_2(%arg0: i32) -> (i32, i32) {
    %c0_i32 = arith.constant 0 : i32
    %c0_i32_0 = arith.constant 0 : i32
    %c0_i32_1 = arith.constant 0 : i32
    return %c0_i32, %c0_i32_0 : i32, i32
  }
  func.func @transform_3(%arg0: i32) -> (i32, i32, i32, i32) {
    %c0_i32 = arith.constant 0 : i32
    %c0_i32_0 = arith.constant 0 : i32
    %c0_i32_1 = arith.constant 0 : i32
    %c0_i32_2 = arith.constant 0 : i32
    return %arg0, %c0_i32, %c0_i32_0, %c0_i32_1 : i32, i32, i32, i32
  }
}

module attributes {stable_mosaic.version = 11 : i64} {
  func.func @_matmul_shift_kernel(%arg0: i32, %arg1: i32, %arg2: memref<256x4xbf16, #tpu.memory_space<vmem>>, %arg3: memref<4x8xbf16, #tpu.memory_space<vmem>>, %arg4: memref<1x8xf32, #tpu.memory_space<vmem>>, %arg5: memref<256x8xbf16, #tpu.memory_space<vmem>>) attributes {dimension_semantics = [#tpu.dimension_semantics<parallel>, #tpu.dimension_semantics<parallel>], iteration_bounds = array<i64: 2, 1>, scalar_prefetch = 0 : i64, scratch_operands = 0 : i64, tpu.core_type = #tpu.core_type<tc>, window_params = [{transform_indices = @transform_0, window_bounds = array<i64: 256, 4>}, {transform_indices = @transform_1, window_bounds = array<i64: 4, 8>}, {transform_indices = @transform_2, window_bounds = array<i64: 1, 8>}, {transform_indices = @transform_3, window_bounds = array<i64: 256, 8>}]} {
    %c0 = arith.constant 0 : index
    %c0_0 = arith.constant 0 : index
    %0 = vector.load %arg2[%c0, %c0_0] : memref<256x4xbf16, #tpu.memory_space<vmem>>, vector<256x4xbf16>
    %c0_1 = arith.constant 0 : index
    %c0_2 = arith.constant 0 : index
    %1 = vector.load %arg3[%c0_1, %c0_2] : memref<4x8xbf16, #tpu.memory_space<vmem>>, vector<4x8xbf16>
    %cst = arith.constant dense<0.000000e+00> : vector<256x8xf32>
    %2 = tpu.matmul %0, %1, %cst {dimension_numbers = #tpu.dot_dimension_numbers<[1], [0], [0], [1], [0, 0, 1, 1], [], []>} : vector<256x4xbf16>, vector<4x8xbf16>, vector<256x8xf32> -> vector<256x8xf32>
    %c0_3 = arith.constant 0 : index
    %c0_4 = arith.constant 0 : index
    %3 = vector.load %arg4[%c0_3, %c0_4] : memref<1x8xf32, #tpu.memory_space<vmem>>, vector<1x8xf32>
    %4 = vector.broadcast %3 : vector<1x8xf32> to vector<256x8xf32>
    %5 = arith.addf %2, %4 : vector<256x8xf32>
    %cst_5 = arith.constant 0.000000e+00 : f32
    %6 = vector.broadcast %cst_5 : f32 to vector<256x8xf32>
    %7 = arith.maximumf %5, %6 : vector<256x8xf32>
    %8 = arith.truncf %7 : vector<256x8xf32> to vector<256x8xbf16>
    %c0_6 = arith.constant 0 : index
    %c0_7 = arith.constant 0 : index
    %9 = vector.load %arg5[%c0_6, %c0_7] : memref<256x8xbf16, #tpu.memory_space<vmem>>, vector<256x8xbf16>
    tpu.vector_store %arg5[%c0_6, %c0_7], %8 {strides = array<i32>} : memref<256x8xbf16, #tpu.memory_space<vmem>>, vector<256x8xbf16>,
    return
  }
  func.func @transform_0(%arg0: i32, %arg1: i32) -> (i32, i32) {
    %c0_i32 = arith.constant 0 : i32
    %c0_i32_0 = arith.constant 0 : i32
    return %arg0, %c0_i32 : i32, i32
  }
  func.func @transform_1(%arg0: i32, %arg1: i32) -> (i32, i32) {
    %c0_i32 = arith.constant 0 : i32
    %c0_i32_0 = arith.constant 0 : i32
    return %c0_i32, %arg1 : i32, i32
  }
  func.func @transform_2(%arg0: i32, %arg1: i32) -> (i32, i32) {
    %c0_i32 = arith.constant 0 : i32
    %c0_i32_0 = arith.constant 0 : i32
    return %c0_i32, %arg1 : i32, i32
  }
  func.func @transform_3(%arg0: i32, %arg1: i32) -> (i32, i32) {
    %c0_i32 = arith.constant 0 : i32
    return %arg0, %arg1 : i32, i32
  }
}

module attributes {stable_mosaic.version = 11 : i64} {
  func.func @_conv3x3_kernel(%arg0: i32, %arg1: memref<1x2x2x9x9x8xbf16, #tpu.memory_space<vmem>>, %arg2: memref<9x8x8xbf16, #tpu.memory_space<vmem>>, %arg3: memref<1x8xf32, #tpu.memory_space<vmem>>, %arg4: memref<1x8x8x8xbf16, #tpu.memory_space<vmem>>) attributes {dimension_semantics = [#tpu.dimension_semantics<parallel>], iteration_bounds = array<i64: 2>, scalar_prefetch = 0 : i64, scratch_operands = 0 : i64, tpu.core_type = #tpu.core_type<tc>, window_params = [{transform_indices = @transform_0, window_bounds = array<i64: 1, 2, 2, 9, 9, 8>}, {pipeline_mode = #tpu.pipeline_mode<synchronous>, transform_indices = @transform_1, window_bounds = array<i64: 9, 8, 8>}, {pipeline_mode = #tpu.pipeline_mode<synchronous>, transform_indices = @transform_2, window_bounds = array<i64: 1, 8>}, {transform_indices = @transform_3, window_bounds = array<i64: 1, 8, 8, 8>}]} {
    %cst = arith.constant 0.000000e+00 : f32
    %0 = vector.broadcast %cst : f32 to vector<64x8xf32>
    %c0 = arith.constant 0 : index
    %c0_0 = arith.constant 0 : index
    %c0_1 = arith.constant 0 : index
    %c0_2 = arith.constant 0 : index
    %c0_3 = arith.constant 0 : index
    %c0_4 = arith.constant 0 : index
    %1 = vector.load %arg1[%c0, %c0_0, %c0_1, %c0_2, %c0_3, %c0_4] : memref<1x2x2x9x9x8xbf16, #tpu.memory_space<vmem>>, vector<1x1x1x8x8x8xbf16>
    %2 = vector.shape_cast %1 : vector<1x1x1x8x8x8xbf16> to vector<8x8x8xbf16>
    %3 = vector.shape_cast %2 : vector<8x8x8xbf16> to vector<64x8xbf16>
    %c0_5 = arith.constant 0 : index
    %c0_6 = arith.constant 0 : index
    %c0_7 = arith.constant 0 : index
    %4 = vector.load %arg2[%c0_5, %c0_6, %c0_7] : memref<9x8x8xbf16, #tpu.memory_space<vmem>>, vector<1x8x8xbf16>
    %5 = vector.shape_cast %4 : vector<1x8x8xbf16> to vector<8x8xbf16>
    %cst_8 = arith.constant dense<0.000000e+00> : vector<64x8xf32>
    %6 = tpu.matmul %3, %5, %cst_8 {dimension_numbers = #tpu.dot_dimension_numbers<[1], [0], [0], [1], [0, 0, 1, 1], [], []>} : vector<64x8xbf16>, vector<8x8xbf16>, vector<64x8xf32> -> vector<64x8xf32>
    %7 = arith.addf %0, %6 : vector<64x8xf32>
    %c0_9 = arith.constant 0 : index
    %c0_10 = arith.constant 0 : index
    %c1 = arith.constant 1 : index
    %c0_11 = arith.constant 0 : index
    %c0_12 = arith.constant 0 : index
    %c0_13 = arith.constant 0 : index
    %8 = vector.load %arg1[%c0_9, %c0_10, %c1, %c0_11, %c0_12, %c0_13] : memref<1x2x2x9x9x8xbf16, #tpu.memory_space<vmem>>, vector<1x1x1x8x8x8xbf16>
    %9 = vector.shape_cast %8 : vector<1x1x1x8x8x8xbf16> to vector<8x8x8xbf16>
    %10 = vector.shape_cast %9 : vector<8x8x8xbf16> to vector<64x8xbf16>
    %c1_14 = arith.constant 1 : index
    %c0_15 = arith.constant 0 : index
    %c0_16 = arith.constant 0 : index
    %11 = vector.load %arg2[%c1_14, %c0_15, %c0_16] : memref<9x8x8xbf16, #tpu.memory_space<vmem>>, vector<1x8x8xbf16>
    %12 = vector.shape_cast %11 : vector<1x8x8xbf16> to vector<8x8xbf16>
    %cst_17 = arith.constant dense<0.000000e+00> : vector<64x8xf32>
    %13 = tpu.matmul %10, %12, %cst_17 {dimension_numbers = #tpu.dot_dimension_numbers<[1], [0], [0], [1], [0, 0, 1, 1], [], []>} : vector<64x8xbf16>, vector<8x8xbf16>, vector<64x8xf32> -> vector<64x8xf32>
    %14 = arith.addf %7, %13 : vector<64x8xf32>
    %c0_18 = arith.constant 0 : index
    %c0_19 = arith.constant 0 : index
    %c0_20 = arith.constant 0 : index
    %c0_21 = arith.constant 0 : index
    %c1_22 = arith.constant 1 : index
    %c0_23 = arith.constant 0 : index
    %15 = vector.load %arg1[%c0_18, %c0_19, %c0_20, %c0_21, %c1_22, %c0_23] : memref<1x2x2x9x9x8xbf16, #tpu.memory_space<vmem>>, vector<1x1x1x8x8x8xbf16>
    %16 = vector.shape_cast %15 : vector<1x1x1x8x8x8xbf16> to vector<8x8x8xbf16>
    %17 = vector.shape_cast %16 : vector<8x8x8xbf16> to vector<64x8xbf16>
    %c2 = arith.constant 2 : index
    %c0_24 = arith.constant 0 : index
    %c0_25 = arith.constant 0 : index
    %18 = vector.load %arg2[%c2, %c0_24, %c0_25] : memref<9x8x8xbf16, #tpu.memory_space<vmem>>, vector<1x8x8xbf16>
    %19 = vector.shape_cast %18 : vector<1x8x8xbf16> to vector<8x8xbf16>
    %cst_26 = arith.constant dense<0.000000e+00> : vector<64x8xf32>
    %20 = tpu.matmul %17, %19, %cst_26 {dimension_numbers = #tpu.dot_dimension_numbers<[1], [0], [0], [1], [0, 0, 1, 1], [], []>} : vector<64x8xbf16>, vector<8x8xbf16>, vector<64x8xf32> -> vector<64x8xf32>
    %21 = arith.addf %14, %20 : vector<64x8xf32>
    %c0_27 = arith.constant 0 : index
    %c1_28 = arith.constant 1 : index
    %c0_29 = arith.constant 0 : index
    %c0_30 = arith.constant 0 : index
    %c0_31 = arith.constant 0 : index
    %c0_32 = arith.constant 0 : index
    %22 = vector.load %arg1[%c0_27, %c1_28, %c0_29, %c0_30, %c0_31, %c0_32] : memref<1x2x2x9x9x8xbf16, #tpu.memory_space<vmem>>, vector<1x1x1x8x8x8xbf16>
    %23 = vector.shape_cast %22 : vector<1x1x1x8x8x8xbf16> to vector<8x8x8xbf16>
    %24 = vector.shape_cast %23 : vector<8x8x8xbf16> to vector<64x8xbf16>
    %c3 = arith.constant 3 : index
    %c0_33 = arith.constant 0 : index
    %c0_34 = arith.constant 0 : index
    %25 = vector.load %arg2[%c3, %c0_33, %c0_34] : memref<9x8x8xbf16, #tpu.memory_space<vmem>>, vector<1x8x8xbf16>
    %26 = vector.shape_cast %25 : vector<1x8x8xbf16> to vector<8x8xbf16>
    %cst_35 = arith.constant dense<0.000000e+00> : vector<64x8xf32>
    %27 = tpu.matmul %24, %26, %cst_35 {dimension_numbers = #tpu.dot_dimension_numbers<[1], [0], [0], [1], [0, 0, 1, 1], [], []>} : vector<64x8xbf16>, vector<8x8xbf16>, vector<64x8xf32> -> vector<64x8xf32>
    %28 = arith.addf %21, %27 : vector<64x8xf32>
    %c0_36 = arith.constant 0 : index
    %c1_37 = arith.constant 1 : index
    %c1_38 = arith.constant 1 : index
    %c0_39 = arith.constant 0 : index
    %c0_40 = arith.constant 0 : index
    %c0_41 = arith.constant 0 : index
    %29 = vector.load %arg1[%c0_36, %c1_37, %c1_38, %c0_39, %c0_40, %c0_41] : memref<1x2x2x9x9x8xbf16, #tpu.memory_space<vmem>>, vector<1x1x1x8x8x8xbf16>
    %30 = vector.shape_cast %29 : vector<1x1x1x8x8x8xbf16> to vector<8x8x8xbf16>
    %31 = vector.shape_cast %30 : vector<8x8x8xbf16> to vector<64x8xbf16>
    %c4 = arith.constant 4 : index
    %c0_42 = arith.constant 0 : index
    %c0_43 = arith.constant 0 : index
    %32 = vector.load %arg2[%c4, %c0_42, %c0_43] : memref<9x8x8xbf16, #tpu.memory_space<vmem>>, vector<1x8x8xbf16>
    %33 = vector.shape_cast %32 : vector<1x8x8xbf16> to vector<8x8xbf16>
    %cst_44 = arith.constant dense<0.000000e+00> : vector<64x8xf32>
    %34 = tpu.matmul %31, %33, %cst_44 {dimension_numbers = #tpu.dot_dimension_numbers<[1], [0], [0], [1], [0, 0, 1, 1], [], []>} : vector<64x8xbf16>, vector<8x8xbf16>, vector<64x8xf32> -> vector<64x8xf32>
    %35 = arith.addf %28, %34 : vector<64x8xf32>
    %c0_45 = arith.constant 0 : index
    %c1_46 = arith.constant 1 : index
    %c0_47 = arith.constant 0 : index
    %c0_48 = arith.constant 0 : index
    %c1_49 = arith.constant 1 : index
    %c0_50 = arith.constant 0 : index
    %36 = vector.load %arg1[%c0_45, %c1_46, %c0_47, %c0_48, %c1_49, %c0_50] : memref<1x2x2x9x9x8xbf16, #tpu.memory_space<vmem>>, vector<1x1x1x8x8x8xbf16>
    %37 = vector.shape_cast %36 : vector<1x1x1x8x8x8xbf16> to vector<8x8x8xbf16>
    %38 = vector.shape_cast %37 : vector<8x8x8xbf16> to vector<64x8xbf16>
    %c5 = arith.constant 5 : index
    %c0_51 = arith.constant 0 : index
    %c0_52 = arith.constant 0 : index
    %39 = vector.load %arg2[%c5, %c0_51, %c0_52] : memref<9x8x8xbf16, #tpu.memory_space<vmem>>, vector<1x8x8xbf16>
    %40 = vector.shape_cast %39 : vector<1x8x8xbf16> to vector<8x8xbf16>
    %cst_53 = arith.constant dense<0.000000e+00> : vector<64x8xf32>
    %41 = tpu.matmul %38, %40, %cst_53 {dimension_numbers = #tpu.dot_dimension_numbers<[1], [0], [0], [1], [0, 0, 1, 1], [], []>} : vector<64x8xbf16>, vector<8x8xbf16>, vector<64x8xf32> -> vector<64x8xf32>
    %42 = arith.addf %35, %41 : vector<64x8xf32>
    %c0_54 = arith.constant 0 : index
    %c0_55 = arith.constant 0 : index
    %c0_56 = arith.constant 0 : index
    %c1_57 = arith.constant 1 : index
    %c0_58 = arith.constant 0 : index
    %c0_59 = arith.constant 0 : index
    %43 = vector.load %arg1[%c0_54, %c0_55, %c0_56, %c1_57, %c0_58, %c0_59] : memref<1x2x2x9x9x8xbf16, #tpu.memory_space<vmem>>, vector<1x1x1x8x8x8xbf16>
    %44 = vector.shape_cast %43 : vector<1x1x1x8x8x8xbf16> to vector<8x8x8xbf16>
    %45 = vector.shape_cast %44 : vector<8x8x8xbf16> to vector<64x8xbf16>
    %c6 = arith.constant 6 : index
    %c0_60 = arith.constant 0 : index
    %c0_61 = arith.constant 0 : index
    %46 = vector.load %arg2[%c6, %c0_60, %c0_61] : memref<9x8x8xbf16, #tpu.memory_space<vmem>>, vector<1x8x8xbf16>
    %47 = vector.shape_cast %46 : vector<1x8x8xbf16> to vector<8x8xbf16>
    %cst_62 = arith.constant dense<0.000000e+00> : vector<64x8xf32>
    %48 = tpu.matmul %45, %47, %cst_62 {dimension_numbers = #tpu.dot_dimension_numbers<[1], [0], [0], [1], [0, 0, 1, 1], [], []>} : vector<64x8xbf16>, vector<8x8xbf16>, vector<64x8xf32> -> vector<64x8xf32>
    %49 = arith.addf %42, %48 : vector<64x8xf32>
    %c0_63 = arith.constant 0 : index
    %c0_64 = arith.constant 0 : index
    %c1_65 = arith.constant 1 : index
    %c1_66 = arith.constant 1 : index
    %c0_67 = arith.constant 0 : index
    %c0_68 = arith.constant 0 : index
    %50 = vector.load %arg1[%c0_63, %c0_64, %c1_65, %c1_66, %c0_67, %c0_68] : memref<1x2x2x9x9x8xbf16, #tpu.memory_space<vmem>>, vector<1x1x1x8x8x8xbf16>
    %51 = vector.shape_cast %50 : vector<1x1x1x8x8x8xbf16> to vector<8x8x8xbf16>
    %52 = vector.shape_cast %51 : vector<8x8x8xbf16> to vector<64x8xbf16>
    %c7 = arith.constant 7 : index
    %c0_69 = arith.constant 0 : index
    %c0_70 = arith.constant 0 : index
    %53 = vector.load %arg2[%c7, %c0_69, %c0_70] : memref<9x8x8xbf16, #tpu.memory_space<vmem>>, vector<1x8x8xbf16>
    %54 = vector.shape_cast %53 : vector<1x8x8xbf16> to vector<8x8xbf16>
    %cst_71 = arith.constant dense<0.000000e+00> : vector<64x8xf32>
    %55 = tpu.matmul %52, %54, %cst_71 {dimension_numbers = #tpu.dot_dimension_numbers<[1], [0], [0], [1], [0, 0, 1, 1], [], []>} : vector<64x8xbf16>, vector<8x8xbf16>, vector<64x8xf32> -> vector<64x8xf32>
    %56 = arith.addf %49, %55 : vector<64x8xf32>
    %c0_72 = arith.constant 0 : index
    %c0_73 = arith.constant 0 : index
    %c0_74 = arith.constant 0 : index
    %c1_75 = arith.constant 1 : index
    %c1_76 = arith.constant 1 : index
    %c0_77 = arith.constant 0 : index
    %57 = vector.load %arg1[%c0_72, %c0_73, %c0_74, %c1_75, %c1_76, %c0_77] : memref<1x2x2x9x9x8xbf16, #tpu.memory_space<vmem>>, vector<1x1x1x8x8x8xbf16>
    %58 = vector.shape_cast %57 : vector<1x1x1x8x8x8xbf16> to vector<8x8x8xbf16>
    %59 = vector.shape_cast %58 : vector<8x8x8xbf16> to vector<64x8xbf16>
    %c8 = arith.constant 8 : index
    %c0_78 = arith.constant 0 : index
    %c0_79 = arith.constant 0 : index
    %60 = vector.load %arg2[%c8, %c0_78, %c0_79] : memref<9x8x8xbf16, #tpu.memory_space<vmem>>, vector<1x8x8xbf16>
    %61 = vector.shape_cast %60 : vector<1x8x8xbf16> to vector<8x8xbf16>
    %cst_80 = arith.constant dense<0.000000e+00> : vector<64x8xf32>
    %62 = tpu.matmul %59, %61, %cst_80 {dimension_numbers = #tpu.dot_dimension_numbers<[1], [0], [0], [1], [0, 0, 1, 1], [], []>} : vector<64x8xbf16>, vector<8x8xbf16>, vector<64x8xf32> -> vector<64x8xf32>
    %63 = arith.addf %56, %62 : vector<64x8xf32>
    %c0_81 = arith.constant 0 : index
    %c0_82 = arith.constant 0 : index
    %64 = vector.load %arg3[%c0_81, %c0_82] : memref<1x8xf32, #tpu.memory_space<vmem>>, vector<1x8xf32>
    %65 = vector.broadcast %64 : vector<1x8xf32> to vector<64x8xf32>
    %66 = arith.addf %63, %65 : vector<64x8xf32>
    %cst_83 = arith.constant 0.000000e+00 : f32
    %67 = vector.broadcast %cst_83 : f32 to vector<64x8xf32>
    %68 = arith.maximumf %66, %67 : vector<64x8xf32>
    %69 = vector.shape_cast %68 : vector<64x8xf32> to vector<1x8x8x8xf32>
    %70 = arith.truncf %69 : vector<1x8x8x8xf32> to vector<1x8x8x8xbf16>
    %c0_84 = arith.constant 0 : index
    %c0_85 = arith.constant 0 : index
    %c0_86 = arith.constant 0 : index
    %c0_87 = arith.constant 0 : index
    %71 = vector.load %arg4[%c0_84, %c0_85, %c0_86, %c0_87] : memref<1x8x8x8xbf16, #tpu.memory_space<vmem>>, vector<1x8x8x8xbf16>
    tpu.vector_store %arg4[%c0_84, %c0_85, %c0_86, %c0_87], %70 {strides = array<i32>} : memref<1x8x8x8xbf16, #tpu.memory_space<vmem>>, vector<1x8x8x8xbf16>,
    return
  }
  func.func @transform_0(%arg0: i32) -> (i32, i32, i32, i32, i32, i32) {
    %c0_i32 = arith.constant 0 : i32
    %c0_i32_0 = arith.constant 0 : i32
    %c0_i32_1 = arith.constant 0 : i32
    %c0_i32_2 = arith.constant 0 : i32
    %c0_i32_3 = arith.constant 0 : i32
    %c0_i32_4 = arith.constant 0 : i32
    return %arg0, %c0_i32, %c0_i32_0, %c0_i32_1, %c0_i32_2, %c0_i32_3 : i32, i32, i32, i32, i32, i32
  }
  func.func @transform_1(%arg0: i32) -> (i32, i32, i32) {
    %c0_i32 = arith.constant 0 : i32
    %c0_i32_0 = arith.constant 0 : i32
    %c0_i32_1 = arith.constant 0 : i32
    %c0_i32_2 = arith.constant 0 : i32
    return %c0_i32, %c0_i32_0, %c0_i32_1 : i32, i32, i32
  }
  func.func @transform_2(%arg0: i32) -> (i32, i32) {
    %c0_i32 = arith.constant 0 : i32
    %c0_i32_0 = arith.constant 0 : i32
    %c0_i32_1 = arith.constant 0 : i32
    return %c0_i32, %c0_i32_0 : i32, i32
  }
  func.func @transform_3(%arg0: i32) -> (i32, i32, i32, i32) {
    %c0_i32 = arith.constant 0 : i32
    %c0_i32_0 = arith.constant 0 : i32
    %c0_i32_1 = arith.constant 0 : i32
    %c0_i32_2 = arith.constant 0 : i32
    return %arg0, %c0_i32, %c0_i32_0, %c0_i32_1 : i32, i32, i32, i32
  }
}

module attributes {stable_mosaic.version = 11 : i64} {
  func.func @_conv1x1_se_kernel(%arg0: i32, %arg1: memref<1x8x8x8xbf16, #tpu.memory_space<vmem>>, %arg2: memref<8x32xbf16, #tpu.memory_space<vmem>>, %arg3: memref<1x32xf32, #tpu.memory_space<vmem>>, %arg4: memref<1x8x8x32xbf16, #tpu.memory_space<vmem>>, %arg5: memref<1x1x32xf32, #tpu.memory_space<vmem>>) attributes {dimension_semantics = [#tpu.dimension_semantics<parallel>], iteration_bounds = array<i64: 2>, scalar_prefetch = 0 : i64, scratch_operands = 0 : i64, tpu.core_type = #tpu.core_type<tc>, window_params = [{transform_indices = @transform_0, window_bounds = array<i64: 1, 8, 8, 8>}, {pipeline_mode = #tpu.pipeline_mode<synchronous>, transform_indices = @transform_1, window_bounds = array<i64: 8, 32>}, {pipeline_mode = #tpu.pipeline_mode<synchronous>, transform_indices = @transform_2, window_bounds = array<i64: 1, 32>}, {transform_indices = @transform_3, window_bounds = array<i64: 1, 8, 8, 32>}, {transform_indices = @transform_4, window_bounds = array<i64: 1, 1, 32>}]} {
    %c0 = arith.constant 0 : index
    %c0_0 = arith.constant 0 : index
    %c0_1 = arith.constant 0 : index
    %c0_2 = arith.constant 0 : index
    %0 = vector.load %arg1[%c0, %c0_0, %c0_1, %c0_2] : memref<1x8x8x8xbf16, #tpu.memory_space<vmem>>, vector<1x8x8x8xbf16>
    %1 = vector.shape_cast %0 : vector<1x8x8x8xbf16> to vector<64x8xbf16>
    %c0_3 = arith.constant 0 : index
    %c0_4 = arith.constant 0 : index
    %2 = vector.load %arg2[%c0_3, %c0_4] : memref<8x32xbf16, #tpu.memory_space<vmem>>, vector<8x32xbf16>
    %cst = arith.constant dense<0.000000e+00> : vector<64x32xf32>
    %3 = tpu.matmul %1, %2, %cst {dimension_numbers = #tpu.dot_dimension_numbers<[1], [0], [0], [1], [0, 0, 1, 1], [], []>} : vector<64x8xbf16>, vector<8x32xbf16>, vector<64x32xf32> -> vector<64x32xf32>
    %c0_5 = arith.constant 0 : index
    %c0_6 = arith.constant 0 : index
    %4 = vector.load %arg3[%c0_5, %c0_6] : memref<1x32xf32, #tpu.memory_space<vmem>>, vector<1x32xf32>
    %5 = vector.broadcast %4 : vector<1x32xf32> to vector<64x32xf32>
    %6 = arith.addf %3, %5 : vector<64x32xf32>
    %cst_7 = arith.constant 0.000000e+00 : f32
    %7 = vector.broadcast %cst_7 : f32 to vector<64x32xf32>
    %8 = arith.maximumf %6, %7 : vector<64x32xf32>
    %9 = vector.shape_cast %8 : vector<64x32xf32> to vector<1x8x8x32xf32>
    %10 = arith.truncf %9 : vector<1x8x8x32xf32> to vector<1x8x8x32xbf16>
    %c0_8 = arith.constant 0 : index
    %c0_9 = arith.constant 0 : index
    %c0_10 = arith.constant 0 : index
    %c0_11 = arith.constant 0 : index
    %11 = vector.load %arg4[%c0_8, %c0_9, %c0_10, %c0_11] : memref<1x8x8x32xbf16, #tpu.memory_space<vmem>>, vector<1x8x8x32xbf16>
    tpu.vector_store %arg4[%c0_8, %c0_9, %c0_10, %c0_11], %10 {strides = array<i32>} : memref<1x8x8x32xbf16, #tpu.memory_space<vmem>>, vector<1x8x8x32xbf16>,
    %cst_12 = arith.constant dense<0.000000e+00> : vector<32xf32>
    %12 = vector.multi_reduction <add>, %8, %cst_12 [0] : vector<64x32xf32> to vector<32xf32>
    %13 = vector.shape_cast %12 : vector<32xf32> to vector<1x32xf32>
    %14 = vector.shape_cast %13 : vector<1x32xf32> to vector<1x1x32xf32>
    %c0_13 = arith.constant 0 : index
    %c0_14 = arith.constant 0 : index
    %c0_15 = arith.constant 0 : index
    %15 = vector.load %arg5[%c0_13, %c0_14, %c0_15] : memref<1x1x32xf32, #tpu.memory_space<vmem>>, vector<1x1x32xf32>
    tpu.vector_store %arg5[%c0_13, %c0_14, %c0_15], %14 {strides = array<i32>} : memref<1x1x32xf32, #tpu.memory_space<vmem>>, vector<1x1x32xf32>,
    return
  }
  func.func @transform_0(%arg0: i32) -> (i32, i32, i32, i32) {
    %c0_i32 = arith.constant 0 : i32
    %c0_i32_0 = arith.constant 0 : i32
    %c0_i32_1 = arith.constant 0 : i32
    %c0_i32_2 = arith.constant 0 : i32
    return %arg0, %c0_i32, %c0_i32_0, %c0_i32_1 : i32, i32, i32, i32
  }
  func.func @transform_1(%arg0: i32) -> (i32, i32) {
    %c0_i32 = arith.constant 0 : i32
    %c0_i32_0 = arith.constant 0 : i32
    %c0_i32_1 = arith.constant 0 : i32
    return %c0_i32, %c0_i32_0 : i32, i32
  }
  func.func @transform_2(%arg0: i32) -> (i32, i32) {
    %c0_i32 = arith.constant 0 : i32
    %c0_i32_0 = arith.constant 0 : i32
    %c0_i32_1 = arith.constant 0 : i32
    return %c0_i32, %c0_i32_0 : i32, i32
  }
  func.func @transform_3(%arg0: i32) -> (i32, i32, i32, i32) {
    %c0_i32 = arith.constant 0 : i32
    %c0_i32_0 = arith.constant 0 : i32
    %c0_i32_1 = arith.constant 0 : i32
    %c0_i32_2 = arith.constant 0 : i32
    return %arg0, %c0_i32, %c0_i32_0, %c0_i32_1 : i32, i32, i32, i32
  }
  func.func @transform_4(%arg0: i32) -> (i32, i32, i32) {
    %c0_i32 = arith.constant 0 : i32
    %c0_i32_0 = arith.constant 0 : i32
    %c0_i32_1 = arith.constant 0 : i32
    return %arg0, %c0_i32, %c0_i32_0 : i32, i32, i32
  }
}

module attributes {stable_mosaic.version = 11 : i64} {
  func.func @_excite_kernel(%arg0: i32, %arg1: memref<2x32xf32, #tpu.memory_space<vmem>>, %arg2: memref<32x8xf32, #tpu.memory_space<vmem>>, %arg3: memref<1x8xf32, #tpu.memory_space<vmem>>, %arg4: memref<8x32xf32, #tpu.memory_space<vmem>>, %arg5: memref<1x32xf32, #tpu.memory_space<vmem>>, %arg6: memref<2x32xf32, #tpu.memory_space<vmem>>) attributes {dimension_semantics = [#tpu.dimension_semantics<arbitrary>], iteration_bounds = array<i64: 1>, scalar_prefetch = 0 : i64, scratch_operands = 0 : i64, tpu.core_type = #tpu.core_type<tc>, window_params = [{pipeline_mode = #tpu.pipeline_mode<synchronous>, transform_indices = @transform_0, window_bounds = array<i64: 2, 32>}, {pipeline_mode = #tpu.pipeline_mode<synchronous>, transform_indices = @transform_1, window_bounds = array<i64: 32, 8>}, {pipeline_mode = #tpu.pipeline_mode<synchronous>, transform_indices = @transform_2, window_bounds = array<i64: 1, 8>}, {pipeline_mode = #tpu.pipeline_mode<synchronous>, transform_indices = @transform_3, window_bounds = array<i64: 8, 32>}, {pipeline_mode = #tpu.pipeline_mode<synchronous>, transform_indices = @transform_4, window_bounds = array<i64: 1, 32>}, {pipeline_mode = #tpu.pipeline_mode<synchronous>, transform_indices = @transform_5, window_bounds = array<i64: 2, 32>}]} {
    %c0 = arith.constant 0 : index
    %c0_0 = arith.constant 0 : index
    %0 = vector.load %arg1[%c0, %c0_0] : memref<2x32xf32, #tpu.memory_space<vmem>>, vector<2x32xf32>
    %c0_1 = arith.constant 0 : index
    %c0_2 = arith.constant 0 : index
    %1 = vector.load %arg2[%c0_1, %c0_2] : memref<32x8xf32, #tpu.memory_space<vmem>>, vector<32x8xf32>
    %cst = arith.constant dense<0.000000e+00> : vector<2x8xf32>
    %2 = tpu.matmul %0, %1, %cst {dimension_numbers = #tpu.dot_dimension_numbers<[1], [0], [0], [1], [0, 0, 1, 1], [], []>} : vector<2x32xf32>, vector<32x8xf32>, vector<2x8xf32> -> vector<2x8xf32>
    %c0_3 = arith.constant 0 : index
    %c0_4 = arith.constant 0 : index
    %3 = vector.load %arg3[%c0_3, %c0_4] : memref<1x8xf32, #tpu.memory_space<vmem>>, vector<1x8xf32>
    %4 = vector.broadcast %3 : vector<1x8xf32> to vector<2x8xf32>
    %5 = arith.addf %2, %4 : vector<2x8xf32>
    %cst_5 = arith.constant 0.000000e+00 : f32
    %6 = vector.broadcast %cst_5 : f32 to vector<2x8xf32>
    %7 = arith.maximumf %5, %6 : vector<2x8xf32>
    %c0_6 = arith.constant 0 : index
    %c0_7 = arith.constant 0 : index
    %8 = vector.load %arg4[%c0_6, %c0_7] : memref<8x32xf32, #tpu.memory_space<vmem>>, vector<8x32xf32>
    %cst_8 = arith.constant dense<0.000000e+00> : vector<2x32xf32>
    %9 = tpu.matmul %7, %8, %cst_8 {dimension_numbers = #tpu.dot_dimension_numbers<[1], [0], [0], [1], [0, 0, 1, 1], [], []>} : vector<2x8xf32>, vector<8x32xf32>, vector<2x32xf32> -> vector<2x32xf32>
    %c0_9 = arith.constant 0 : index
    %c0_10 = arith.constant 0 : index
    %10 = vector.load %arg5[%c0_9, %c0_10] : memref<1x32xf32, #tpu.memory_space<vmem>>, vector<1x32xf32>
    %11 = vector.broadcast %10 : vector<1x32xf32> to vector<2x32xf32>
    %12 = arith.addf %9, %11 : vector<2x32xf32>
    %cst_11 = arith.constant 0.000000e+00 : f32
    %13 = vector.broadcast %cst_11 : f32 to vector<2x32xf32>
    %14 = arith.subf %13, %12 : vector<2x32xf32>
    %15 = math.exp %14 : vector<2x32xf32>
    %cst_12 = arith.constant 1.000000e+00 : f32
    %16 = vector.broadcast %cst_12 : f32 to vector<2x32xf32>
    %17 = arith.addf %16, %15 : vector<2x32xf32>
    %cst_13 = arith.constant 1.000000e+00 : f32
    %18 = vector.broadcast %cst_13 : f32 to vector<2x32xf32>
    %19 = arith.divf %18, %17 : vector<2x32xf32>
    %c0_14 = arith.constant 0 : index
    %c0_15 = arith.constant 0 : index
    %20 = vector.load %arg6[%c0_14, %c0_15] : memref<2x32xf32, #tpu.memory_space<vmem>>, vector<2x32xf32>
    tpu.vector_store %arg6[%c0_14, %c0_15], %19 {strides = array<i32>} : memref<2x32xf32, #tpu.memory_space<vmem>>, vector<2x32xf32>,
    return
  }
  func.func @transform_0(%arg0: i32) -> (i32, i32) {
    %c0_i32 = arith.constant 0 : i32
    %c0_i32_0 = arith.constant 0 : i32
    %c0_i32_1 = arith.constant 0 : i32
    return %c0_i32, %c0_i32_0 : i32, i32
  }
  func.func @transform_1(%arg0: i32) -> (i32, i32) {
    %c0_i32 = arith.constant 0 : i32
    %c0_i32_0 = arith.constant 0 : i32
    %c0_i32_1 = arith.constant 0 : i32
    return %c0_i32, %c0_i32_0 : i32, i32
  }
  func.func @transform_2(%arg0: i32) -> (i32, i32) {
    %c0_i32 = arith.constant 0 : i32
    %c0_i32_0 = arith.constant 0 : i32
    %c0_i32_1 = arith.constant 0 : i32
    return %c0_i32, %c0_i32_0 : i32, i32
  }
  func.func @transform_3(%arg0: i32) -> (i32, i32) {
    %c0_i32 = arith.constant 0 : i32
    %c0_i32_0 = arith.constant 0 : i32
    %c0_i32_1 = arith.constant 0 : i32
    return %c0_i32, %c0_i32_0 : i32, i32
  }
  func.func @transform_4(%arg0: i32) -> (i32, i32) {
    %c0_i32 = arith.constant 0 : i32
    %c0_i32_0 = arith.constant 0 : i32
    %c0_i32_1 = arith.constant 0 : i32
    return %c0_i32, %c0_i32_0 : i32, i32
  }
  func.func @transform_5(%arg0: i32) -> (i32, i32) {
    %c0_i32 = arith.constant 0 : i32
    %c0_i32_0 = arith.constant 0 : i32
    %c0_i32_1 = arith.constant 0 : i32
    return %c0_i32, %c0_i32_0 : i32, i32
  }
}

module attributes {stable_mosaic.version = 11 : i64} {
  func.func @_scale_add_relu_kernel(%arg0: i32, %arg1: i32, %arg2: memref<1x8x256xbf16, #tpu.memory_space<vmem>>, %arg3: memref<1x8x256xbf16, #tpu.memory_space<vmem>>, %arg4: memref<1x1x256xf32, #tpu.memory_space<vmem>>, %arg5: memref<1x8x256xbf16, #tpu.memory_space<vmem>>) attributes {dimension_semantics = [#tpu.dimension_semantics<parallel>, #tpu.dimension_semantics<parallel>], iteration_bounds = array<i64: 2, 1>, scalar_prefetch = 0 : i64, scratch_operands = 0 : i64, tpu.core_type = #tpu.core_type<tc>, window_params = [{transform_indices = @transform_0, window_bounds = array<i64: 1, 8, 256>}, {transform_indices = @transform_1, window_bounds = array<i64: 1, 8, 256>}, {transform_indices = @transform_2, window_bounds = array<i64: 1, 1, 256>}, {transform_indices = @transform_3, window_bounds = array<i64: 1, 8, 256>}]} {
    %c0 = arith.constant 0 : index
    %c0_0 = arith.constant 0 : index
    %c0_1 = arith.constant 0 : index
    %0 = vector.load %arg2[%c0, %c0_0, %c0_1] : memref<1x8x256xbf16, #tpu.memory_space<vmem>>, vector<1x8x256xbf16>
    %1 = arith.extf %0 : vector<1x8x256xbf16> to vector<1x8x256xf32>
    %c0_2 = arith.constant 0 : index
    %c0_3 = arith.constant 0 : index
    %c0_4 = arith.constant 0 : index
    %2 = vector.load %arg4[%c0_2, %c0_3, %c0_4] : memref<1x1x256xf32, #tpu.memory_space<vmem>>, vector<1x1x256xf32>
    %3 = vector.broadcast %2 : vector<1x1x256xf32> to vector<1x8x256xf32>
    %4 = arith.mulf %1, %3 : vector<1x8x256xf32>
    %c0_5 = arith.constant 0 : index
    %c0_6 = arith.constant 0 : index
    %c0_7 = arith.constant 0 : index
    %5 = vector.load %arg3[%c0_5, %c0_6, %c0_7] : memref<1x8x256xbf16, #tpu.memory_space<vmem>>, vector<1x8x256xbf16>
    %6 = arith.extf %5 : vector<1x8x256xbf16> to vector<1x8x256xf32>
    %7 = arith.addf %4, %6 : vector<1x8x256xf32>
    %cst = arith.constant 0.000000e+00 : f32
    %8 = vector.broadcast %cst : f32 to vector<1x8x256xf32>
    %9 = arith.maximumf %7, %8 : vector<1x8x256xf32>
    %10 = arith.truncf %9 : vector<1x8x256xf32> to vector<1x8x256xbf16>
    %c0_8 = arith.constant 0 : index
    %c0_9 = arith.constant 0 : index
    %c0_10 = arith.constant 0 : index
    %11 = vector.load %arg5[%c0_8, %c0_9, %c0_10] : memref<1x8x256xbf16, #tpu.memory_space<vmem>>, vector<1x8x256xbf16>
    tpu.vector_store %arg5[%c0_8, %c0_9, %c0_10], %10 {strides = array<i32>} : memref<1x8x256xbf16, #tpu.memory_space<vmem>>, vector<1x8x256xbf16>,
    return
  }
  func.func @transform_0(%arg0: i32, %arg1: i32) -> (i32, i32, i32) {
    %c0_i32 = arith.constant 0 : i32
    %c0_i32_0 = arith.constant 0 : i32
    return %arg0, %arg1, %c0_i32 : i32, i32, i32
  }
  func.func @transform_1(%arg0: i32, %arg1: i32) -> (i32, i32, i32) {
    %c0_i32 = arith.constant 0 : i32
    %c0_i32_0 = arith.constant 0 : i32
    return %arg0, %arg1, %c0_i32 : i32, i32, i32
  }
  func.func @transform_2(%arg0: i32, %arg1: i32) -> (i32, i32, i32) {
    %c0_i32 = arith.constant 0 : i32
    %c0_i32_0 = arith.constant 0 : i32
    %c0_i32_1 = arith.constant 0 : i32
    return %arg0, %c0_i32, %c0_i32_0 : i32, i32, i32
  }
  func.func @transform_3(%arg0: i32, %arg1: i32) -> (i32, i32, i32) {
    %c0_i32 = arith.constant 0 : i32
    %c0_i32_0 = arith.constant 0 : i32
    return %arg0, %arg1, %c0_i32 : i32, i32, i32
  }
}

</mosaic_0001>

<llo_original>
// kernel: bottleneck_se_forward.9
$region0: #{bottleneck_se_forward.9}
  #allocation0 [shape = 'u32[]', space=smem, size = 0x4, offset = 0x4, fixed_abs, tag = 'smem constant byte address 0x4 - core index']
  #allocation1 [shape = 'u32[144,128]{1,0:T(1,128)}', space=vmem, size = 0x12000, scoped, tag = 'internal scratch']
  %s0 = inlined_call_operand.vmem [shape: bf16[2,8,2,8,8], index: 0, kind: input, shape index: {}]
  %s1 = inlined_call_operand.vmem [shape: bf16[4,32], index: 1, kind: input, shape index: {}]
  %s2 = inlined_call_operand.vmem [shape: f32[1,32], index: 2, kind: input, shape index: {}]
  %s3 = inlined_call_operand.vmem [shape: bf16[2,8,8,32], index: 3, kind: output, shape index: {}]
  %s4 = sld [smem:[#allocation0]]
  $region86: #{bottleneck_se_forward.9} parent=0
    _
  %s6 = ssub.s32 1, %s4
  %s7 = scalar_select 0, %s6, %s4
  $region1: #{bottleneck_se_forward.9} parent=0
    #allocation2 [shape = 'u8[32768]{0}', space=vmem, size = 0x8000, scoped, tag = 'input window, operand 0']
    loop: start=0, step=1, limit=4
    $region2: #{bottleneck_se_forward.9} parent=1 // loop_pre_header
      _
    $region3: #{bottleneck_se_forward.9} parent=1 // loop_header
      %s9 = sphi 0, %s13
      %p10 = scmp.ge.s32.totalorder %s9, 4
      %s19 = sphi 0, %s21
      %s22 = sphi 0, %s19
      %s23 = sphi 0, %s22
      %s39 = sphi 0, %s23
      %s43 = sphi 0, %s43
      %s45 = sphi 0, %s43
      %s46 = sphi 0, %s45
      %s60 = sphi 0, %s46
      %s64 = sphi 0, %s64
      %s66 = sphi 0, %s64
      %s67 = sphi 0, %s66
      %s81 = sphi 0, %s67
      %s87 = sphi 0, %s89
      %s90 = sphi 0, %s87
      %s91 = sphi 0, %s90
      %s107 = sphi 0, %s91
    $region4: #{bottleneck_se_forward.9} parent=1 // loop_header_branch
      %12 = sbr.rel (%p10) target = $region8
    $region5: #{bottleneck_se_forward.9} parent=1 // loop_body
      %s14 = ssub.s32 %s9, 1
      %s15 = ssub.s32 %s9, 2
      %s16 = sadd.s32 %s9, 1
      %s17 = ssub.s32 %s9, %s16
      %p18 = scmp.eq.s32.totalorder %s17, 0
      %s20 = sadd.s32 %s19, 1
      %s21 = scalar_select %p18, %s19, %s20
      %p24 = pneg %p18
      %p25 = scmp.eq.s32.totalorder %s9, 1
      %p26 = por %p24, %p25
      %p27 = scmp.ne.s32.totalorder %s19, %s22
      %p28 = scmp.eq.s32.totalorder %s9, 0
      %p29 = por %p27, %p28
      %p30 = scmp.ne.s32.totalorder %s19, %s22
      %p31 = scmp.eq.s32.totalorder %s14, 1
      %p32 = por %p30, %p31
      %p33 = scmp.ne.s32.totalorder %s22, %s23
      %p34 = scmp.eq.s32.totalorder %s14, 0
      %p35 = por %p33, %p34
      %p36 = scmp.ne.s32.totalorder %s22, %s23
      %p37 = scmp.eq.s32.totalorder %s15, 1
      %p38 = por %p36, %p37
      %p40 = scmp.ne.s32.totalorder %s23, %s39
      %p41 = scmp.eq.s32.totalorder %s15, 0
      %p42 = por %p40, %p41
      %s44 = sadd.s32 %s43, 1
      %p47 = scmp.eq.s32.totalorder %s9, 1
      %p48 = scmp.ne.s32.totalorder %s43, %s45
      %p49 = scmp.eq.s32.totalorder %s9, 0
      %p50 = por %p48, %p49
      %p51 = scmp.ne.s32.totalorder %s43, %s45
      %p52 = scmp.eq.s32.totalorder %s14, 1
      %p53 = por %p51, %p52
      %p54 = scmp.ne.s32.totalorder %s45, %s46
      %p55 = scmp.eq.s32.totalorder %s14, 0
      %p56 = por %p54, %p55
      %p57 = scmp.ne.s32.totalorder %s45, %s46
      %p58 = scmp.eq.s32.totalorder %s15, 1
      %p59 = por %p57, %p58
      %p61 = scmp.ne.s32.totalorder %s46, %s60
      %p62 = scmp.eq.s32.totalorder %s15, 0
      %p63 = por %p61, %p62
      %s65 = sadd.s32 %s64, 1
      %p68 = scmp.eq.s32.totalorder %s9, 1
      %p69 = scmp.ne.s32.totalorder %s64, %s66
      %p70 = scmp.eq.s32.totalorder %s9, 0
      %p71 = por %p69, %p70
      %p72 = scmp.ne.s32.totalorder %s64, %s66
      %p73 = scmp.eq.s32.totalorder %s14, 1
      %p74 = por %p72, %p73
      %p75 = scmp.ne.s32.totalorder %s66, %s67
      %p76 = scmp.eq.s32.totalorder %s14, 0
      %p77 = por %p75, %p76
      %p78 = scmp.ne.s32.totalorder %s66, %s67
      %p79 = scmp.eq.s32.totalorder %s15, 1
      %p80 = por %p78, %p79
      %p82 = scmp.ne.s32.totalorder %s67, %s81
      %p83 = scmp.eq.s32.totalorder %s15, 0
      %p84 = por %p82, %p83
      %s85 = ssub.s32 %s9, %s16
      %p86 = scmp.eq.s32.totalorder %s85, 0
      %s88 = sadd.s32 %s87, 1
      %s89 = scalar_select %p86, %s87, %s88
      %p92 = pneg %p86
      %p93 = scmp.eq.s32.totalorder %s9, 1
      %p94 = por %p92, %p93
      %p95 = scmp.ne.s32.totalorder %s87, %s90
      %p96 = scmp.eq.s32.totalorder %s9, 0
      %p97 = por %p95, %p96
      %p98 = scmp.ne.s32.totalorder %s87, %s90
      %p99 = scmp.eq.s32.totalorder %s14, 1
      %p100 = por %p98, %p99
      %p101 = scmp.ne.s32.totalorder %s90, %s91
      %p102 = scmp.eq.s32.totalorder %s14, 0
      %p103 = por %p101, %p102
      %p104 = scmp.ne.s32.totalorder %s90, %s91
      %p105 = scmp.eq.s32.totalorder %s15, 1
      %p106 = por %p104, %p105
      %p108 = scmp.ne.s32.totalorder %s91, %s107
      %p109 = scmp.eq.s32.totalorder %s15, 0
      %p110 = por %p108, %p109
      %p111 = scmp.le.s32.totalorder 1, %s9
      %p112 = scmp.lt.s32.totalorder %s9, 3
      %p113 = pnand %p111, %p112
      %p114 = pneg %p113
      // Predicated region
      $region9: #{bottleneck_se_forward.9} parent=5 // pred_check
        _
      $region10: #{bottleneck_se_forward.9} parent=5 // pred_check_branch
        %116 = sbr.rel (%p113) target = $region12
      $region11: #{bottleneck_se_forward.9} parent=5 // pred_region
        %s117 = ssub.s32 %s9, 1
        // Predicated region
        $region13: #{bottleneck_se_forward.9} parent=11 // pred_check
          %p118 = pneg %p56
        $region14: #{bottleneck_se_forward.9} parent=11 // pred_check_branch
          %120 = sbr.rel (%p118) target = $region16
        $region15: #{bottleneck_se_forward.9} parent=11 // pred_region
          _
        $region16: #{bottleneck_se_forward.9} parent=11 // pred_fallthru
          _
        // Predicated region
        $region17: #{bottleneck_se_forward.9} parent=11 // pred_check
          %p121 = pneg %p77
        $region18: #{bottleneck_se_forward.9} parent=11 // pred_check_branch
          %123 = sbr.rel (%p121) target = $region20
        $region19: #{bottleneck_se_forward.9} parent=11 // pred_region
          _
        $region20: #{bottleneck_se_forward.9} parent=11 // pred_fallthru
          _
      $region12: #{bottleneck_se_forward.9} parent=5 // pred_fallthru
        _
      %p124 = scmp.lt.s32.totalorder %s9, 2
      // Predicated region
      $region21: #{bottleneck_se_forward.9} parent=5 // pred_check
        %p125 = pneg %p124
      $region22: #{bottleneck_se_forward.9} parent=5 // pred_check_branch
        %127 = sbr.rel (%p125) target = $region24
      $region23: #{bottleneck_se_forward.9} parent=5 // pred_region
        // Predicated region
        $region25: #{bottleneck_se_forward.9} parent=23 // pred_check
          %p128 = pneg %p29
        $region26: #{bottleneck_se_forward.9} parent=23 // pred_check_branch
          %130 = sbr.rel (%p128) target = $region28
        $region27: #{bottleneck_se_forward.9} parent=23 // pred_region
          %s131 = sand.u32 %s19, 1
          %s132 = sand.u32 %s19, 1
          %s133 = smul.addr %s132, 32
          %s134 = scalar_lea.vmem [#allocation2], %s133
          %s135 = smul.addr %s9, 16
          %s136 = smul.addr %s135, 4
          %s137 = scalar_lea.vmem %s0, %s136
          // Predicated region
          $region29: #{bottleneck_se_forward.9} parent=27 // pred_check
            _
          $region30: #{bottleneck_se_forward.9} parent=27 // pred_check_branch
            %139 = sbr.rel (0) target = $region32
          $region31: #{bottleneck_se_forward.9} parent=27 // pred_region
            // Predicated region
            $region33: #{bottleneck_se_forward.9} parent=31 // pred_check
              _
            $region34: #{bottleneck_se_forward.9} parent=31 // pred_check_branch
              %141 = sbr.rel target = $region36
            $region35: #{bottleneck_se_forward.9} parent=31 // pred_region
              // Predicated region
              $region48: #{bottleneck_se_forward.9} parent=35 // pred_check
                _
              $region49: #{bottleneck_se_forward.9} parent=35 // pred_check_branch
                %171 = sbr.rel (0) target = $region51
              $region50: #{bottleneck_se_forward.9} parent=35 // pred_region
                loop: start=0, step=1, limit=1
                $region52: #{bottleneck_se_forward.9} parent=50 // loop_pre_header
                  _
                $region53: #{bottleneck_se_forward.9} parent=50 // loop_header
                  %s173 = sphi 0, %s177
                  %p174 = scmp.ge.s32.totalorder %s173, 1
                  %s178 = sphi %s137, %s137
                  %s179 = sphi %s134, %s134
                $region54: #{bottleneck_se_forward.9} parent=50 // loop_header_branch
                  %176 = sbr.rel (%p174) target = $region58
                $region55: #{bottleneck_se_forward.9} parent=50 // loop_body
                  _
                $region56: #{bottleneck_se_forward.9} parent=50 // loop_footer
                  %s177 = sadd.s32 1, %s173
                $region57: #{bottleneck_se_forward.9} parent=50 // loop_footer_branch
                  %172 = sbr.rel target = $region53
                $region58: #{bottleneck_se_forward.9} parent=50 // loop_exit
                  _
                %s181 = ssub.s32 16, 1
                loop: start=0, step=1, limit=1
                $region59: #{bottleneck_se_forward.9} parent=50 // loop_pre_header
                  _
                $region60: #{bottleneck_se_forward.9} parent=50 // loop_header
                  %s183 = sphi 0, %s187
                  %p184 = scmp.ge.s32.totalorder %s183, 1
                  %s188 = sphi %s137, %s137
                  %s189 = sphi %s134, %s134
                $region61: #{bottleneck_se_forward.9} parent=50 // loop_header_branch
                  %186 = sbr.rel (%p184) target = $region65
                $region62: #{bottleneck_se_forward.9} parent=50 // loop_body
                  %v190 = vld [vmem:[%s188] sm:%s181]
                  %191 = vst [vmem:[%s189] sm:%s181] %v190
                  %v192 = vld [vmem:[%s188 + $0x8] sm:%s181]
                  %193 = vst [vmem:[%s189 + $0x4] sm:%s181] %v192
                  %v194 = vld [vmem:[%s188 + $0x10] sm:%s181]
                  %195 = vst [vmem:[%s189 + $0x8] sm:%s181] %v194
                  %v196 = vld [vmem:[%s188 + $0x18] sm:%s181]
                  %197 = vst [vmem:[%s189 + $0xc] sm:%s181] %v196
                  %v198 = vld [vmem:[%s188 + $0x20] sm:%s181]
                  %199 = vst [vmem:[%s189 + $0x10] sm:%s181] %v198
                  %v200 = vld [vmem:[%s188 + $0x28] sm:%s181]
                  %201 = vst [vmem:[%s189 + $0x14] sm:%s181] %v200
                  %v202 = vld [vmem:[%s188 + $0x30] sm:%s181]
                  %203 = vst [vmem:[%s189 + $0x18] sm:%s181] %v202
                  %v204 = vld [vmem:[%s188 + $0x38] sm:%s181]
                  %205 = vst [vmem:[%s189 + $0x1c] sm:%s181] %v204
                $region63: #{bottleneck_se_forward.9} parent=50 // loop_footer
                  %s187 = sadd.s32 1, %s183
                $region64: #{bottleneck_se_forward.9} parent=50 // loop_footer_branch
                  %182 = sbr.rel target = $region60
                $region65: #{bottleneck_se_forward.9} parent=50 // loop_exit
                  _
              $region51: #{bottleneck_se_forward.9} parent=35 // pred_fallthru
                _
            $region36: #{bottleneck_se_forward.9} parent=31 // pred_fallthru
              _
            // Predicated region
            $region37: #{bottleneck_se_forward.9} parent=31 // pred_check
              _
            $region38: #{bottleneck_se_forward.9} parent=31 // pred_check_branch
              %143 = sbr.rel (0) target = $region40
            $region39: #{bottleneck_se_forward.9} parent=31 // pred_region
              %s145 = ssub.s32 16, 1
              loop: start=0, step=1, limit=1
              $region41: #{bottleneck_se_forward.9} parent=39 // loop_pre_header
                _
              $region42: #{bottleneck_se_forward.9} parent=39 // loop_header
                %s147 = sphi 0, %s151
                %p148 = scmp.ge.s32.totalorder %s147, 1
                %s152 = sphi %s137, %s137
                %s153 = sphi %s134, %s134
              $region43: #{bottleneck_se_forward.9} parent=39 // loop_header_branch
                %150 = sbr.rel (%p148) target = $region47
              $region44: #{bottleneck_se_forward.9} parent=39 // loop_body
                %v154 = vld [vmem:[%s152] sm:%s145]
                %155 = vst [vmem:[%s153] sm:%s145] %v154
                %v156 = vld [vmem:[%s152 + $0x8] sm:%s145]
                %157 = vst [vmem:[%s153 + $0x4] sm:%s145] %v156
                %v158 = vld [vmem:[%s152 + $0x10] sm:%s145]
                %159 = vst [vmem:[%s153 + $0x8] sm:%s145] %v158
                %v160 = vld [vmem:[%s152 + $0x18] sm:%s145]
                %161 = vst [vmem:[%s153 + $0xc] sm:%s145] %v160
                %v162 = vld [vmem:[%s152 + $0x20] sm:%s145]
                %163 = vst [vmem:[%s153 + $0x10] sm:%s145] %v162
                %v164 = vld [vmem:[%s152 + $0x28] sm:%s145]
                %165 = vst [vmem:[%s153 + $0x14] sm:%s145] %v164
                %v166 = vld [vmem:[%s152 + $0x30] sm:%s145]
                %167 = vst [vmem:[%s153 + $0x18] sm:%s145] %v166
                %v168 = vld [vmem:[%s152 + $0x38] sm:%s145]
                %169 = vst [vmem:[%s153 + $0x1c] sm:%s145] %v168
              $region45: #{bottleneck_se_forward.9} parent=39 // loop_footer
                %s151 = sadd.s32 1, %s147
              $region46: #{bottleneck_se_forward.9} parent=39 // loop_footer_branch
                %146 = sbr.rel target = $region42
              $region47: #{bottleneck_se_forward.9} parent=39 // loop_exit
                _
            $region40: #{bottleneck_se_forward.9} parent=31 // pred_fallthru
              _
          $region32: #{bottleneck_se_forward.9} parent=27 // pred_fallthru
            _
          %206 = vnop
        $region28: #{bottleneck_se_forward.9} parent=23 // pred_fallthru
          _
      $region24: #{bottleneck_se_forward.9} parent=5 // pred_fallthru
        _
      %p207 = scmp.le.s32.totalorder 1, %s9
      %p208 = scmp.lt.s32.totalorder %s9, 3
      %p209 = pnand %p207, %p208
      %p210 = pneg %p209
      // Predicated region
      $region66: #{bottleneck_se_forward.9} parent=5 // pred_check
        _
      $region67: #{bottleneck_se_forward.9} parent=5 // pred_check_branch
        %212 = sbr.rel (%p209) target = $region69
      $region68: #{bottleneck_se_forward.9} parent=5 // pred_region
        %s213 = ssub.s32 %s9, 1
        %s214 = sand.u32 %s22, 1
        %s215 = sand.u32 %s22, 1
        %s216 = smul.addr %s215, 32
        %s217 = scalar_lea.vmem [#allocation2], %s216
        // Predicated region
        $region70: #{bottleneck_se_forward.9} parent=68 // pred_check
          %p218 = pneg %p35
        $region71: #{bottleneck_se_forward.9} parent=68 // pred_check_branch
          %220 = sbr.rel (%p218) target = $region73
        $region72: #{bottleneck_se_forward.9} parent=68 // pred_region
          _
        $region73: #{bottleneck_se_forward.9} parent=68 // pred_fallthru
          _
        %s221 = sand.u32 %s22, 1
        %s222 = sand.u32 %s22, 1
        %s223 = smul.addr %s222, 32
        %s224 = scalar_lea.vmem [#allocation2], %s223
        %p225 = pneg %p35
        %p226 = pneg %p32
        %p227 = pneg %p56
        %p228 = pneg %p53
        %p229 = pneg %p77
        %p230 = pneg %p74
        %p231 = pneg %p103
        %p232 = pneg %p100
        %p233 = scmp.lt.s32.totalorder %s14, 1
        %s234 = scalar_select %p233, %s14, 1
        %s235 = smul.addr %s234, 8
        %s236 = smul.addr %s235, 4
        %s237 = scalar_lea.vmem %s3, %s236
        %p238 = scmp.lt.s32.totalorder %s14, 1
        %s239 = scalar_select %p238, %s14, 1
        %s240 = smul.addr %s239, 8
        %s241 = smul.addr %s240, 4
        %s242 = scalar_lea.vmem %s3, %s241
        %v244 = vld [vmem:[%s217] sm:$0xf]
        %v245 = vld [vmem:[%s217 + $0x4] sm:$0xf]
        %v246 = vld [vmem:[%s217 + $0x8] sm:$0xf]
        %v247 = vld [vmem:[%s217 + $0xc] sm:$0xf]
        %v248 = vld [vmem:[%s217 + $0x10] sm:$0xf]
        %v249 = vld [vmem:[%s217 + $0x14] sm:$0xf]
        %v250 = vld [vmem:[%s217 + $0x18] sm:$0xf]
        %v251 = vld [vmem:[%s217 + $0x1c] sm:$0xf]
        %v252 = vld [vmem:[%s1] sm:$0x3]
        %v253 = vld [vmem:[%s2] sm:$0x1]
        %v255 = vlaneseq
        %v256 = vshrl.u32 %v255, 7
        %v257 = vsub.s32 0, %v256
        %v258 = vrot.slane %v253, %v257
        %v268 = vunpack.c.l.b16 %v244
        %v269 = vunpack.c.l.b16 %v245
        %v270 = vunpack.c.l.b16 %v246
        %v271 = vunpack.c.l.b16 %v247
        %v272 = vunpack.c.l.b16 %v248
        %v273 = vunpack.c.l.b16 %v249
        %v274 = vunpack.c.l.b16 %v250
        %v275 = vunpack.c.l.b16 %v251
        %v276 = vpack.c.b16 %v269, %v268
        %v277 = vpack.c.b16 %v271, %v270
        %v278 = vpack.c.b16 %v273, %v272
        %v279 = vpack.c.b16 %v275, %v274
        %vm280 = vcmask 31744
        %v282 = vsel %vm280, %v276, 0
        %v285 = vsel %vm280, %v277, 0
        %v288 = vsel %vm280, %v278, 0
        %v291 = vsel %vm280, %v279, 0
        %vm293 = vcmask 1041408
        %v295 = vsel %vm293, %v252, 0
        %297 = vmatprep.subr.bf16.mxu0 0
        %298 = vmatpush1.bf16.msra.mxu0 0
        %299 = vmatprep.subr.bf16.mxu0 0
        %300 = vmatpush1.bf16.msra.mxu0 0
        %301 = vmatprep.subr.bf16.mxu0 0
        %302 = vmatpush1.bf16.msra.mxu0 0
        %303 = vmatprep.subr.bf16.mxu0 0
        %304 = vmatpush1.bf16.msra.mxu0 0
        %305 = vmatprep.subr.bf16.mxu0 0
        %306 = vmatpush1.bf16.msra.mxu0 0
        %307 = vmatprep.subr.bf16.mxu0 0
        %308 = vmatpush1.bf16.msra.mxu0 0
        %309 = vmatprep.subr.bf16.mxu0 0
        %310 = vmatpush1.bf16.msra.mxu0 0
        %311 = vmatprep.subr.bf16.mxu0 0
        %312 = vmatpush1.bf16.msra.mxu0 %v295
        %313 = vmatprep.subr.bf16.mxu0 0
        %314 = vmatpush2.bf16.msra.mxu0 0
        %315 = vmatprep.subr.bf16.mxu0 0
        %316 = vmatpush2.bf16.msra.mxu0 0
        %317 = vmatprep.subr.bf16.mxu0 0
        %318 = vmatpush2.bf16.msra.mxu0 0
        %319 = vmatprep.subr.bf16.mxu0 0
        %320 = vmatpush2.bf16.msra.mxu0 0
        %321 = vmatprep.subr.bf16.mxu0 0
        %322 = vmatpush2.bf16.msra.mxu0 0
        %323 = vmatprep.subr.bf16.mxu0 0
        %324 = vmatpush2.bf16.msra.mxu0 0
        %325 = vmatprep.subr.bf16.mxu0 0
        %326 = vmatpush2.bf16.msra.mxu0 0
        %327 = vmatprep.subr.bf16.mxu0 0
        %328 = vmatpush2.bf16.msra.mxu0 0
        %329 = vmatprep.mubr.bf16.mxu0 0
        %330 = vmatmul.mubr.bf16.gmra.mxu0 %v282
        %v331 = vpop.f32.mrf.mxu0
        %v332 = vadd.f32 %v258, %v331
        %v333 = vpop.f32.mrf.mxu0
        %v334 = vpop.f32.mrf.mxu0
        %v335 = vadd.f32 %v258, %v334
        %v336 = vpop.f32.mrf.mxu0
        %337 = vmatprep.mubr.bf16.mxu0 0
        %338 = vmatmul.mubr.bf16.gmra.mxu0 %v285
        %v339 = vpop.f32.mrf.mxu0
        %v340 = vadd.f32 %v258, %v339
        %v341 = vpop.f32.mrf.mxu0
        %v342 = vpop.f32.mrf.mxu0
        %v343 = vadd.f32 %v258, %v342
        %v344 = vpop.f32.mrf.mxu0
        %345 = vmatprep.mubr.bf16.mxu0 0
        %346 = vmatmul.mubr.bf16.gmra.mxu0 %v288
        %v347 = vpop.f32.mrf.mxu0
        %v348 = vadd.f32 %v258, %v347
        %v349 = vpop.f32.mrf.mxu0
        %v350 = vpop.f32.mrf.mxu0
        %v351 = vadd.f32 %v258, %v350
        %v352 = vpop.f32.mrf.mxu0
        %353 = vmatprep.mubr.bf16.mxu0 0
        %354 = vmatmul.mubr.bf16.gmra.mxu0 %v291
        %v355 = vpop.f32.mrf.mxu0
        %v356 = vadd.f32 %v258, %v355
        %v357 = vpop.f32.mrf.mxu0
        %v358 = vpop.f32.mrf.mxu0
        %v359 = vadd.f32 %v258, %v358
        %v360 = vpop.f32.mrf.mxu0
        %361 = vdwg.mxu0
        %v362 = vpack.c.bf16 %v332, %v332
        %v363 = vpack.c.bf16 %v335, %v335
        %v364 = vpack.c.bf16 %v340, %v340
        %v365 = vpack.c.bf16 %v343, %v343
        %v366 = vpack.c.bf16 %v348, %v348
        %v367 = vpack.c.bf16 %v351, %v351
        %v368 = vpack.c.bf16 %v356, %v356
        %v369 = vpack.c.bf16 %v359, %v359
        %vm370 = vcmask 257024
        %371 = vst.msk [vmem:[%s242] sm:$0xf] %vm370, %v362
        %372 = vst.msk [vmem:[%s242 + $0x4] sm:$0xf] %vm370, %v363
        %373 = vst.msk [vmem:[%s242 + $0x8] sm:$0xf] %vm370, %v364
        %374 = vst.msk [vmem:[%s242 + $0xc] sm:$0xf] %vm370, %v365
        %375 = vst.msk [vmem:[%s242 + $0x10] sm:$0xf] %vm370, %v366
        %376 = vst.msk [vmem:[%s242 + $0x14] sm:$0xf] %vm370, %v367
        %377 = vst.msk [vmem:[%s242 + $0x18] sm:$0xf] %vm370, %v368
        %378 = vst.msk [vmem:[%s242 + $0x1c] sm:$0xf] %vm370, %v369
        %p379 = scmp.lt.s32.totalorder %s14, 1
        %s380 = scalar_select %p379, %s14, 1
        %s381 = smul.addr %s380, 8
        %s382 = smul.addr %s381, 4
        %s383 = scalar_lea.vmem %s3, %s382
        // Predicated region
        $region74: #{bottleneck_se_forward.9} parent=68 // pred_check
          %p384 = pneg %p100
        $region75: #{bottleneck_se_forward.9} parent=68 // pred_check_branch
          %386 = sbr.rel (%p384) target = $region77
        $region76: #{bottleneck_se_forward.9} parent=68 // pred_region
          _
        $region77: #{bottleneck_se_forward.9} parent=68 // pred_fallthru
          _
      $region69: #{bottleneck_se_forward.9} parent=5 // pred_fallthru
        _
      %p387 = scmp.le.s32.totalorder 2, %s9
      // Predicated region
      $region78: #{bottleneck_se_forward.9} parent=5 // pred_check
        %p388 = pneg %p387
      $region79: #{bottleneck_se_forward.9} parent=5 // pred_check_branch
        %390 = sbr.rel (%p388) target = $region81
      $region80: #{bottleneck_se_forward.9} parent=5 // pred_region
        %s391 = ssub.s32 %s9, 2
        // Predicated region
        $region82: #{bottleneck_se_forward.9} parent=80 // pred_check
          %p392 = pneg %p106
        $region83: #{bottleneck_se_forward.9} parent=80 // pred_check_branch
          %394 = sbr.rel (%p392) target = $region85
        $region84: #{bottleneck_se_forward.9} parent=80 // pred_region
          %p395 = scmp.lt.s32.totalorder %s15, 1
          %s396 = scalar_select %p395, %s15, 1
          %s397 = smul.addr %s396, 8
          %s398 = smul.addr %s397, 4
          %s399 = scalar_lea.vmem %s3, %s398
        $region85: #{bottleneck_se_forward.9} parent=80 // pred_fallthru
          _
      $region81: #{bottleneck_se_forward.9} parent=5 // pred_fallthru
        _
    $region6: #{bottleneck_se_forward.9} parent=1 // loop_footer
      %s13 = sadd.s32 1, %s9
    $region7: #{bottleneck_se_forward.9} parent=1 // loop_footer_branch
      %8 = sbr.rel target = $region3
    $region8: #{bottleneck_se_forward.9} parent=1 // loop_exit
      _

// kernel: bottleneck_se_forward.6
$region0: #{bottleneck_se_forward.6}
  #allocation0 [shape = 'u32[]', space=smem, size = 0x4, offset = 0x4, fixed_abs, tag = 'smem constant byte address 0x4 - core index']
  #allocation1 [shape = 'u32[144,128]{1,0:T(1,128)}', space=vmem, size = 0x12000, scoped, tag = 'internal scratch']
  %s0 = inlined_call_operand.vmem [shape: bf16[512,4], index: 0, kind: input, shape index: {}]
  %s1 = inlined_call_operand.vmem [shape: bf16[4,8], index: 1, kind: input, shape index: {}]
  %s2 = inlined_call_operand.vmem [shape: f32[1,8], index: 2, kind: input, shape index: {}]
  %s3 = inlined_call_operand.vmem [shape: bf16[512,8], index: 3, kind: output, shape index: {}]
  %s4 = sld [smem:[#allocation0]]
  $region45: #{bottleneck_se_forward.6} parent=0
    _
  %s6 = ssub.s32 1, %s4
  %s7 = scalar_select 0, %s6, %s4
  loop: start=0, step=1, limit=4
  $region2: #{bottleneck_se_forward.6} parent=0 // loop_pre_header
    _
  $region3: #{bottleneck_se_forward.6} parent=0 // loop_header
    %s9 = sphi 0, %s13
    %p10 = scmp.ge.s32.totalorder %s9, 4
    %s16 = sphi 0, %s28
    %s17 = sphi 0, %s24
    %s18 = sphi 0, %s16
    %s19 = sphi 0, %s17
    %s20 = sphi 0, %s18
    %s21 = sphi 0, %s19
    %s31 = sphi 0, %s33
    %s34 = sphi 0, %s31
    %s35 = sphi 0, %s34
    %s51 = sphi 0, %s35
    %s57 = sphi 0, %s59
    %s60 = sphi 0, %s57
    %s61 = sphi 0, %s60
    %s77 = sphi 0, %s61
    %s83 = sphi 0, %s85
    %s86 = sphi 0, %s83
    %s87 = sphi 0, %s86
    %s103 = sphi 0, %s87
    %s111 = sphi 0, %s113
    %s114 = sphi 0, %s111
    %s115 = sphi 0, %s114
    %s131 = sphi 0, %s115
  $region4: #{bottleneck_se_forward.6} parent=0 // loop_header_branch
    %12 = sbr.rel (%p10) target = $region8
  $region5: #{bottleneck_se_forward.6} parent=0 // loop_body
    %s14 = ssub.s32 %s9, 1
    %s15 = ssub.s32 %s9, 2
    %s22 = sadd.s32 1, %s17
    %p23 = scmp.ge.s32.totalorder %s22, 1
    %s24 = scalar_select %p23, 0, %s22
    %s25 = sadd.s32 1, %s16
    %s26 = scalar_select %p23, %s25, %s16
    %p27 = scmp.ge.s32.totalorder %s26, 2
    %s28 = scalar_select %p27, 0, %s26
    %s29 = ssub.s32 %s16, %s28
    %p30 = scmp.eq.s32.totalorder %s29, 0
    %s32 = sadd.s32 %s31, 1
    %s33 = scalar_select %p30, %s31, %s32
    %p36 = pneg %p30
    %p37 = scmp.eq.s32.totalorder %s9, 1
    %p38 = por %p36, %p37
    %p39 = scmp.ne.s32.totalorder %s31, %s34
    %p40 = scmp.eq.s32.totalorder %s9, 0
    %p41 = por %p39, %p40
    %p42 = scmp.ne.s32.totalorder %s31, %s34
    %p43 = scmp.eq.s32.totalorder %s14, 1
    %p44 = por %p42, %p43
    %p45 = scmp.ne.s32.totalorder %s34, %s35
    %p46 = scmp.eq.s32.totalorder %s14, 0
    %p47 = por %p45, %p46
    %p48 = scmp.ne.s32.totalorder %s34, %s35
    %p49 = scmp.eq.s32.totalorder %s15, 1
    %p50 = por %p48, %p49
    %p52 = scmp.ne.s32.totalorder %s35, %s51
    %p53 = scmp.eq.s32.totalorder %s15, 0
    %p54 = por %p52, %p53
    %s55 = ssub.s32 %s17, %s24
    %p56 = scmp.eq.s32.totalorder %s55, 0
    %s58 = sadd.s32 %s57, 1
    %s59 = scalar_select %p56, %s57, %s58
    %p62 = pneg %p56
    %p63 = scmp.eq.s32.totalorder %s9, 1
    %p64 = por %p62, %p63
    %p65 = scmp.ne.s32.totalorder %s57, %s60
    %p66 = scmp.eq.s32.totalorder %s9, 0
    %p67 = por %p65, %p66
    %p68 = scmp.ne.s32.totalorder %s57, %s60
    %p69 = scmp.eq.s32.totalorder %s14, 1
    %p70 = por %p68, %p69
    %p71 = scmp.ne.s32.totalorder %s60, %s61
    %p72 = scmp.eq.s32.totalorder %s14, 0
    %p73 = por %p71, %p72
    %p74 = scmp.ne.s32.totalorder %s60, %s61
    %p75 = scmp.eq.s32.totalorder %s15, 1
    %p76 = por %p74, %p75
    %p78 = scmp.ne.s32.totalorder %s61, %s77
    %p79 = scmp.eq.s32.totalorder %s15, 0
    %p80 = por %p78, %p79
    %s81 = ssub.s32 %s17, %s24
    %p82 = scmp.eq.s32.totalorder %s81, 0
    %s84 = sadd.s32 %s83, 1
    %s85 = scalar_select %p82, %s83, %s84
    %p88 = pneg %p82
    %p89 = scmp.eq.s32.totalorder %s9, 1
    %p90 = por %p88, %p89
    %p91 = scmp.ne.s32.totalorder %s83, %s86
    %p92 = scmp.eq.s32.totalorder %s9, 0
    %p93 = por %p91, %p92
    %p94 = scmp.ne.s32.totalorder %s83, %s86
    %p95 = scmp.eq.s32.totalorder %s14, 1
    %p96 = por %p94, %p95
    %p97 = scmp.ne.s32.totalorder %s86, %s87
    %p98 = scmp.eq.s32.totalorder %s14, 0
    %p99 = por %p97, %p98
    %p100 = scmp.ne.s32.totalorder %s86, %s87
    %p101 = scmp.eq.s32.totalorder %s15, 1
    %p102 = por %p100, %p101
    %p104 = scmp.ne.s32.totalorder %s87, %s103
    %p105 = scmp.eq.s32.totalorder %s15, 0
    %p106 = por %p104, %p105
    %s107 = ssub.s32 %s16, %s28
    %s108 = ssub.s32 %s17, %s24
    %s109 = sor.u32 %s107, %s108
    %p110 = scmp.eq.s32.totalorder %s109, 0
    %s112 = sadd.s32 %s111, 1
    %s113 = scalar_select %p110, %s111, %s112
    %p116 = pneg %p110
    %p117 = scmp.eq.s32.totalorder %s9, 1
    %p118 = por %p116, %p117
    %p119 = scmp.ne.s32.totalorder %s111, %s114
    %p120 = scmp.eq.s32.totalorder %s9, 0
    %p121 = por %p119, %p120
    %p122 = scmp.ne.s32.totalorder %s111, %s114
    %p123 = scmp.eq.s32.totalorder %s14, 1
    %p124 = por %p122, %p123
    %p125 = scmp.ne.s32.totalorder %s114, %s115
    %p126 = scmp.eq.s32.totalorder %s14, 0
    %p127 = por %p125, %p126
    %p128 = scmp.ne.s32.totalorder %s114, %s115
    %p129 = scmp.eq.s32.totalorder %s15, 1
    %p130 = por %p128, %p129
    %p132 = scmp.ne.s32.totalorder %s115, %s131
    %p133 = scmp.eq.s32.totalorder %s15, 0
    %p134 = por %p132, %p133
    %p135 = scmp.le.s32.totalorder 1, %s9
    %p136 = scmp.lt.s32.totalorder %s9, 3
    %p137 = pnand %p135, %p136
    %p138 = pneg %p137
    // Predicated region
    $region9: #{bottleneck_se_forward.6} parent=5 // pred_check
      _
    $region10: #{bottleneck_se_forward.6} parent=5 // pred_check_branch
      %140 = sbr.rel (%p137) target = $region12
    $region11: #{bottleneck_se_forward.6} parent=5 // pred_region
      %s141 = ssub.s32 %s9, 1
      // Predicated region
      $region13: #{bottleneck_se_forward.6} parent=11 // pred_check
        %p142 = pneg %p73
      $region14: #{bottleneck_se_forward.6} parent=11 // pred_check_branch
        %144 = sbr.rel (%p142) target = $region16
      $region15: #{bottleneck_se_forward.6} parent=11 // pred_region
        %p145 = scmp.lt.s32.totalorder %s19, 0
        %s146 = scalar_select %p145, %s19, 0
        %s147 = smul.addr %s146, 2
        %s148 = scalar_lea.vmem %s1, %s147
      $region16: #{bottleneck_se_forward.6} parent=11 // pred_fallthru
        _
      // Predicated region
      $region17: #{bottleneck_se_forward.6} parent=11 // pred_check
        %p149 = pneg %p99
      $region18: #{bottleneck_se_forward.6} parent=11 // pred_check_branch
        %151 = sbr.rel (%p149) target = $region20
      $region19: #{bottleneck_se_forward.6} parent=11 // pred_region
        %p152 = scmp.lt.s32.totalorder %s19, 0
        %s153 = scalar_select %p152, %s19, 0
        %s154 = scalar_lea.vmem %s2, %s153
      $region20: #{bottleneck_se_forward.6} parent=11 // pred_fallthru
        _
    $region12: #{bottleneck_se_forward.6} parent=5 // pred_fallthru
      _
    %p155 = scmp.lt.s32.totalorder %s9, 2
    // Predicated region
    $region21: #{bottleneck_se_forward.6} parent=5 // pred_check
      %p156 = pneg %p155
    $region22: #{bottleneck_se_forward.6} parent=5 // pred_check_branch
      %158 = sbr.rel (%p156) target = $region24
    $region23: #{bottleneck_se_forward.6} parent=5 // pred_region
      // Predicated region
      $region25: #{bottleneck_se_forward.6} parent=23 // pred_check
        %p159 = pneg %p41
      $region26: #{bottleneck_se_forward.6} parent=23 // pred_check_branch
        %161 = sbr.rel (%p159) target = $region28
      $region27: #{bottleneck_se_forward.6} parent=23 // pred_region
        %s162 = smul.u32 32, %s16
        %p163 = scmp.lt.s32.totalorder %s162, 63
        %s164 = scalar_select %p163, %s162, 63
        %s165 = smul.addr %s164, 4
        %s166 = scalar_lea.vmem %s0, %s165
        %s167 = smul.u32 32, %s16
      $region28: #{bottleneck_se_forward.6} parent=23 // pred_fallthru
        _
    $region24: #{bottleneck_se_forward.6} parent=5 // pred_fallthru
      _
    %p168 = scmp.le.s32.totalorder 1, %s9
    %p169 = scmp.lt.s32.totalorder %s9, 3
    %p170 = pnand %p168, %p169
    %p171 = pneg %p170
    // Predicated region
    $region29: #{bottleneck_se_forward.6} parent=5 // pred_check
      _
    $region30: #{bottleneck_se_forward.6} parent=5 // pred_check_branch
      %173 = sbr.rel (%p170) target = $region32
    $region31: #{bottleneck_se_forward.6} parent=5 // pred_region
      %s174 = ssub.s32 %s9, 1
      %s175 = smul.u32 32, %s18
      %p176 = scmp.lt.s32.totalorder %s175, 63
      %s177 = scalar_select %p176, %s175, 63
      %s178 = smul.addr %s177, 4
      %s179 = scalar_lea.vmem %s0, %s178
      %p180 = pneg %p47
      %p181 = pneg %p44
      %p182 = scmp.lt.s32.totalorder %s19, 0
      %s183 = scalar_select %p182, %s19, 0
      %s184 = smul.addr %s183, 2
      %s185 = scalar_lea.vmem %s1, %s184
      %p186 = pneg %p73
      %p187 = pneg %p70
      %p188 = scmp.lt.s32.totalorder %s19, 0
      %s189 = scalar_select %p188, %s19, 0
      %s190 = scalar_lea.vmem %s2, %s189
      %p191 = pneg %p99
      %p192 = pneg %p96
      %p193 = pneg %p127
      %p194 = pneg %p124
      %s195 = smul.u32 32, %s18
      %p196 = scmp.lt.s32.totalorder %s195, 63
      %s197 = scalar_select %p196, %s195, 63
      %p198 = scmp.lt.s32.totalorder %s19, 0
      %s199 = scalar_select %p198, %s19, 0
      %s200 = sadd.s32 %s199, %s197
      %s201 = smul.addr %s200, 4
      %s202 = scalar_lea.vmem %s3, %s201
      %s203 = smul.u32 32, %s18
      %p204 = scmp.lt.s32.totalorder %s203, 63
      %s205 = scalar_select %p204, %s203, 63
      %s206 = smul.addr %s205, 4
      %s207 = scalar_lea.vmem %s0, %s206
      %s208 = smul.u32 32, %s18
      %p209 = scmp.lt.s32.totalorder %s19, 0
      %s210 = scalar_select %p209, %s19, 0
      %s211 = smul.addr %s210, 2
      %s212 = scalar_lea.vmem %s1, %s211
      %p213 = scmp.lt.s32.totalorder %s19, 0
      %s214 = scalar_select %p213, %s19, 0
      %s215 = scalar_lea.vmem %s2, %s214
      %s216 = smul.u32 32, %s18
      %p217 = scmp.lt.s32.totalorder %s216, 63
      %s218 = scalar_select %p217, %s216, 63
      %p219 = scmp.lt.s32.totalorder %s19, 0
      %s220 = scalar_select %p219, %s19, 0
      %s221 = sadd.s32 %s220, %s218
      %s222 = smul.addr %s221, 4
      %s223 = scalar_lea.vmem %s3, %s222
      %s224 = smul.u32 32, %s18
      %v226 = vld [vmem:[%s207] sm:$0xf]
      %v227 = vld [vmem:[%s207 + $0x4] sm:$0xf]
      %v228 = vld [vmem:[%s207 + $0x8] sm:$0xf]
      %v229 = vld [vmem:[%s207 + $0xc] sm:$0xf]
      %v230 = vld [vmem:[%s207 + $0x10] sm:$0xf]
      %v231 = vld [vmem:[%s207 + $0x14] sm:$0xf]
      %v232 = vld [vmem:[%s207 + $0x18] sm:$0xf]
      %v233 = vld [vmem:[%s207 + $0x1c] sm:$0xf]
      %v234 = vld [vmem:[%s207 + $0x20] sm:$0xf]
      %v235 = vld [vmem:[%s207 + $0x24] sm:$0xf]
      %v236 = vld [vmem:[%s207 + $0x28] sm:$0xf]
      %v237 = vld [vmem:[%s207 + $0x2c] sm:$0xf]
      %v238 = vld [vmem:[%s207 + $0x30] sm:$0xf]
      %v239 = vld [vmem:[%s207 + $0x34] sm:$0xf]
      %v240 = vld [vmem:[%s207 + $0x38] sm:$0xf]
      %v241 = vld [vmem:[%s207 + $0x3c] sm:$0xf]
      %v242 = vld [vmem:[%s207 + $0x40] sm:$0xf]
      %v243 = vld [vmem:[%s207 + $0x44] sm:$0xf]
      %v244 = vld [vmem:[%s207 + $0x48] sm:$0xf]
      %v245 = vld [vmem:[%s207 + $0x4c] sm:$0xf]
      %v246 = vld [vmem:[%s207 + $0x50] sm:$0xf]
      %v247 = vld [vmem:[%s207 + $0x54] sm:$0xf]
      %v248 = vld [vmem:[%s207 + $0x58] sm:$0xf]
      %v249 = vld [vmem:[%s207 + $0x5c] sm:$0xf]
      %v250 = vld [vmem:[%s207 + $0x60] sm:$0xf]
      %v251 = vld [vmem:[%s207 + $0x64] sm:$0xf]
      %v252 = vld [vmem:[%s207 + $0x68] sm:$0xf]
      %v253 = vld [vmem:[%s207 + $0x6c] sm:$0xf]
      %v254 = vld [vmem:[%s207 + $0x70] sm:$0xf]
      %v255 = vld [vmem:[%s207 + $0x74] sm:$0xf]
      %v256 = vld [vmem:[%s207 + $0x78] sm:$0xf]
      %v257 = vld [vmem:[%s207 + $0x7c] sm:$0xf]
      %v258 = vld [vmem:[%s212] sm:$0x3]
      %v259 = vld [vmem:[%s215] sm:$0x1]
      %v261 = vlaneseq
      %v262 = vshrl.u32 %v261, 7
      %v263 = vsub.s32 0, %v262
      %v264 = vrot.slane %v259, %v263
      %v298 = vunpack.c.l.b16 %v226
      %v299 = vunpack.c.l.b16 %v227
      %v300 = vunpack.c.l.b16 %v228
      %v301 = vunpack.c.l.b16 %v229
      %v302 = vunpack.c.l.b16 %v230
      %v303 = vunpack.c.l.b16 %v231
      %v304 = vunpack.c.l.b16 %v232
      %v305 = vunpack.c.l.b16 %v233
      %v306 = vunpack.c.l.b16 %v234
      %v307 = vunpack.c.l.b16 %v235
      %v308 = vunpack.c.l.b16 %v236
      %v309 = vunpack.c.l.b16 %v237
      %v310 = vunpack.c.l.b16 %v238
      %v311 = vunpack.c.l.b16 %v239
      %v312 = vunpack.c.l.b16 %v240
      %v313 = vunpack.c.l.b16 %v241
      %v314 = vunpack.c.l.b16 %v242
      %v315 = vunpack.c.l.b16 %v243
      %v316 = vunpack.c.l.b16 %v244
      %v317 = vunpack.c.l.b16 %v245
      %v318 = vunpack.c.l.b16 %v246
      %v319 = vunpack.c.l.b16 %v247
      %v320 = vunpack.c.l.b16 %v248
      %v321 = vunpack.c.l.b16 %v249
      %v322 = vunpack.c.l.b16 %v250
      %v323 = vunpack.c.l.b16 %v251
      %v324 = vunpack.c.l.b16 %v252
      %v325 = vunpack.c.l.b16 %v253
      %v326 = vunpack.c.l.b16 %v254
      %v327 = vunpack.c.l.b16 %v255
      %v328 = vunpack.c.l.b16 %v256
      %v329 = vunpack.c.l.b16 %v257
      %v330 = vpack.c.b16 %v299, %v298
      %v331 = vpack.c.b16 %v301, %v300
      %v332 = vpack.c.b16 %v303, %v302
      %v333 = vpack.c.b16 %v305, %v304
      %v334 = vpack.c.b16 %v307, %v306
      %v335 = vpack.c.b16 %v309, %v308
      %v336 = vpack.c.b16 %v311, %v310
      %v337 = vpack.c.b16 %v313, %v312
      %v338 = vpack.c.b16 %v315, %v314
      %v339 = vpack.c.b16 %v317, %v316
      %v340 = vpack.c.b16 %v319, %v318
      %v341 = vpack.c.b16 %v321, %v320
      %v342 = vpack.c.b16 %v323, %v322
      %v343 = vpack.c.b16 %v325, %v324
      %v344 = vpack.c.b16 %v327, %v326
      %v345 = vpack.c.b16 %v329, %v328
      %vm346 = vcmask 31744
      %v348 = vsel %vm346, %v330, 0
      %v351 = vsel %vm346, %v331, 0
      %v354 = vsel %vm346, %v332, 0
      %v357 = vsel %vm346, %v333, 0
      %v360 = vsel %vm346, %v334, 0
      %v363 = vsel %vm346, %v335, 0
      %v366 = vsel %vm346, %v336, 0
      %v369 = vsel %vm346, %v337, 0
      %v372 = vsel %vm346, %v338, 0
      %v375 = vsel %vm346, %v339, 0
      %v378 = vsel %vm346, %v340, 0
      %v381 = vsel %vm346, %v341, 0
      %v384 = vsel %vm346, %v342, 0
      %v387 = vsel %vm346, %v343, 0
      %v390 = vsel %vm346, %v344, 0
      %v393 = vsel %vm346, %v345, 0
      %vm395 = vcmask 1041408
      %v397 = vsel %vm395, %v258, 0
      %399 = vmatprep.subr.bf16.mxu0 0
      %400 = vmatpush1.bf16.msra.mxu0 0
      %401 = vmatprep.subr.bf16.mxu0 0
      %402 = vmatpush1.bf16.msra.mxu0 0
      %403 = vmatprep.subr.bf16.mxu0 0
      %404 = vmatpush1.bf16.msra.mxu0 0
      %405 = vmatprep.subr.bf16.mxu0 0
      %406 = vmatpush1.bf16.msra.mxu0 0
      %407 = vmatprep.subr.bf16.mxu0 0
      %408 = vmatpush1.bf16.msra.mxu0 0
      %409 = vmatprep.subr.bf16.mxu0 0
      %410 = vmatpush1.bf16.msra.mxu0 0
      %411 = vmatprep.subr.bf16.mxu0 0
      %412 = vmatpush1.bf16.msra.mxu0 0
      %413 = vmatprep.subr.bf16.mxu0 0
      %414 = vmatpush1.bf16.msra.mxu0 %v397
      %415 = vmatprep.subr.bf16.mxu0 0
      %416 = vmatpush2.bf16.msra.mxu0 0
      %417 = vmatprep.subr.bf16.mxu0 0
      %418 = vmatpush2.bf16.msra.mxu0 0
      %419 = vmatprep.subr.bf16.mxu0 0
      %420 = vmatpush2.bf16.msra.mxu0 0
      %421 = vmatprep.subr.bf16.mxu0 0
      %422 = vmatpush2.bf16.msra.mxu0 0
      %423 = vmatprep.subr.bf16.mxu0 0
      %424 = vmatpush2.bf16.msra.mxu0 0
      %425 = vmatprep.subr.bf16.mxu0 0
      %426 = vmatpush2.bf16.msra.mxu0 0
      %427 = vmatprep.subr.bf16.mxu0 0
      %428 = vmatpush2.bf16.msra.mxu0 0
      %429 = vmatprep.subr.bf16.mxu0 0
      %430 = vmatpush2.bf16.msra.mxu0 0
      %431 = vmatprep.mubr.bf16.mxu0 0
      %432 = vmatmul.mubr.bf16.gmra.mxu0 %v348
      %v433 = vpop.f32.mrf.mxu0
      %v434 = vadd.f32 %v264, %v433
      %v435 = vpop.f32.mrf.mxu0
      %v436 = vpop.f32.mrf.mxu0
      %v437 = vadd.f32 %v264, %v436
      %v438 = vpop.f32.mrf.mxu0
      %439 = vmatprep.mubr.bf16.mxu0 0
      %440 = vmatmul.mubr.bf16.gmra.mxu0 %v351
      %v441 = vpop.f32.mrf.mxu0
      %v442 = vadd.f32 %v264, %v441
      %v443 = vpop.f32.mrf.mxu0
      %v444 = vpop.f32.mrf.mxu0
      %v445 = vadd.f32 %v264, %v444
      %v446 = vpop.f32.mrf.mxu0
      %447 = vmatprep.mubr.bf16.mxu0 0
      %448 = vmatmul.mubr.bf16.gmra.mxu0 %v354
      %v449 = vpop.f32.mrf.mxu0
      %v450 = vadd.f32 %v264, %v449
      %v451 = vpop.f32.mrf.mxu0
      %v452 = vpop.f32.mrf.mxu0
      %v453 = vadd.f32 %v264, %v452
      %v454 = vpop.f32.mrf.mxu0
      %455 = vmatprep.mubr.bf16.mxu0 0
      %456 = vmatmul.mubr.bf16.gmra.mxu0 %v357
      %v457 = vpop.f32.mrf.mxu0
      %v458 = vadd.f32 %v264, %v457
      %v459 = vpop.f32.mrf.mxu0
      %v460 = vpop.f32.mrf.mxu0
      %v461 = vadd.f32 %v264, %v460
      %v462 = vpop.f32.mrf.mxu0
      %463 = vmatprep.mubr.bf16.mxu0 0
      %464 = vmatmul.mubr.bf16.gmra.mxu0 %v360
      %v465 = vpop.f32.mrf.mxu0
      %v466 = vadd.f32 %v264, %v465
      %v467 = vpop.f32.mrf.mxu0
      %v468 = vpop.f32.mrf.mxu0
      %v469 = vadd.f32 %v264, %v468
      %v470 = vpop.f32.mrf.mxu0
      %471 = vmatprep.mubr.bf16.mxu0 0
      %472 = vmatmul.mubr.bf16.gmra.mxu0 %v363
      %v473 = vpop.f32.mrf.mxu0
      %v474 = vadd.f32 %v264, %v473
      %v475 = vpop.f32.mrf.mxu0
      %v476 = vpop.f32.mrf.mxu0
      %v477 = vadd.f32 %v264, %v476
      %v478 = vpop.f32.mrf.mxu0
      %479 = vmatprep.mubr.bf16.mxu0 0
      %480 = vmatmul.mubr.bf16.gmra.mxu0 %v366
      %v481 = vpop.f32.mrf.mxu0
      %v482 = vadd.f32 %v264, %v481
      %v483 = vpop.f32.mrf.mxu0
      %v484 = vpop.f32.mrf.mxu0
      %v485 = vadd.f32 %v264, %v484
      %v486 = vpop.f32.mrf.mxu0
      %487 = vmatprep.mubr.bf16.mxu0 0
      %488 = vmatmul.mubr.bf16.gmra.mxu0 %v369
      %v489 = vpop.f32.mrf.mxu0
      %v490 = vadd.f32 %v264, %v489
      %v491 = vpop.f32.mrf.mxu0
      %v492 = vpop.f32.mrf.mxu0
      %v493 = vadd.f32 %v264, %v492
      %v494 = vpop.f32.mrf.mxu0
      %495 = vmatprep.mubr.bf16.mxu0 0
      %496 = vmatmul.mubr.bf16.gmra.mxu0 %v372
      %v497 = vpop.f32.mrf.mxu0
      %v498 = vadd.f32 %v264, %v497
      %v499 = vpop.f32.mrf.mxu0
      %v500 = vpop.f32.mrf.mxu0
      %v501 = vadd.f32 %v264, %v500
      %v502 = vpop.f32.mrf.mxu0
      %503 = vmatprep.mubr.bf16.mxu0 0
      %504 = vmatmul.mubr.bf16.gmra.mxu0 %v375
      %v505 = vpop.f32.mrf.mxu0
      %v506 = vadd.f32 %v264, %v505
      %v507 = vpop.f32.mrf.mxu0
      %v508 = vpop.f32.mrf.mxu0
      %v509 = vadd.f32 %v264, %v508
      %v510 = vpop.f32.mrf.mxu0
      %511 = vmatprep.mubr.bf16.mxu0 0
      %512 = vmatmul.mubr.bf16.gmra.mxu0 %v378
      %v513 = vpop.f32.mrf.mxu0
      %v514 = vadd.f32 %v264, %v513
      %v515 = vpop.f32.mrf.mxu0
      %v516 = vpop.f32.mrf.mxu0
      %v517 = vadd.f32 %v264, %v516
      %v518 = vpop.f32.mrf.mxu0
      %519 = vmatprep.mubr.bf16.mxu0 0
      %520 = vmatmul.mubr.bf16.gmra.mxu0 %v381
      %v521 = vpop.f32.mrf.mxu0
      %v522 = vadd.f32 %v264, %v521
      %v523 = vpop.f32.mrf.mxu0
      %v524 = vpop.f32.mrf.mxu0
      %v525 = vadd.f32 %v264, %v524
      %v526 = vpop.f32.mrf.mxu0
      %527 = vmatprep.mubr.bf16.mxu0 0
      %528 = vmatmul.mubr.bf16.gmra.mxu0 %v384
      %v529 = vpop.f32.mrf.mxu0
      %v530 = vadd.f32 %v264, %v529
      %v531 = vpop.f32.mrf.mxu0
      %v532 = vpop.f32.mrf.mxu0
      %v533 = vadd.f32 %v264, %v532
      %v534 = vpop.f32.mrf.mxu0
      %535 = vmatprep.mubr.bf16.mxu0 0
      %536 = vmatmul.mubr.bf16.gmra.mxu0 %v387
      %v537 = vpop.f32.mrf.mxu0
      %v538 = vadd.f32 %v264, %v537
      %v539 = vpop.f32.mrf.mxu0
      %v540 = vpop.f32.mrf.mxu0
      %v541 = vadd.f32 %v264, %v540
      %v542 = vpop.f32.mrf.mxu0
      %543 = vmatprep.mubr.bf16.mxu0 0
      %544 = vmatmul.mubr.bf16.gmra.mxu0 %v390
      %v545 = vpop.f32.mrf.mxu0
      %v546 = vadd.f32 %v264, %v545
      %v547 = vpop.f32.mrf.mxu0
      %v548 = vpop.f32.mrf.mxu0
      %v549 = vadd.f32 %v264, %v548
      %v550 = vpop.f32.mrf.mxu0
      %551 = vmatprep.mubr.bf16.mxu0 0
      %552 = vmatmul.mubr.bf16.gmra.mxu0 %v393
      %v553 = vpop.f32.mrf.mxu0
      %v554 = vadd.f32 %v264, %v553
      %v555 = vpop.f32.mrf.mxu0
      %v556 = vpop.f32.mrf.mxu0
      %v557 = vadd.f32 %v264, %v556
      %v558 = vpop.f32.mrf.mxu0
      %559 = vdwg.mxu0
      %v560 = vmax.f32 %v434, 0.0
      %v561 = vmax.f32 %v437, 0.0
      %v562 = vmax.f32 %v442, 0.0
      %v563 = vmax.f32 %v445, 0.0
      %v564 = vmax.f32 %v450, 0.0
      %v565 = vmax.f32 %v453, 0.0
      %v566 = vmax.f32 %v458, 0.0
      %v567 = vmax.f32 %v461, 0.0
      %v568 = vmax.f32 %v466, 0.0
      %v569 = vmax.f32 %v469, 0.0
      %v570 = vmax.f32 %v474, 0.0
      %v571 = vmax.f32 %v477, 0.0
      %v572 = vmax.f32 %v482, 0.0
      %v573 = vmax.f32 %v485, 0.0
      %v574 = vmax.f32 %v490, 0.0
      %v575 = vmax.f32 %v493, 0.0
      %v576 = vmax.f32 %v498, 0.0
      %v577 = vmax.f32 %v501, 0.0
      %v578 = vmax.f32 %v506, 0.0
      %v579 = vmax.f32 %v509, 0.0
      %v580 = vmax.f32 %v514, 0.0
      %v581 = vmax.f32 %v517, 0.0
      %v582 = vmax.f32 %v522, 0.0
      %v583 = vmax.f32 %v525, 0.0
      %v584 = vmax.f32 %v530, 0.0
      %v585 = vmax.f32 %v533, 0.0
      %v586 = vmax.f32 %v538, 0.0
      %v587 = vmax.f32 %v541, 0.0
      %v588 = vmax.f32 %v546, 0.0
      %v589 = vmax.f32 %v549, 0.0
      %v590 = vmax.f32 %v554, 0.0
      %v591 = vmax.f32 %v557, 0.0
      %v592 = vpack.c.bf16 %v561, %v560
      %v593 = vpack.c.bf16 %v563, %v562
      %v594 = vpack.c.bf16 %v565, %v564
      %v595 = vpack.c.bf16 %v567, %v566
      %v596 = vpack.c.bf16 %v569, %v568
      %v597 = vpack.c.bf16 %v571, %v570
      %v598 = vpack.c.bf16 %v573, %v572
      %v599 = vpack.c.bf16 %v575, %v574
      %v600 = vpack.c.bf16 %v577, %v576
      %v601 = vpack.c.bf16 %v579, %v578
      %v602 = vpack.c.bf16 %v581, %v580
      %v603 = vpack.c.bf16 %v583, %v582
      %v604 = vpack.c.bf16 %v585, %v584
      %v605 = vpack.c.bf16 %v587, %v586
      %v606 = vpack.c.bf16 %v589, %v588
      %v607 = vpack.c.bf16 %v591, %v590
      %v624 = vunpack.c.l.b16 %v592
      %v625 = vunpack.c.h.b16 %v592
      %v626 = vunpack.c.l.b16 %v593
      %v627 = vunpack.c.h.b16 %v593
      %v628 = vunpack.c.l.b16 %v594
      %v629 = vunpack.c.h.b16 %v594
      %v630 = vunpack.c.l.b16 %v595
      %v631 = vunpack.c.h.b16 %v595
      %v632 = vunpack.c.l.b16 %v596
      %v633 = vunpack.c.h.b16 %v596
      %v634 = vunpack.c.l.b16 %v597
      %v635 = vunpack.c.h.b16 %v597
      %v636 = vunpack.c.l.b16 %v598
      %v637 = vunpack.c.h.b16 %v598
      %v638 = vunpack.c.l.b16 %v599
      %v639 = vunpack.c.h.b16 %v599
      %v640 = vunpack.c.l.b16 %v600
      %v641 = vunpack.c.h.b16 %v600
      %v642 = vunpack.c.l.b16 %v601
      %v643 = vunpack.c.h.b16 %v601
      %v644 = vunpack.c.l.b16 %v602
      %v645 = vunpack.c.h.b16 %v602
      %v646 = vunpack.c.l.b16 %v603
      %v647 = vunpack.c.h.b16 %v603
      %v648 = vunpack.c.l.b16 %v604
      %v649 = vunpack.c.h.b16 %v604
      %v650 = vunpack.c.l.b16 %v605
      %v651 = vunpack.c.h.b16 %v605
      %v652 = vunpack.c.l.b16 %v606
      %v653 = vunpack.c.h.b16 %v606
      %v654 = vunpack.c.l.b16 %v607
      %v655 = vunpack.c.h.b16 %v607
      %v656 = vpack.c.b16 %v624, %v624
      %v657 = vpack.c.b16 %v625, %v625
      %v658 = vpack.c.b16 %v626, %v626
      %v659 = vpack.c.b16 %v627, %v627
      %v660 = vpack.c.b16 %v628, %v628
      %v661 = vpack.c.b16 %v629, %v629
      %v662 = vpack.c.b16 %v630, %v630
      %v663 = vpack.c.b16 %v631, %v631
      %v664 = vpack.c.b16 %v632, %v632
      %v665 = vpack.c.b16 %v633, %v633
      %v666 = vpack.c.b16 %v634, %v634
      %v667 = vpack.c.b16 %v635, %v635
      %v668 = vpack.c.b16 %v636, %v636
      %v669 = vpack.c.b16 %v637, %v637
      %v670 = vpack.c.b16 %v638, %v638
      %v671 = vpack.c.b16 %v639, %v639
      %v672 = vpack.c.b16 %v640, %v640
      %v673 = vpack.c.b16 %v641, %v641
      %v674 = vpack.c.b16 %v642, %v642
      %v675 = vpack.c.b16 %v643, %v643
      %v676 = vpack.c.b16 %v644, %v644
      %v677 = vpack.c.b16 %v645, %v645
      %v678 = vpack.c.b16 %v646, %v646
      %v679 = vpack.c.b16 %v647, %v647
      %v680 = vpack.c.b16 %v648, %v648
      %v681 = vpack.c.b16 %v649, %v649
      %v682 = vpack.c.b16 %v650, %v650
      %v683 = vpack.c.b16 %v651, %v651
      %v684 = vpack.c.b16 %v652, %v652
      %v685 = vpack.c.b16 %v653, %v653
      %v686 = vpack.c.b16 %v654, %v654
      %v687 = vpack.c.b16 %v655, %v655
      %vm720 = vcmask 60416
      %721 = vst.msk [vmem:[%s223] sm:$0xf] %vm720, %v656
      %722 = vst.msk [vmem:[%s223 + $0x4] sm:$0xf] %vm720, %v657
      %723 = vst.msk [vmem:[%s223 + $0x8] sm:$0xf] %vm720, %v658
      %724 = vst.msk [vmem:[%s223 + $0xc] sm:$0xf] %vm720, %v659
      %725 = vst.msk [vmem:[%s223 + $0x10] sm:$0xf] %vm720, %v660
      %726 = vst.msk [vmem:[%s223 + $0x14] sm:$0xf] %vm720, %v661
      %727 = vst.msk [vmem:[%s223 + $0x18] sm:$0xf] %vm720, %v662
      %728 = vst.msk [vmem:[%s223 + $0x1c] sm:$0xf] %vm720, %v663
      %729 = vst.msk [vmem:[%s223 + $0x20] sm:$0xf] %vm720, %v664
      %730 = vst.msk [vmem:[%s223 + $0x24] sm:$0xf] %vm720, %v665
      %731 = vst.msk [vmem:[%s223 + $0x28] sm:$0xf] %vm720, %v666
      %732 = vst.msk [vmem:[%s223 + $0x2c] sm:$0xf] %vm720, %v667
      %733 = vst.msk [vmem:[%s223 + $0x30] sm:$0xf] %vm720, %v668
      %734 = vst.msk [vmem:[%s223 + $0x34] sm:$0xf] %vm720, %v669
      %735 = vst.msk [vmem:[%s223 + $0x38] sm:$0xf] %vm720, %v670
      %736 = vst.msk [vmem:[%s223 + $0x3c] sm:$0xf] %vm720, %v671
      %737 = vst.msk [vmem:[%s223 + $0x40] sm:$0xf] %vm720, %v672
      %738 = vst.msk [vmem:[%s223 + $0x44] sm:$0xf] %vm720, %v673
      %739 = vst.msk [vmem:[%s223 + $0x48] sm:$0xf] %vm720, %v674
      %740 = vst.msk [vmem:[%s223 + $0x4c] sm:$0xf] %vm720, %v675
      %741 = vst.msk [vmem:[%s223 + $0x50] sm:$0xf] %vm720, %v676
      %742 = vst.msk [vmem:[%s223 + $0x54] sm:$0xf] %vm720, %v677
      %743 = vst.msk [vmem:[%s223 + $0x58] sm:$0xf] %vm720, %v678
      %744 = vst.msk [vmem:[%s223 + $0x5c] sm:$0xf] %vm720, %v679
      %745 = vst.msk [vmem:[%s223 + $0x60] sm:$0xf] %vm720, %v680
      %746 = vst.msk [vmem:[%s223 + $0x64] sm:$0xf] %vm720, %v681
      %747 = vst.msk [vmem:[%s223 + $0x68] sm:$0xf] %vm720, %v682
      %748 = vst.msk [vmem:[%s223 + $0x6c] sm:$0xf] %vm720, %v683
      %749 = vst.msk [vmem:[%s223 + $0x70] sm:$0xf] %vm720, %v684
      %750 = vst.msk [vmem:[%s223 + $0x74] sm:$0xf] %vm720, %v685
      %751 = vst.msk [vmem:[%s223 + $0x78] sm:$0xf] %vm720, %v686
      %752 = vst.msk [vmem:[%s223 + $0x7c] sm:$0xf] %vm720, %v687
      %s753 = smul.u32 32, %s18
      %p754 = scmp.lt.s32.totalorder %s753, 63
      %s755 = scalar_select %p754, %s753, 63
      %p756 = scmp.lt.s32.totalorder %s19, 0
      %s757 = scalar_select %p756, %s19, 0
      %s758 = sadd.s32 %s757, %s755
      %s759 = smul.addr %s758, 4
      %s760 = scalar_lea.vmem %s3, %s759
      // Predicated region
      $region33: #{bottleneck_se_forward.6} parent=31 // pred_check
        %p761 = pneg %p124
      $region34: #{bottleneck_se_forward.6} parent=31 // pred_check_branch
        %763 = sbr.rel (%p761) target = $region36
      $region35: #{bottleneck_se_forward.6} parent=31 // pred_region
        %s764 = smul.u32 32, %s18
      $region36: #{bottleneck_se_forward.6} parent=31 // pred_fallthru
        _
    $region32: #{bottleneck_se_forward.6} parent=5 // pred_fallthru
      _
    %p765 = scmp.le.s32.totalorder 2, %s9
    // Predicated region
    $region37: #{bottleneck_se_forward.6} parent=5 // pred_check
      %p766 = pneg %p765
    $region38: #{bottleneck_se_forward.6} parent=5 // pred_check_branch
      %768 = sbr.rel (%p766) target = $region40
    $region39: #{bottleneck_se_forward.6} parent=5 // pred_region
      %s769 = ssub.s32 %s9, 2
      // Predicated region
      $region41: #{bottleneck_se_forward.6} parent=39 // pred_check
        %p770 = pneg %p130
      $region42: #{bottleneck_se_forward.6} parent=39 // pred_check_branch
        %772 = sbr.rel (%p770) target = $region44
      $region43: #{bottleneck_se_forward.6} parent=39 // pred_region
        %s773 = smul.u32 32, %s20
        %p774 = scmp.lt.s32.totalorder %s773, 63
        %s775 = scalar_select %p774, %s773, 63
        %p776 = scmp.lt.s32.totalorder %s21, 0
        %s777 = scalar_select %p776, %s21, 0
        %s778 = sadd.s32 %s777, %s775
        %s779 = smul.addr %s778, 4
        %s780 = scalar_lea.vmem %s3, %s779
      $region44: #{bottleneck_se_forward.6} parent=39 // pred_fallthru
        _
    $region40: #{bottleneck_se_forward.6} parent=5 // pred_fallthru
      _
  $region6: #{bottleneck_se_forward.6} parent=0 // loop_footer
    %s13 = sadd.s32 1, %s9
  $region7: #{bottleneck_se_forward.6} parent=0 // loop_footer_branch
    %8 = sbr.rel target = $region3
  $region8: #{bottleneck_se_forward.6} parent=0 // loop_exit
    _

// kernel: bottleneck_se_forward.8
$region0: #{bottleneck_se_forward.8}
  #allocation0 [shape = 'u32[]', space=smem, size = 0x4, offset = 0x4, fixed_abs, tag = 'smem constant byte address 0x4 - core index']
  #allocation1 [shape = 'u32[144,128]{1,0:T(1,128)}', space=vmem, size = 0x12000, scoped, tag = 'internal scratch']
  %s0 = inlined_call_operand.vmem [shape: bf16[2,8,8,8], index: 0, kind: input, shape index: {}]
  %s1 = inlined_call_operand.vmem [shape: bf16[8,32], index: 1, kind: input, shape index: {}]
  %s2 = inlined_call_operand.vmem [shape: f32[1,32], index: 2, kind: input, shape index: {}]
  %s3 = inlined_call_operand.vmem [shape: bf16[2,8,8,32], index: 3, kind: output, shape index: {0}]
  %s4 = inlined_call_operand.vmem [shape: f32[2,1,32], index: 4, kind: output, shape index: {1}]
  %5 = xla_tuple %s3, %s4
  %s6 = sld [smem:[#allocation0]]
  $region53: #{bottleneck_se_forward.8} parent=0
    _
  %s8 = ssub.s32 1, %s6
  %s9 = scalar_select 0, %s8, %s6
  loop: start=0, step=1, limit=4
  $region2: #{bottleneck_se_forward.8} parent=0 // loop_pre_header
    _
  $region3: #{bottleneck_se_forward.8} parent=0 // loop_header
    %s11 = sphi 0, %s15
    %p12 = scmp.ge.s32.totalorder %s11, 4
    %s21 = sphi 0, %s23
    %s24 = sphi 0, %s21
    %s25 = sphi 0, %s24
    %s41 = sphi 0, %s25
    %s45 = sphi 0, %s45
    %s47 = sphi 0, %s45
    %s48 = sphi 0, %s47
    %s62 = sphi 0, %s48
    %s66 = sphi 0, %s66
    %s68 = sphi 0, %s66
    %s69 = sphi 0, %s68
    %s83 = sphi 0, %s69
    %s89 = sphi 0, %s91
    %s92 = sphi 0, %s89
    %s93 = sphi 0, %s92
    %s109 = sphi 0, %s93
    %s115 = sphi 0, %s117
    %s118 = sphi 0, %s115
    %s119 = sphi 0, %s118
    %s135 = sphi 0, %s119
  $region4: #{bottleneck_se_forward.8} parent=0 // loop_header_branch
    %14 = sbr.rel (%p12) target = $region8
  $region5: #{bottleneck_se_forward.8} parent=0 // loop_body
    %s16 = ssub.s32 %s11, 1
    %s17 = ssub.s32 %s11, 2
    %s18 = sadd.s32 %s11, 1
    %s19 = ssub.s32 %s11, %s18
    %p20 = scmp.eq.s32.totalorder %s19, 0
    %s22 = sadd.s32 %s21, 1
    %s23 = scalar_select %p20, %s21, %s22
    %p26 = pneg %p20
    %p27 = scmp.eq.s32.totalorder %s11, 1
    %p28 = por %p26, %p27
    %p29 = scmp.ne.s32.totalorder %s21, %s24
    %p30 = scmp.eq.s32.totalorder %s11, 0
    %p31 = por %p29, %p30
    %p32 = scmp.ne.s32.totalorder %s21, %s24
    %p33 = scmp.eq.s32.totalorder %s16, 1
    %p34 = por %p32, %p33
    %p35 = scmp.ne.s32.totalorder %s24, %s25
    %p36 = scmp.eq.s32.totalorder %s16, 0
    %p37 = por %p35, %p36
    %p38 = scmp.ne.s32.totalorder %s24, %s25
    %p39 = scmp.eq.s32.totalorder %s17, 1
    %p40 = por %p38, %p39
    %p42 = scmp.ne.s32.totalorder %s25, %s41
    %p43 = scmp.eq.s32.totalorder %s17, 0
    %p44 = por %p42, %p43
    %s46 = sadd.s32 %s45, 1
    %p49 = scmp.eq.s32.totalorder %s11, 1
    %p50 = scmp.ne.s32.totalorder %s45, %s47
    %p51 = scmp.eq.s32.totalorder %s11, 0
    %p52 = por %p50, %p51
    %p53 = scmp.ne.s32.totalorder %s45, %s47
    %p54 = scmp.eq.s32.totalorder %s16, 1
    %p55 = por %p53, %p54
    %p56 = scmp.ne.s32.totalorder %s47, %s48
    %p57 = scmp.eq.s32.totalorder %s16, 0
    %p58 = por %p56, %p57
    %p59 = scmp.ne.s32.totalorder %s47, %s48
    %p60 = scmp.eq.s32.totalorder %s17, 1
    %p61 = por %p59, %p60
    %p63 = scmp.ne.s32.totalorder %s48, %s62
    %p64 = scmp.eq.s32.totalorder %s17, 0
    %p65 = por %p63, %p64
    %s67 = sadd.s32 %s66, 1
    %p70 = scmp.eq.s32.totalorder %s11, 1
    %p71 = scmp.ne.s32.totalorder %s66, %s68
    %p72 = scmp.eq.s32.totalorder %s11, 0
    %p73 = por %p71, %p72
    %p74 = scmp.ne.s32.totalorder %s66, %s68
    %p75 = scmp.eq.s32.totalorder %s16, 1
    %p76 = por %p74, %p75
    %p77 = scmp.ne.s32.totalorder %s68, %s69
    %p78 = scmp.eq.s32.totalorder %s16, 0
    %p79 = por %p77, %p78
    %p80 = scmp.ne.s32.totalorder %s68, %s69
    %p81 = scmp.eq.s32.totalorder %s17, 1
    %p82 = por %p80, %p81
    %p84 = scmp.ne.s32.totalorder %s69, %s83
    %p85 = scmp.eq.s32.totalorder %s17, 0
    %p86 = por %p84, %p85
    %s87 = ssub.s32 %s11, %s18
    %p88 = scmp.eq.s32.totalorder %s87, 0
    %s90 = sadd.s32 %s89, 1
    %s91 = scalar_select %p88, %s89, %s90
    %p94 = pneg %p88
    %p95 = scmp.eq.s32.totalorder %s11, 1
    %p96 = por %p94, %p95
    %p97 = scmp.ne.s32.totalorder %s89, %s92
    %p98 = scmp.eq.s32.totalorder %s11, 0
    %p99 = por %p97, %p98
    %p100 = scmp.ne.s32.totalorder %s89, %s92
    %p101 = scmp.eq.s32.totalorder %s16, 1
    %p102 = por %p100, %p101
    %p103 = scmp.ne.s32.totalorder %s92, %s93
    %p104 = scmp.eq.s32.totalorder %s16, 0
    %p105 = por %p103, %p104
    %p106 = scmp.ne.s32.totalorder %s92, %s93
    %p107 = scmp.eq.s32.totalorder %s17, 1
    %p108 = por %p106, %p107
    %p110 = scmp.ne.s32.totalorder %s93, %s109
    %p111 = scmp.eq.s32.totalorder %s17, 0
    %p112 = por %p110, %p111
    %s113 = ssub.s32 %s11, %s18
    %p114 = scmp.eq.s32.totalorder %s113, 0
    %s116 = sadd.s32 %s115, 1
    %s117 = scalar_select %p114, %s115, %s116
    %p120 = pneg %p114
    %p121 = scmp.eq.s32.totalorder %s11, 1
    %p122 = por %p120, %p121
    %p123 = scmp.ne.s32.totalorder %s115, %s118
    %p124 = scmp.eq.s32.totalorder %s11, 0
    %p125 = por %p123, %p124
    %p126 = scmp.ne.s32.totalorder %s115, %s118
    %p127 = scmp.eq.s32.totalorder %s16, 1
    %p128 = por %p126, %p127
    %p129 = scmp.ne.s32.totalorder %s118, %s119
    %p130 = scmp.eq.s32.totalorder %s16, 0
    %p131 = por %p129, %p130
    %p132 = scmp.ne.s32.totalorder %s118, %s119
    %p133 = scmp.eq.s32.totalorder %s17, 1
    %p134 = por %p132, %p133
    %p136 = scmp.ne.s32.totalorder %s119, %s135
    %p137 = scmp.eq.s32.totalorder %s17, 0
    %p138 = por %p136, %p137
    %p139 = scmp.le.s32.totalorder 1, %s11
    %p140 = scmp.lt.s32.totalorder %s11, 3
    %p141 = pnand %p139, %p140
    %p142 = pneg %p141
    // Predicated region
    $region9: #{bottleneck_se_forward.8} parent=5 // pred_check
      _
    $region10: #{bottleneck_se_forward.8} parent=5 // pred_check_branch
      %144 = sbr.rel (%p141) target = $region12
    $region11: #{bottleneck_se_forward.8} parent=5 // pred_region
      %s145 = ssub.s32 %s11, 1
      // Predicated region
      $region13: #{bottleneck_se_forward.8} parent=11 // pred_check
        %p146 = pneg %p58
      $region14: #{bottleneck_se_forward.8} parent=11 // pred_check_branch
        %148 = sbr.rel (%p146) target = $region16
      $region15: #{bottleneck_se_forward.8} parent=11 // pred_region
        _
      $region16: #{bottleneck_se_forward.8} parent=11 // pred_fallthru
        _
      // Predicated region
      $region17: #{bottleneck_se_forward.8} parent=11 // pred_check
        %p149 = pneg %p79
      $region18: #{bottleneck_se_forward.8} parent=11 // pred_check_branch
        %151 = sbr.rel (%p149) target = $region20
      $region19: #{bottleneck_se_forward.8} parent=11 // pred_region
        _
      $region20: #{bottleneck_se_forward.8} parent=11 // pred_fallthru
        _
    $region12: #{bottleneck_se_forward.8} parent=5 // pred_fallthru
      _
    %p152 = scmp.lt.s32.totalorder %s11, 2
    // Predicated region
    $region21: #{bottleneck_se_forward.8} parent=5 // pred_check
      %p153 = pneg %p152
    $region22: #{bottleneck_se_forward.8} parent=5 // pred_check_branch
      %155 = sbr.rel (%p153) target = $region24
    $region23: #{bottleneck_se_forward.8} parent=5 // pred_region
      // Predicated region
      $region25: #{bottleneck_se_forward.8} parent=23 // pred_check
        %p156 = pneg %p31
      $region26: #{bottleneck_se_forward.8} parent=23 // pred_check_branch
        %158 = sbr.rel (%p156) target = $region28
      $region27: #{bottleneck_se_forward.8} parent=23 // pred_region
        %p159 = scmp.lt.s32.totalorder %s11, 1
        %s160 = scalar_select %p159, %s11, 1
        %s161 = smul.addr %s160, 8
        %s162 = smul.addr %s161, 4
        %s163 = scalar_lea.vmem %s0, %s162
      $region28: #{bottleneck_se_forward.8} parent=23 // pred_fallthru
        _
    $region24: #{bottleneck_se_forward.8} parent=5 // pred_fallthru
      _
    %p164 = scmp.le.s32.totalorder 1, %s11
    %p165 = scmp.lt.s32.totalorder %s11, 3
    %p166 = pnand %p164, %p165
    %p167 = pneg %p166
    // Predicated region
    $region29: #{bottleneck_se_forward.8} parent=5 // pred_check
      _
    $region30: #{bottleneck_se_forward.8} parent=5 // pred_check_branch
      %169 = sbr.rel (%p166) target = $region32
    $region31: #{bottleneck_se_forward.8} parent=5 // pred_region
      %s170 = ssub.s32 %s11, 1
      %p171 = scmp.lt.s32.totalorder %s16, 1
      %s172 = scalar_select %p171, %s16, 1
      %s173 = smul.addr %s172, 8
      %s174 = smul.addr %s173, 4
      %s175 = scalar_lea.vmem %s0, %s174
      %p176 = pneg %p37
      %p177 = pneg %p34
      %p178 = pneg %p58
      %p179 = pneg %p55
      %p180 = pneg %p79
      %p181 = pneg %p76
      %p182 = pneg %p105
      %p183 = pneg %p102
      %p184 = scmp.lt.s32.totalorder %s16, 1
      %s185 = scalar_select %p184, %s16, 1
      %s186 = smul.addr %s185, 8
      %s187 = smul.addr %s186, 4
      %s188 = scalar_lea.vmem %s3, %s187
      %p189 = pneg %p131
      %p190 = pneg %p128
      %p191 = scmp.lt.s32.totalorder %s16, 1
      %s192 = scalar_select %p191, %s16, 1
      %s193 = scalar_lea.vmem %s4, %s192
      %p194 = scmp.lt.s32.totalorder %s16, 1
      %s195 = scalar_select %p194, %s16, 1
      %s196 = smul.addr %s195, 8
      %s197 = smul.addr %s196, 4
      %s198 = scalar_lea.vmem %s0, %s197
      %p199 = scmp.lt.s32.totalorder %s16, 1
      %s200 = scalar_select %p199, %s16, 1
      %s201 = smul.addr %s200, 8
      %s202 = smul.addr %s201, 4
      %s203 = scalar_lea.vmem %s3, %s202
      %p204 = scmp.lt.s32.totalorder %s16, 1
      %s205 = scalar_select %p204, %s16, 1
      %s206 = scalar_lea.vmem %s4, %s205
      %v208 = vld [vmem:[%s198] sm:$0xf]
      %v209 = vld [vmem:[%s198 + $0x4] sm:$0xf]
      %v210 = vld [vmem:[%s198 + $0x8] sm:$0xf]
      %v211 = vld [vmem:[%s198 + $0xc] sm:$0xf]
      %v212 = vld [vmem:[%s198 + $0x10] sm:$0xf]
      %v213 = vld [vmem:[%s198 + $0x14] sm:$0xf]
      %v214 = vld [vmem:[%s198 + $0x18] sm:$0xf]
      %v215 = vld [vmem:[%s198 + $0x1c] sm:$0xf]
      %v216 = vld [vmem:[%s1] sm:$0xf]
      %v217 = vld [vmem:[%s2] sm:$0x1]
      %v219 = vlaneseq
      %v220 = vshrl.u32 %v219, 7
      %v221 = vsub.s32 0, %v220
      %v222 = vrot.slane %v217, %v221
      %v232 = vunpack.c.l.b16 %v208
      %v233 = vunpack.c.l.b16 %v209
      %v234 = vunpack.c.l.b16 %v210
      %v235 = vunpack.c.l.b16 %v211
      %v236 = vunpack.c.l.b16 %v212
      %v237 = vunpack.c.l.b16 %v213
      %v238 = vunpack.c.l.b16 %v214
      %v239 = vunpack.c.l.b16 %v215
      %v240 = vpack.c.b16 %v233, %v232
      %v241 = vpack.c.b16 %v235, %v234
      %v242 = vpack.c.b16 %v237, %v236
      %v243 = vpack.c.b16 %v239, %v238
      %vm244 = vcmask 64512
      %v246 = vsel %vm244, %v240, 0
      %v249 = vsel %vm244, %v241, 0
      %v252 = vsel %vm244, %v242, 0
      %v255 = vsel %vm244, %v243, 0
      %vm257 = vcmask 1043456
      %v259 = vsel %vm257, %v216, 0
      %261 = vmatprep.subr.bf16.mxu0 0
      %262 = vmatpush1.bf16.msra.mxu0 0
      %263 = vmatprep.subr.bf16.mxu0 0
      %264 = vmatpush1.bf16.msra.mxu0 0
      %265 = vmatprep.subr.bf16.mxu0 0
      %266 = vmatpush1.bf16.msra.mxu0 0
      %267 = vmatprep.subr.bf16.mxu0 0
      %268 = vmatpush1.bf16.msra.mxu0 0
      %269 = vmatprep.subr.bf16.mxu0 0
      %270 = vmatpush1.bf16.msra.mxu0 0
      %271 = vmatprep.subr.bf16.mxu0 0
      %272 = vmatpush1.bf16.msra.mxu0 0
      %273 = vmatprep.subr.bf16.mxu0 0
      %274 = vmatpush1.bf16.msra.mxu0 0
      %275 = vmatprep.subr.bf16.mxu0 0
      %276 = vmatpush1.bf16.msra.mxu0 %v259
      %277 = vmatprep.subr.bf16.mxu0 0
      %278 = vmatpush2.bf16.msra.mxu0 0
      %279 = vmatprep.subr.bf16.mxu0 0
      %280 = vmatpush2.bf16.msra.mxu0 0
      %281 = vmatprep.subr.bf16.mxu0 0
      %282 = vmatpush2.bf16.msra.mxu0 0
      %283 = vmatprep.subr.bf16.mxu0 0
      %284 = vmatpush2.bf16.msra.mxu0 0
      %285 = vmatprep.subr.bf16.mxu0 0
      %286 = vmatpush2.bf16.msra.mxu0 0
      %287 = vmatprep.subr.bf16.mxu0 0
      %288 = vmatpush2.bf16.msra.mxu0 0
      %289 = vmatprep.subr.bf16.mxu0 0
      %290 = vmatpush2.bf16.msra.mxu0 0
      %291 = vmatprep.subr.bf16.mxu0 0
      %292 = vmatpush2.bf16.msra.mxu0 0
      %293 = vmatprep.mubr.bf16.mxu0 0
      %294 = vmatmul.mubr.bf16.gmra.mxu0 %v246
      %v295 = vpop.f32.mrf.mxu0
      %v296 = vadd.f32 %v222, %v295
      %v297 = vpop.f32.mrf.mxu0
      %v298 = vpop.f32.mrf.mxu0
      %v299 = vadd.f32 %v222, %v298
      %v300 = vpop.f32.mrf.mxu0
      %301 = vmatprep.mubr.bf16.mxu0 0
      %302 = vmatmul.mubr.bf16.gmra.mxu0 %v249
      %v303 = vpop.f32.mrf.mxu0
      %v304 = vadd.f32 %v222, %v303
      %v305 = vpop.f32.mrf.mxu0
      %v306 = vpop.f32.mrf.mxu0
      %v307 = vadd.f32 %v222, %v306
      %v308 = vpop.f32.mrf.mxu0
      %309 = vmatprep.mubr.bf16.mxu0 0
      %310 = vmatmul.mubr.bf16.gmra.mxu0 %v252
      %v311 = vpop.f32.mrf.mxu0
      %v312 = vadd.f32 %v222, %v311
      %v313 = vpop.f32.mrf.mxu0
      %v314 = vpop.f32.mrf.mxu0
      %v315 = vadd.f32 %v222, %v314
      %v316 = vpop.f32.mrf.mxu0
      %317 = vmatprep.mubr.bf16.mxu0 0
      %318 = vmatmul.mubr.bf16.gmra.mxu0 %v255
      %v319 = vpop.f32.mrf.mxu0
      %v320 = vadd.f32 %v222, %v319
      %v321 = vpop.f32.mrf.mxu0
      %v322 = vpop.f32.mrf.mxu0
      %v323 = vadd.f32 %v222, %v322
      %v324 = vpop.f32.mrf.mxu0
      %325 = vdwg.mxu0
      %v326 = vmax.f32 %v296, 0.0
      %v327 = vmax.f32 %v299, 0.0
      %v328 = vmax.f32 %v304, 0.0
      %v329 = vmax.f32 %v307, 0.0
      %v330 = vmax.f32 %v312, 0.0
      %v331 = vmax.f32 %v315, 0.0
      %v332 = vmax.f32 %v320, 0.0
      %v333 = vmax.f32 %v323, 0.0
      %v334 = vpack.c.bf16 %v326, %v326
      %v335 = vpack.c.bf16 %v327, %v327
      %v336 = vpack.c.bf16 %v328, %v328
      %v337 = vpack.c.bf16 %v329, %v329
      %v338 = vpack.c.bf16 %v330, %v330
      %v339 = vpack.c.bf16 %v331, %v331
      %v340 = vpack.c.bf16 %v332, %v332
      %v341 = vpack.c.bf16 %v333, %v333
      %vm342 = vcmask 257024
      %343 = vst.msk [vmem:[%s203] sm:$0xf] %vm342, %v334
      %344 = vst.msk [vmem:[%s203 + $0x4] sm:$0xf] %vm342, %v335
      %345 = vst.msk [vmem:[%s203 + $0x8] sm:$0xf] %vm342, %v336
      %346 = vst.msk [vmem:[%s203 + $0xc] sm:$0xf] %vm342, %v337
      %347 = vst.msk [vmem:[%s203 + $0x10] sm:$0xf] %vm342, %v338
      %348 = vst.msk [vmem:[%s203 + $0x14] sm:$0xf] %vm342, %v339
      %349 = vst.msk [vmem:[%s203 + $0x18] sm:$0xf] %vm342, %v340
      %350 = vst.msk [vmem:[%s203 + $0x1c] sm:$0xf] %vm342, %v341
      %vm351 = vcmask 261120
      %v352 = vsel %vm351, %v326, 0.0
      %v353 = vsel %vm351, %v327, 0.0
      %v354 = vadd.f32 %v352, %v353
      %v355 = vsel %vm351, %v328, 0.0
      %v356 = vadd.f32 %v354, %v355
      %v357 = vsel %vm351, %v329, 0.0
      %v358 = vadd.f32 %v356, %v357
      %v359 = vsel %vm351, %v330, 0.0
      %v360 = vadd.f32 %v358, %v359
      %v361 = vsel %vm351, %v331, 0.0
      %v362 = vadd.f32 %v360, %v361
      %v363 = vsel %vm351, %v332, 0.0
      %v364 = vadd.f32 %v362, %v363
      %v365 = vsel %vm351, %v333, 0.0
      %v366 = vadd.f32 %v364, %v365
      %v367 = vrot.slane %v366, 4
      %v368 = vadd.f32 %v366, %v367
      %v369 = vrot.slane %v368, 2
      %v370 = vadd.f32 %v368, %v369
      %v371 = vrot.slane %v370, 1
      %v372 = vadd.f32 %v370, %v371
      %vm373 = vcmask 253952
      %374 = vst.msk [vmem:[%s206] sm:$0x1] %vm373, %v372
      %p375 = scmp.lt.s32.totalorder %s16, 1
      %s376 = scalar_select %p375, %s16, 1
      %s377 = smul.addr %s376, 8
      %s378 = smul.addr %s377, 4
      %s379 = scalar_lea.vmem %s3, %s378
      %p380 = scmp.lt.s32.totalorder %s16, 1
      %s381 = scalar_select %p380, %s16, 1
      %s382 = scalar_lea.vmem %s4, %s381
      // Predicated region
      $region33: #{bottleneck_se_forward.8} parent=31 // pred_check
        %p383 = pneg %p102
      $region34: #{bottleneck_se_forward.8} parent=31 // pred_check_branch
        %385 = sbr.rel (%p383) target = $region36
      $region35: #{bottleneck_se_forward.8} parent=31 // pred_region
        _
      $region36: #{bottleneck_se_forward.8} parent=31 // pred_fallthru
        _
      // Predicated region
      $region37: #{bottleneck_se_forward.8} parent=31 // pred_check
        %p386 = pneg %p128
      $region38: #{bottleneck_se_forward.8} parent=31 // pred_check_branch
        %388 = sbr.rel (%p386) target = $region40
      $region39: #{bottleneck_se_forward.8} parent=31 // pred_region
        _
      $region40: #{bottleneck_se_forward.8} parent=31 // pred_fallthru
        _
    $region32: #{bottleneck_se_forward.8} parent=5 // pred_fallthru
      _
    %p389 = scmp.le.s32.totalorder 2, %s11
    // Predicated region
    $region41: #{bottleneck_se_forward.8} parent=5 // pred_check
      %p390 = pneg %p389
    $region42: #{bottleneck_se_forward.8} parent=5 // pred_check_branch
      %392 = sbr.rel (%p390) target = $region44
    $region43: #{bottleneck_se_forward.8} parent=5 // pred_region
      %s393 = ssub.s32 %s11, 2
      // Predicated region
      $region45: #{bottleneck_se_forward.8} parent=43 // pred_check
        %p394 = pneg %p108
      $region46: #{bottleneck_se_forward.8} parent=43 // pred_check_branch
        %396 = sbr.rel (%p394) target = $region48
      $region47: #{bottleneck_se_forward.8} parent=43 // pred_region
        %p397 = scmp.lt.s32.totalorder %s17, 1
        %s398 = scalar_select %p397, %s17, 1
        %s399 = smul.addr %s398, 8
        %s400 = smul.addr %s399, 4
        %s401 = scalar_lea.vmem %s3, %s400
      $region48: #{bottleneck_se_forward.8} parent=43 // pred_fallthru
        _
      // Predicated region
      $region49: #{bottleneck_se_forward.8} parent=43 // pred_check
        %p402 = pneg %p134
      $region50: #{bottleneck_se_forward.8} parent=43 // pred_check_branch
        %404 = sbr.rel (%p402) target = $region52
      $region51: #{bottleneck_se_forward.8} parent=43 // pred_region
        %p405 = scmp.lt.s32.totalorder %s17, 1
        %s406 = scalar_select %p405, %s17, 1
        %s407 = scalar_lea.vmem %s4, %s406
      $region52: #{bottleneck_se_forward.8} parent=43 // pred_fallthru
        _
    $region44: #{bottleneck_se_forward.8} parent=5 // pred_fallthru
      _
  $region6: #{bottleneck_se_forward.8} parent=0 // loop_footer
    %s15 = sadd.s32 1, %s11
  $region7: #{bottleneck_se_forward.8} parent=0 // loop_footer_branch
    %10 = sbr.rel target = $region3
  $region8: #{bottleneck_se_forward.8} parent=0 // loop_exit
    _

// kernel: bottleneck_se_forward.10
$region0: #{bottleneck_se_forward.10}
  #allocation0 [shape = 'u32[]', space=smem, size = 0x4, offset = 0x4, fixed_abs, tag = 'smem constant byte address 0x4 - core index']
  #allocation1 [shape = 'u32[144,128]{1,0:T(1,128)}', space=vmem, size = 0x12000, scoped, tag = 'internal scratch']
  %s0 = inlined_call_operand.vmem [shape: f32[2,32], index: 0, kind: input, shape index: {}]
  %s1 = inlined_call_operand.vmem [shape: f32[32,8], index: 1, kind: input, shape index: {}]
  %s2 = inlined_call_operand.vmem [shape: f32[1,8], index: 2, kind: input, shape index: {}]
  %s3 = inlined_call_operand.vmem [shape: f32[8,32], index: 3, kind: input, shape index: {}]
  %s4 = inlined_call_operand.vmem [shape: f32[1,32], index: 4, kind: input, shape index: {}]
  %s5 = inlined_call_operand.vmem [shape: f32[2,32], index: 5, kind: output, shape index: {}]
  %s6 = sld [smem:[#allocation0]]
  $region30: #{bottleneck_se_forward.10} parent=0
    _
  %s8 = ssub.s32 1, %s6
  %s9 = scalar_select 0, %s8, %s6
  // Predicated region
  $region2: #{bottleneck_se_forward.10} parent=0 // pred_check
    _
  $region3: #{bottleneck_se_forward.10} parent=0 // pred_check_branch
    %11 = sbr.rel (0) target = $region5
  $region4: #{bottleneck_se_forward.10} parent=0 // pred_region
    _
  $region5: #{bottleneck_se_forward.10} parent=0 // pred_fallthru
    _
  // Predicated region
  $region6: #{bottleneck_se_forward.10} parent=0 // pred_check
    _
  $region7: #{bottleneck_se_forward.10} parent=0 // pred_check_branch
    %13 = sbr.rel (0) target = $region9
  $region8: #{bottleneck_se_forward.10} parent=0 // pred_region
    _
  $region9: #{bottleneck_se_forward.10} parent=0 // pred_fallthru
    _
  // Predicated region
  $region10: #{bottleneck_se_forward.10} parent=0 // pred_check
    _
  $region11: #{bottleneck_se_forward.10} parent=0 // pred_check_branch
    %15 = sbr.rel (0) target = $region13
  $region12: #{bottleneck_se_forward.10} parent=0 // pred_region
    _
  $region13: #{bottleneck_se_forward.10} parent=0 // pred_fallthru
    _
  // Predicated region
  $region14: #{bottleneck_se_forward.10} parent=0 // pred_check
    _
  $region15: #{bottleneck_se_forward.10} parent=0 // pred_check_branch
    %17 = sbr.rel (0) target = $region17
  $region16: #{bottleneck_se_forward.10} parent=0 // pred_region
    _
  $region17: #{bottleneck_se_forward.10} parent=0 // pred_fallthru
    _
  // Predicated region
  $region18: #{bottleneck_se_forward.10} parent=0 // pred_check
    _
  $region19: #{bottleneck_se_forward.10} parent=0 // pred_check_branch
    %19 = sbr.rel (0) target = $region21
  $region20: #{bottleneck_se_forward.10} parent=0 // pred_region
    _
  $region21: #{bottleneck_se_forward.10} parent=0 // pred_fallthru
    _
  %v20 = vld [vmem:[%s0] sm:$0x3]
  %v21 = vld [vmem:[%s1] sm:$0xff]
  %v22 = vld [vmem:[%s1 + $0x8] sm:$0xff]
  %v23 = vld [vmem:[%s1 + $0x10] sm:$0xff]
  %v24 = vld [vmem:[%s1 + $0x18] sm:$0xff]
  %v25 = vld [vmem:[%s2] sm:$0x1]
  %v27 = vlaneseq
  %v28 = vshrl.u32 %v27, 7
  %v29 = vsub.s32 0, %v28
  %v30 = vrot.slane %v25, %v29
  %vm32 = vcmask 261120
  %v34 = vsel %vm32, %v20, 0
  %36 = vmatprep.subr.mxu0 0.0
  %37 = vmatpush1.msra.mxu0 0.0
  %38 = vmatprep.subr.mxu0 0.0
  %39 = vmatpush1.msra.mxu0 0.0
  %40 = vmatprep.subr.mxu0 0.0
  %41 = vmatpush1.msra.mxu0 0.0
  %42 = vmatprep.subr.mxu0 0.0
  %43 = vmatpush1.msra.mxu0 0.0
  %44 = vmatprep.subr.mxu0 0.0
  %45 = vmatpush1.msra.mxu0 0.0
  %46 = vmatprep.subr.mxu0 0.0
  %47 = vmatpush1.msra.mxu0 0.0
  %48 = vmatprep.subr.mxu0 0.0
  %49 = vmatpush1.msra.mxu0 0.0
  %50 = vmatprep.subr.mxu0 0.0
  %51 = vmatpush1.msra.mxu0 0.0
  %52 = vmatprep.subr.mxu0 0.0
  %53 = vmatpush1.msra.mxu0 0.0
  %54 = vmatprep.subr.mxu0 0.0
  %55 = vmatpush1.msra.mxu0 0.0
  %56 = vmatprep.subr.mxu0 0.0
  %57 = vmatpush1.msra.mxu0 0.0
  %58 = vmatprep.subr.mxu0 0.0
  %59 = vmatpush1.msra.mxu0 0.0
  %60 = vmatprep.subr.mxu0 0.0
  %61 = vmatpush1.msra.mxu0 %v24
  %62 = vmatprep.subr.mxu0 0.0
  %63 = vmatpush1.msra.mxu0 %v23
  %64 = vmatprep.subr.mxu0 0.0
  %65 = vmatpush1.msra.mxu0 %v22
  %66 = vmatprep.subr.mxu0 0.0
  %67 = vmatpush1.msra.mxu0 %v21
  %68 = vmatprep.subr.mxu0 0.0
  %69 = vmatpush2.msra.mxu0 0.0
  %70 = vmatprep.subr.mxu0 0.0
  %71 = vmatpush2.msra.mxu0 0.0
  %72 = vmatprep.subr.mxu0 0.0
  %73 = vmatpush2.msra.mxu0 0.0
  %74 = vmatprep.subr.mxu0 0.0
  %75 = vmatpush2.msra.mxu0 0.0
  %76 = vmatprep.subr.mxu0 0.0
  %77 = vmatpush2.msra.mxu0 0.0
  %78 = vmatprep.subr.mxu0 0.0
  %79 = vmatpush2.msra.mxu0 0.0
  %80 = vmatprep.subr.mxu0 0.0
  %81 = vmatpush2.msra.mxu0 0.0
  %82 = vmatprep.subr.mxu0 0.0
  %83 = vmatpush2.msra.mxu0 0.0
  %84 = vmatprep.subr.mxu0 0.0
  %85 = vmatpush2.msra.mxu0 0.0
  %86 = vmatprep.subr.mxu0 0.0
  %87 = vmatpush2.msra.mxu0 0.0
  %88 = vmatprep.subr.mxu0 0.0
  %89 = vmatpush2.msra.mxu0 0.0
  %90 = vmatprep.subr.mxu0 0.0
  %91 = vmatpush2.msra.mxu0 0.0
  %92 = vmatprep.subr.mxu0 0.0
  %93 = vmatpush2.msra.mxu0 0.0
  %94 = vmatprep.subr.mxu0 0.0
  %95 = vmatpush2.msra.mxu0 0.0
  %96 = vmatprep.subr.mxu0 0.0
  %97 = vmatpush2.msra.mxu0 0.0
  %98 = vmatprep.subr.mxu0 0.0
  %99 = vmatpush2.msra.mxu0 0.0
  %100 = vmatprep.mubr.f32.mxu0 0.0
  %101 = vmatmul.mubr.f32.gmra.mxu0 %v34
  %v102 = vpop.f32.mrf.mxu0
  %v103 = vadd.f32 %v30, %v102
  %v104 = vpop.f32.mrf.mxu0
  %105 = vdwg.mxu0
  %v106 = vmax.f32 %v103, 0.0
  %v107 = vld [vmem:[%s3] sm:$0xff]
  %v108 = vld [vmem:[%s4] sm:$0x1]
  %v110 = vlaneseq
  %v111 = vshrl.u32 %v110, 7
  %v112 = vsub.s32 0, %v111
  %v113 = vrot.slane %v108, %v112
  %vm115 = vcmask 64512
  %v117 = vsel %vm115, %v106, 0
  %119 = vmatprep.subr.mxu0 0.0
  %120 = vmatpush1.msra.mxu0 0.0
  %121 = vmatprep.subr.mxu0 0.0
  %122 = vmatpush1.msra.mxu0 0.0
  %123 = vmatprep.subr.mxu0 0.0
  %124 = vmatpush1.msra.mxu0 0.0
  %125 = vmatprep.subr.mxu0 0.0
  %126 = vmatpush1.msra.mxu0 0.0
  %127 = vmatprep.subr.mxu0 0.0
  %128 = vmatpush1.msra.mxu0 0.0
  %129 = vmatprep.subr.mxu0 0.0
  %130 = vmatpush1.msra.mxu0 0.0
  %131 = vmatprep.subr.mxu0 0.0
  %132 = vmatpush1.msra.mxu0 0.0
  %133 = vmatprep.subr.mxu0 0.0
  %134 = vmatpush1.msra.mxu0 0.0
  %135 = vmatprep.subr.mxu0 0.0
  %136 = vmatpush1.msra.mxu0 0.0
  %137 = vmatprep.subr.mxu0 0.0
  %138 = vmatpush1.msra.mxu0 0.0
  %139 = vmatprep.subr.mxu0 0.0
  %140 = vmatpush1.msra.mxu0 0.0
  %141 = vmatprep.subr.mxu0 0.0
  %142 = vmatpush1.msra.mxu0 0.0
  %143 = vmatprep.subr.mxu0 0.0
  %144 = vmatpush1.msra.mxu0 0.0
  %145 = vmatprep.subr.mxu0 0.0
  %146 = vmatpush1.msra.mxu0 0.0
  %147 = vmatprep.subr.mxu0 0.0
  %148 = vmatpush1.msra.mxu0 0.0
  %149 = vmatprep.subr.mxu0 0.0
  %150 = vmatpush1.msra.mxu0 %v107
  %151 = vmatprep.subr.mxu0 0.0
  %152 = vmatpush2.msra.mxu0 0.0
  %153 = vmatprep.subr.mxu0 0.0
  %154 = vmatpush2.msra.mxu0 0.0
  %155 = vmatprep.subr.mxu0 0.0
  %156 = vmatpush2.msra.mxu0 0.0
  %157 = vmatprep.subr.mxu0 0.0
  %158 = vmatpush2.msra.mxu0 0.0
  %159 = vmatprep.subr.mxu0 0.0
  %160 = vmatpush2.msra.mxu0 0.0
  %161 = vmatprep.subr.mxu0 0.0
  %162 = vmatpush2.msra.mxu0 0.0
  %163 = vmatprep.subr.mxu0 0.0
  %164 = vmatpush2.msra.mxu0 0.0
  %165 = vmatprep.subr.mxu0 0.0
  %166 = vmatpush2.msra.mxu0 0.0
  %167 = vmatprep.subr.mxu0 0.0
  %168 = vmatpush2.msra.mxu0 0.0
  %169 = vmatprep.subr.mxu0 0.0
  %170 = vmatpush2.msra.mxu0 0.0
  %171 = vmatprep.subr.mxu0 0.0
  %172 = vmatpush2.msra.mxu0 0.0
  %173 = vmatprep.subr.mxu0 0.0
  %174 = vmatpush2.msra.mxu0 0.0
  %175 = vmatprep.subr.mxu0 0.0
  %176 = vmatpush2.msra.mxu0 0.0
  %177 = vmatprep.subr.mxu0 0.0
  %178 = vmatpush2.msra.mxu0 0.0
  %179 = vmatprep.subr.mxu0 0.0
  %180 = vmatpush2.msra.mxu0 0.0
  %181 = vmatprep.subr.mxu0 0.0
  %182 = vmatpush2.msra.mxu0 0.0
  %183 = vmatprep.mubr.f32.mxu0 0.0
  %184 = vmatmul.mubr.f32.gmra.mxu0 %v117
  %v185 = vpop.f32.mrf.mxu0
  %v186 = vadd.f32 %v113, %v185
  %v187 = vpop.f32.mrf.mxu0
  %188 = vdwg.mxu0
  %v189 = vsub.f32 0.0, %v186
  %v190 = vmul.f32 %v189, 1.442695
  %v191 = vpow.pop %v190
  %v192 = vadd.f32 %v191, 1.0
  %v193 = vrcp.pop %v192
  %v194 = vmul.f32 1.0, %v193
  %vm195 = vcmask 254976
  %196 = vst.msk [vmem:[%s5] sm:$0x3] %vm195, %v194
  // Predicated region
  $region22: #{bottleneck_se_forward.10} parent=0 // pred_check
    _
  $region23: #{bottleneck_se_forward.10} parent=0 // pred_check_branch
    %198 = sbr.rel (0) target = $region25
  $region24: #{bottleneck_se_forward.10} parent=0 // pred_region
    _
  $region25: #{bottleneck_se_forward.10} parent=0 // pred_fallthru
    _
  // Predicated region
  $region26: #{bottleneck_se_forward.10} parent=0 // pred_check
    _
  $region27: #{bottleneck_se_forward.10} parent=0 // pred_check_branch
    %200 = sbr.rel (0) target = $region29
  $region28: #{bottleneck_se_forward.10} parent=0 // pred_region
    _
  $region29: #{bottleneck_se_forward.10} parent=0 // pred_fallthru
    _

// kernel: bottleneck_se_forward.11
$region0: #{bottleneck_se_forward.11}
  #allocation0 [shape = 'u32[]', space=smem, size = 0x4, offset = 0x4, fixed_abs, tag = 'smem constant byte address 0x4 - core index']
  #allocation1 [shape = 'u32[144,128]{1,0:T(1,128)}', space=vmem, size = 0x12000, scoped, tag = 'internal scratch']
  %s0 = inlined_call_operand.vmem [shape: bf16[2,8,256], index: 0, kind: input, shape index: {}]
  %s1 = inlined_call_operand.vmem [shape: bf16[2,8,256], index: 1, kind: input, shape index: {}]
  %s2 = inlined_call_operand.vmem [shape: f32[2,1,256], index: 2, kind: input, shape index: {}]
  %s3 = inlined_call_operand.vmem [shape: bf16[2,8,256], index: 3, kind: output, shape index: {}]
  %s4 = sld [smem:[#allocation0]]
  $region45: #{bottleneck_se_forward.11} parent=0
    _
  %s6 = ssub.s32 1, %s4
  %s7 = scalar_select 0, %s6, %s4
  loop: start=0, step=1, limit=4
  $region2: #{bottleneck_se_forward.11} parent=0 // loop_pre_header
    _
  $region3: #{bottleneck_se_forward.11} parent=0 // loop_header
    %s9 = sphi 0, %s13
    %p10 = scmp.ge.s32.totalorder %s9, 4
    %s16 = sphi 0, %s28
    %s17 = sphi 0, %s24
    %s18 = sphi 0, %s16
    %s19 = sphi 0, %s17
    %s20 = sphi 0, %s18
    %s21 = sphi 0, %s19
    %s33 = sphi 0, %s35
    %s36 = sphi 0, %s33
    %s37 = sphi 0, %s36
    %s53 = sphi 0, %s37
    %s61 = sphi 0, %s63
    %s64 = sphi 0, %s61
    %s65 = sphi 0, %s64
    %s81 = sphi 0, %s65
    %s87 = sphi 0, %s89
    %s90 = sphi 0, %s87
    %s91 = sphi 0, %s90
    %s107 = sphi 0, %s91
    %s115 = sphi 0, %s117
    %s118 = sphi 0, %s115
    %s119 = sphi 0, %s118
    %s135 = sphi 0, %s119
  $region4: #{bottleneck_se_forward.11} parent=0 // loop_header_branch
    %12 = sbr.rel (%p10) target = $region8
  $region5: #{bottleneck_se_forward.11} parent=0 // loop_body
    %s14 = ssub.s32 %s9, 1
    %s15 = ssub.s32 %s9, 2
    %s22 = sadd.s32 1, %s17
    %p23 = scmp.ge.s32.totalorder %s22, 1
    %s24 = scalar_select %p23, 0, %s22
    %s25 = sadd.s32 1, %s16
    %s26 = scalar_select %p23, %s25, %s16
    %p27 = scmp.ge.s32.totalorder %s26, 2
    %s28 = scalar_select %p27, 0, %s26
    %s29 = ssub.s32 %s16, %s28
    %s30 = ssub.s32 %s17, %s24
    %s31 = sor.u32 %s29, %s30
    %p32 = scmp.eq.s32.totalorder %s31, 0
    %s34 = sadd.s32 %s33, 1
    %s35 = scalar_select %p32, %s33, %s34
    %p38 = pneg %p32
    %p39 = scmp.eq.s32.totalorder %s9, 1
    %p40 = por %p38, %p39
    %p41 = scmp.ne.s32.totalorder %s33, %s36
    %p42 = scmp.eq.s32.totalorder %s9, 0
    %p43 = por %p41, %p42
    %p44 = scmp.ne.s32.totalorder %s33, %s36
    %p45 = scmp.eq.s32.totalorder %s14, 1
    %p46 = por %p44, %p45
    %p47 = scmp.ne.s32.totalorder %s36, %s37
    %p48 = scmp.eq.s32.totalorder %s14, 0
    %p49 = por %p47, %p48
    %p50 = scmp.ne.s32.totalorder %s36, %s37
    %p51 = scmp.eq.s32.totalorder %s15, 1
    %p52 = por %p50, %p51
    %p54 = scmp.ne.s32.totalorder %s37, %s53
    %p55 = scmp.eq.s32.totalorder %s15, 0
    %p56 = por %p54, %p55
    %s57 = ssub.s32 %s16, %s28
    %s58 = ssub.s32 %s17, %s24
    %s59 = sor.u32 %s57, %s58
    %p60 = scmp.eq.s32.totalorder %s59, 0
    %s62 = sadd.s32 %s61, 1
    %s63 = scalar_select %p60, %s61, %s62
    %p66 = pneg %p60
    %p67 = scmp.eq.s32.totalorder %s9, 1
    %p68 = por %p66, %p67
    %p69 = scmp.ne.s32.totalorder %s61, %s64
    %p70 = scmp.eq.s32.totalorder %s9, 0
    %p71 = por %p69, %p70
    %p72 = scmp.ne.s32.totalorder %s61, %s64
    %p73 = scmp.eq.s32.totalorder %s14, 1
    %p74 = por %p72, %p73
    %p75 = scmp.ne.s32.totalorder %s64, %s65
    %p76 = scmp.eq.s32.totalorder %s14, 0
    %p77 = por %p75, %p76
    %p78 = scmp.ne.s32.totalorder %s64, %s65
    %p79 = scmp.eq.s32.totalorder %s15, 1
    %p80 = por %p78, %p79
    %p82 = scmp.ne.s32.totalorder %s65, %s81
    %p83 = scmp.eq.s32.totalorder %s15, 0
    %p84 = por %p82, %p83
    %s85 = ssub.s32 %s16, %s28
    %p86 = scmp.eq.s32.totalorder %s85, 0
    %s88 = sadd.s32 %s87, 1
    %s89 = scalar_select %p86, %s87, %s88
    %p92 = pneg %p86
    %p93 = scmp.eq.s32.totalorder %s9, 1
    %p94 = por %p92, %p93
    %p95 = scmp.ne.s32.totalorder %s87, %s90
    %p96 = scmp.eq.s32.totalorder %s9, 0
    %p97 = por %p95, %p96
    %p98 = scmp.ne.s32.totalorder %s87, %s90
    %p99 = scmp.eq.s32.totalorder %s14, 1
    %p100 = por %p98, %p99
    %p101 = scmp.ne.s32.totalorder %s90, %s91
    %p102 = scmp.eq.s32.totalorder %s14, 0
    %p103 = por %p101, %p102
    %p104 = scmp.ne.s32.totalorder %s90, %s91
    %p105 = scmp.eq.s32.totalorder %s15, 1
    %p106 = por %p104, %p105
    %p108 = scmp.ne.s32.totalorder %s91, %s107
    %p109 = scmp.eq.s32.totalorder %s15, 0
    %p110 = por %p108, %p109
    %s111 = ssub.s32 %s16, %s28
    %s112 = ssub.s32 %s17, %s24
    %s113 = sor.u32 %s111, %s112
    %p114 = scmp.eq.s32.totalorder %s113, 0
    %s116 = sadd.s32 %s115, 1
    %s117 = scalar_select %p114, %s115, %s116
    %p120 = pneg %p114
    %p121 = scmp.eq.s32.totalorder %s9, 1
    %p122 = por %p120, %p121
    %p123 = scmp.ne.s32.totalorder %s115, %s118
    %p124 = scmp.eq.s32.totalorder %s9, 0
    %p125 = por %p123, %p124
    %p126 = scmp.ne.s32.totalorder %s115, %s118
    %p127 = scmp.eq.s32.totalorder %s14, 1
    %p128 = por %p126, %p127
    %p129 = scmp.ne.s32.totalorder %s118, %s119
    %p130 = scmp.eq.s32.totalorder %s14, 0
    %p131 = por %p129, %p130
    %p132 = scmp.ne.s32.totalorder %s118, %s119
    %p133 = scmp.eq.s32.totalorder %s15, 1
    %p134 = por %p132, %p133
    %p136 = scmp.ne.s32.totalorder %s119, %s135
    %p137 = scmp.eq.s32.totalorder %s15, 0
    %p138 = por %p136, %p137
    %p139 = scmp.le.s32.totalorder 1, %s9
    %p140 = scmp.lt.s32.totalorder %s9, 3
    %p141 = pnand %p139, %p140
    %p142 = pneg %p141
    // Predicated region
    $region9: #{bottleneck_se_forward.11} parent=5 // pred_check
      _
    $region10: #{bottleneck_se_forward.11} parent=5 // pred_check_branch
      %144 = sbr.rel (%p141) target = $region12
    $region11: #{bottleneck_se_forward.11} parent=5 // pred_region
      %s145 = ssub.s32 %s9, 1
    $region12: #{bottleneck_se_forward.11} parent=5 // pred_fallthru
      _
    %p146 = scmp.lt.s32.totalorder %s9, 2
    // Predicated region
    $region13: #{bottleneck_se_forward.11} parent=5 // pred_check
      %p147 = pneg %p146
    $region14: #{bottleneck_se_forward.11} parent=5 // pred_check_branch
      %149 = sbr.rel (%p147) target = $region16
    $region15: #{bottleneck_se_forward.11} parent=5 // pred_region
      // Predicated region
      $region17: #{bottleneck_se_forward.11} parent=15 // pred_check
        %p150 = pneg %p43
      $region18: #{bottleneck_se_forward.11} parent=15 // pred_check_branch
        %152 = sbr.rel (%p150) target = $region20
      $region19: #{bottleneck_se_forward.11} parent=15 // pred_region
        %p153 = scmp.lt.s32.totalorder %s16, 1
        %s154 = scalar_select %p153, %s16, 1
        %p155 = scmp.lt.s32.totalorder %s17, 0
        %s156 = scalar_select %p155, %s17, 0
        %s157 = smul.addr %s156, 2
        %s158 = smul.addr %s154, 2
        %s159 = sadd.s32 %s157, %s158
        %s160 = smul.addr %s159, 4
        %s161 = scalar_lea.vmem %s0, %s160
      $region20: #{bottleneck_se_forward.11} parent=15 // pred_fallthru
        _
      // Predicated region
      $region21: #{bottleneck_se_forward.11} parent=15 // pred_check
        %p162 = pneg %p71
      $region22: #{bottleneck_se_forward.11} parent=15 // pred_check_branch
        %164 = sbr.rel (%p162) target = $region24
      $region23: #{bottleneck_se_forward.11} parent=15 // pred_region
        %p165 = scmp.lt.s32.totalorder %s16, 1
        %s166 = scalar_select %p165, %s16, 1
        %p167 = scmp.lt.s32.totalorder %s17, 0
        %s168 = scalar_select %p167, %s17, 0
        %s169 = smul.addr %s168, 2
        %s170 = smul.addr %s166, 2
        %s171 = sadd.s32 %s169, %s170
        %s172 = smul.addr %s171, 4
        %s173 = scalar_lea.vmem %s1, %s172
      $region24: #{bottleneck_se_forward.11} parent=15 // pred_fallthru
        _
      // Predicated region
      $region25: #{bottleneck_se_forward.11} parent=15 // pred_check
        %p174 = pneg %p97
      $region26: #{bottleneck_se_forward.11} parent=15 // pred_check_branch
        %176 = sbr.rel (%p174) target = $region28
      $region27: #{bottleneck_se_forward.11} parent=15 // pred_region
        %p177 = scmp.lt.s32.totalorder %s16, 1
        %s178 = scalar_select %p177, %s16, 1
        %s179 = smul.addr %s178, 2
        %s180 = scalar_lea.vmem %s2, %s179
      $region28: #{bottleneck_se_forward.11} parent=15 // pred_fallthru
        _
    $region16: #{bottleneck_se_forward.11} parent=5 // pred_fallthru
      _
    %p181 = scmp.le.s32.totalorder 1, %s9
    %p182 = scmp.lt.s32.totalorder %s9, 3
    %p183 = pnand %p181, %p182
    %p184 = pneg %p183
    // Predicated region
    $region29: #{bottleneck_se_forward.11} parent=5 // pred_check
      _
    $region30: #{bottleneck_se_forward.11} parent=5 // pred_check_branch
      %186 = sbr.rel (%p183) target = $region32
    $region31: #{bottleneck_se_forward.11} parent=5 // pred_region
      %s187 = ssub.s32 %s9, 1
      %p188 = scmp.lt.s32.totalorder %s18, 1
      %s189 = scalar_select %p188, %s18, 1
      %p190 = scmp.lt.s32.totalorder %s19, 0
      %s191 = scalar_select %p190, %s19, 0
      %s192 = smul.addr %s191, 2
      %s193 = smul.addr %s189, 2
      %s194 = sadd.s32 %s192, %s193
      %s195 = smul.addr %s194, 4
      %s196 = scalar_lea.vmem %s0, %s195
      %p197 = pneg %p49
      %p198 = pneg %p46
      %p199 = scmp.lt.s32.totalorder %s18, 1
      %s200 = scalar_select %p199, %s18, 1
      %p201 = scmp.lt.s32.totalorder %s19, 0
      %s202 = scalar_select %p201, %s19, 0
      %s203 = smul.addr %s202, 2
      %s204 = smul.addr %s200, 2
      %s205 = sadd.s32 %s203, %s204
      %s206 = smul.addr %s205, 4
      %s207 = scalar_lea.vmem %s1, %s206
      %p208 = pneg %p77
      %p209 = pneg %p74
      %p210 = scmp.lt.s32.totalorder %s18, 1
      %s211 = scalar_select %p210, %s18, 1
      %s212 = smul.addr %s211, 2
      %s213 = scalar_lea.vmem %s2, %s212
      %p214 = pneg %p103
      %p215 = pneg %p100
      %p216 = pneg %p131
      %p217 = pneg %p128
      %p218 = scmp.lt.s32.totalorder %s18, 1
      %s219 = scalar_select %p218, %s18, 1
      %p220 = scmp.lt.s32.totalorder %s19, 0
      %s221 = scalar_select %p220, %s19, 0
      %s222 = smul.addr %s221, 2
      %s223 = smul.addr %s219, 2
      %s224 = sadd.s32 %s222, %s223
      %s225 = smul.addr %s224, 4
      %s226 = scalar_lea.vmem %s3, %s225
      %p227 = scmp.lt.s32.totalorder %s18, 1
      %s228 = scalar_select %p227, %s18, 1
      %p229 = scmp.lt.s32.totalorder %s19, 0
      %s230 = scalar_select %p229, %s19, 0
      %s231 = smul.addr %s230, 2
      %s232 = smul.addr %s228, 2
      %s233 = sadd.s32 %s231, %s232
      %s234 = smul.addr %s233, 4
      %s235 = scalar_lea.vmem %s0, %s234
      %p236 = scmp.lt.s32.totalorder %s18, 1
      %s237 = scalar_select %p236, %s18, 1
      %p238 = scmp.lt.s32.totalorder %s19, 0
      %s239 = scalar_select %p238, %s19, 0
      %s240 = smul.addr %s239, 2
      %s241 = smul.addr %s237, 2
      %s242 = sadd.s32 %s240, %s241
      %s243 = smul.addr %s242, 4
      %s244 = scalar_lea.vmem %s1, %s243
      %p245 = scmp.lt.s32.totalorder %s18, 1
      %s246 = scalar_select %p245, %s18, 1
      %s247 = smul.addr %s246, 2
      %s248 = scalar_lea.vmem %s2, %s247
      %p249 = scmp.lt.s32.totalorder %s18, 1
      %s250 = scalar_select %p249, %s18, 1
      %p251 = scmp.lt.s32.totalorder %s19, 0
      %s252 = scalar_select %p251, %s19, 0
      %s253 = smul.addr %s252, 2
      %s254 = smul.addr %s250, 2
      %s255 = sadd.s32 %s253, %s254
      %s256 = smul.addr %s255, 4
      %s257 = scalar_lea.vmem %s3, %s256
      %v258 = vld [vmem:[%s235] sm:$0xff]
      %v259 = vunpack.c.l.bf16 %v258
      %v260 = vunpack.c.h.bf16 %v258
      %v261 = vld [vmem:[%s248] sm:$0x3]
      %v263 = vlaneseq
      %v264 = vshrl.u32 %v263, 7
      %v265 = vsub.s32 0, %v264
      %v266 = vrot.slane %v261, %v265
      %v267 = vlaneseq
      %v268 = vshrl.u32 %v267, 7
      %v269 = vsub.s32 1, %v268
      %v270 = vrot.slane %v261, %v269
      %v273 = vmul.f32 %v259, %v266
      %v274 = vmul.f32 %v260, %v270
      %v275 = vld [vmem:[%s244] sm:$0xff]
      %v276 = vunpack.c.l.bf16 %v275
      %v277 = vunpack.c.h.bf16 %v275
      %v278 = vadd.f32 %v273, %v276
      %v279 = vadd.f32 %v274, %v277
      %v280 = vmax.f32 %v278, 0.0
      %v281 = vmax.f32 %v279, 0.0
      %v282 = vpack.c.bf16 %v280, %v280
      %v283 = vpack.c.bf16 %v281, %v281
      %v286 = vunpack.c.l.b16 %v282
      %v287 = vunpack.c.l.b16 %v283
      %v288 = vpack.c.b16 %v287, %v286
      %290 = vst [vmem:[%s257] sm:$0xff] %v288
      %p291 = scmp.lt.s32.totalorder %s18, 1
      %s292 = scalar_select %p291, %s18, 1
      %p293 = scmp.lt.s32.totalorder %s19, 0
      %s294 = scalar_select %p293, %s19, 0
      %s295 = smul.addr %s294, 2
      %s296 = smul.addr %s292, 2
      %s297 = sadd.s32 %s295, %s296
      %s298 = smul.addr %s297, 4
      %s299 = scalar_lea.vmem %s3, %s298
      // Predicated region
      $region33: #{bottleneck_se_forward.11} parent=31 // pred_check
        %p300 = pneg %p128
      $region34: #{bottleneck_se_forward.11} parent=31 // pred_check_branch
        %302 = sbr.rel (%p300) target = $region36
      $region35: #{bottleneck_se_forward.11} parent=31 // pred_region
        _
      $region36: #{bottleneck_se_forward.11} parent=31 // pred_fallthru
        _
    $region32: #{bottleneck_se_forward.11} parent=5 // pred_fallthru
      _
    %p303 = scmp.le.s32.totalorder 2, %s9
    // Predicated region
    $region37: #{bottleneck_se_forward.11} parent=5 // pred_check
      %p304 = pneg %p303
    $region38: #{bottleneck_se_forward.11} parent=5 // pred_check_branch
      %306 = sbr.rel (%p304) target = $region40
    $region39: #{bottleneck_se_forward.11} parent=5 // pred_region
      %s307 = ssub.s32 %s9, 2
      // Predicated region
      $region41: #{bottleneck_se_forward.11} parent=39 // pred_check
        %p308 = pneg %p134
      $region42: #{bottleneck_se_forward.11} parent=39 // pred_check_branch
        %310 = sbr.rel (%p308) target = $region44
      $region43: #{bottleneck_se_forward.11} parent=39 // pred_region
        %p311 = scmp.lt.s32.totalorder %s20, 1
        %s312 = scalar_select %p311, %s20, 1
        %p313 = scmp.lt.s32.totalorder %s21, 0
        %s314 = scalar_select %p313, %s21, 0
        %s315 = smul.addr %s314, 2
        %s316 = smul.addr %s312, 2
        %s317 = sadd.s32 %s315, %s316
        %s318 = smul.addr %s317, 4
        %s319 = scalar_lea.vmem %s3, %s318
      $region44: #{bottleneck_se_forward.11} parent=39 // pred_fallthru
        _
    $region40: #{bottleneck_se_forward.11} parent=5 // pred_fallthru
      _
  $region6: #{bottleneck_se_forward.11} parent=0 // loop_footer
    %s13 = sadd.s32 1, %s9
  $region7: #{bottleneck_se_forward.11} parent=0 // loop_footer_branch
    %8 = sbr.rel target = $region3
  $region8: #{bottleneck_se_forward.11} parent=0 // loop_exit
    _

// kernel: bottleneck_se_forward.7
$region0: #{bottleneck_se_forward.7}
  #allocation0 [shape = 'u32[]', space=smem, size = 0x4, offset = 0x4, fixed_abs, tag = 'smem constant byte address 0x4 - core index']
  #allocation1 [shape = 'u32[144,128]{1,0:T(1,128)}', space=vmem, size = 0x12000, scoped, tag = 'internal scratch']
  %s0 = inlined_call_operand.vmem [shape: bf16[2,2,2,9,9,8], index: 0, kind: input, shape index: {}]
  %s1 = inlined_call_operand.vmem [shape: bf16[9,8,8], index: 1, kind: input, shape index: {}]
  %s2 = inlined_call_operand.vmem [shape: f32[1,8], index: 2, kind: input, shape index: {}]
  %s3 = inlined_call_operand.vmem [shape: bf16[2,8,8,8], index: 3, kind: output, shape index: {}]
  %s4 = sld [smem:[#allocation0]]
  $region45: #{bottleneck_se_forward.7} parent=0
    _
  %s6 = ssub.s32 1, %s4
  %s7 = scalar_select 0, %s6, %s4
  loop: start=0, step=1, limit=4
  $region2: #{bottleneck_se_forward.7} parent=0 // loop_pre_header
    _
  $region3: #{bottleneck_se_forward.7} parent=0 // loop_header
    %s9 = sphi 0, %s13
    %p10 = scmp.ge.s32.totalorder %s9, 4
    %s19 = sphi 0, %s21
    %s22 = sphi 0, %s19
    %s23 = sphi 0, %s22
    %s39 = sphi 0, %s23
    %s43 = sphi 0, %s43
    %s45 = sphi 0, %s43
    %s46 = sphi 0, %s45
    %s60 = sphi 0, %s46
    %s64 = sphi 0, %s64
    %s66 = sphi 0, %s64
    %s67 = sphi 0, %s66
    %s81 = sphi 0, %s67
    %s87 = sphi 0, %s89
    %s90 = sphi 0, %s87
    %s91 = sphi 0, %s90
    %s107 = sphi 0, %s91
  $region4: #{bottleneck_se_forward.7} parent=0 // loop_header_branch
    %12 = sbr.rel (%p10) target = $region8
  $region5: #{bottleneck_se_forward.7} parent=0 // loop_body
    %s14 = ssub.s32 %s9, 1
    %s15 = ssub.s32 %s9, 2
    %s16 = sadd.s32 %s9, 1
    %s17 = ssub.s32 %s9, %s16
    %p18 = scmp.eq.s32.totalorder %s17, 0
    %s20 = sadd.s32 %s19, 1
    %s21 = scalar_select %p18, %s19, %s20
    %p24 = pneg %p18
    %p25 = scmp.eq.s32.totalorder %s9, 1
    %p26 = por %p24, %p25
    %p27 = scmp.ne.s32.totalorder %s19, %s22
    %p28 = scmp.eq.s32.totalorder %s9, 0
    %p29 = por %p27, %p28
    %p30 = scmp.ne.s32.totalorder %s19, %s22
    %p31 = scmp.eq.s32.totalorder %s14, 1
    %p32 = por %p30, %p31
    %p33 = scmp.ne.s32.totalorder %s22, %s23
    %p34 = scmp.eq.s32.totalorder %s14, 0
    %p35 = por %p33, %p34
    %p36 = scmp.ne.s32.totalorder %s22, %s23
    %p37 = scmp.eq.s32.totalorder %s15, 1
    %p38 = por %p36, %p37
    %p40 = scmp.ne.s32.totalorder %s23, %s39
    %p41 = scmp.eq.s32.totalorder %s15, 0
    %p42 = por %p40, %p41
    %s44 = sadd.s32 %s43, 1
    %p47 = scmp.eq.s32.totalorder %s9, 1
    %p48 = scmp.ne.s32.totalorder %s43, %s45
    %p49 = scmp.eq.s32.totalorder %s9, 0
    %p50 = por %p48, %p49
    %p51 = scmp.ne.s32.totalorder %s43, %s45
    %p52 = scmp.eq.s32.totalorder %s14, 1
    %p53 = por %p51, %p52
    %p54 = scmp.ne.s32.totalorder %s45, %s46
    %p55 = scmp.eq.s32.totalorder %s14, 0
    %p56 = por %p54, %p55
    %p57 = scmp.ne.s32.totalorder %s45, %s46
    %p58 = scmp.eq.s32.totalorder %s15, 1
    %p59 = por %p57, %p58
    %p61 = scmp.ne.s32.totalorder %s46, %s60
    %p62 = scmp.eq.s32.totalorder %s15, 0
    %p63 = por %p61, %p62
    %s65 = sadd.s32 %s64, 1
    %p68 = scmp.eq.s32.totalorder %s9, 1
    %p69 = scmp.ne.s32.totalorder %s64, %s66
    %p70 = scmp.eq.s32.totalorder %s9, 0
    %p71 = por %p69, %p70
    %p72 = scmp.ne.s32.totalorder %s64, %s66
    %p73 = scmp.eq.s32.totalorder %s14, 1
    %p74 = por %p72, %p73
    %p75 = scmp.ne.s32.totalorder %s66, %s67
    %p76 = scmp.eq.s32.totalorder %s14, 0
    %p77 = por %p75, %p76
    %p78 = scmp.ne.s32.totalorder %s66, %s67
    %p79 = scmp.eq.s32.totalorder %s15, 1
    %p80 = por %p78, %p79
    %p82 = scmp.ne.s32.totalorder %s67, %s81
    %p83 = scmp.eq.s32.totalorder %s15, 0
    %p84 = por %p82, %p83
    %s85 = ssub.s32 %s9, %s16
    %p86 = scmp.eq.s32.totalorder %s85, 0
    %s88 = sadd.s32 %s87, 1
    %s89 = scalar_select %p86, %s87, %s88
    %p92 = pneg %p86
    %p93 = scmp.eq.s32.totalorder %s9, 1
    %p94 = por %p92, %p93
    %p95 = scmp.ne.s32.totalorder %s87, %s90
    %p96 = scmp.eq.s32.totalorder %s9, 0
    %p97 = por %p95, %p96
    %p98 = scmp.ne.s32.totalorder %s87, %s90
    %p99 = scmp.eq.s32.totalorder %s14, 1
    %p100 = por %p98, %p99
    %p101 = scmp.ne.s32.totalorder %s90, %s91
    %p102 = scmp.eq.s32.totalorder %s14, 0
    %p103 = por %p101, %p102
    %p104 = scmp.ne.s32.totalorder %s90, %s91
    %p105 = scmp.eq.s32.totalorder %s15, 1
    %p106 = por %p104, %p105
    %p108 = scmp.ne.s32.totalorder %s91, %s107
    %p109 = scmp.eq.s32.totalorder %s15, 0
    %p110 = por %p108, %p109
    %p111 = scmp.le.s32.totalorder 1, %s9
    %p112 = scmp.lt.s32.totalorder %s9, 3
    %p113 = pnand %p111, %p112
    %p114 = pneg %p113
    // Predicated region
    $region9: #{bottleneck_se_forward.7} parent=5 // pred_check
      _
    $region10: #{bottleneck_se_forward.7} parent=5 // pred_check_branch
      %116 = sbr.rel (%p113) target = $region12
    $region11: #{bottleneck_se_forward.7} parent=5 // pred_region
      %s117 = ssub.s32 %s9, 1
      // Predicated region
      $region13: #{bottleneck_se_forward.7} parent=11 // pred_check
        %p118 = pneg %p56
      $region14: #{bottleneck_se_forward.7} parent=11 // pred_check_branch
        %120 = sbr.rel (%p118) target = $region16
      $region15: #{bottleneck_se_forward.7} parent=11 // pred_region
        _
      $region16: #{bottleneck_se_forward.7} parent=11 // pred_fallthru
        _
      // Predicated region
      $region17: #{bottleneck_se_forward.7} parent=11 // pred_check
        %p121 = pneg %p77
      $region18: #{bottleneck_se_forward.7} parent=11 // pred_check_branch
        %123 = sbr.rel (%p121) target = $region20
      $region19: #{bottleneck_se_forward.7} parent=11 // pred_region
        _
      $region20: #{bottleneck_se_forward.7} parent=11 // pred_fallthru
        _
    $region12: #{bottleneck_se_forward.7} parent=5 // pred_fallthru
      _
    %p124 = scmp.lt.s32.totalorder %s9, 2
    // Predicated region
    $region21: #{bottleneck_se_forward.7} parent=5 // pred_check
      %p125 = pneg %p124
    $region22: #{bottleneck_se_forward.7} parent=5 // pred_check_branch
      %127 = sbr.rel (%p125) target = $region24
    $region23: #{bottleneck_se_forward.7} parent=5 // pred_region
      // Predicated region
      $region25: #{bottleneck_se_forward.7} parent=23 // pred_check
        %p128 = pneg %p29
      $region26: #{bottleneck_se_forward.7} parent=23 // pred_check_branch
        %130 = sbr.rel (%p128) target = $region28
      $region27: #{bottleneck_se_forward.7} parent=23 // pred_region
        %p131 = scmp.lt.s32.totalorder %s9, 1
        %s132 = scalar_select %p131, %s9, 1
        %s133 = smul.addr %s132, 72
        %s134 = smul.addr %s133, 4
        %s135 = scalar_lea.vmem %s0, %s134
      $region28: #{bottleneck_se_forward.7} parent=23 // pred_fallthru
        _
    $region24: #{bottleneck_se_forward.7} parent=5 // pred_fallthru
      _
    %p136 = scmp.le.s32.totalorder 1, %s9
    %p137 = scmp.lt.s32.totalorder %s9, 3
    %p138 = pnand %p136, %p137
    %p139 = pneg %p138
    // Predicated region
    $region29: #{bottleneck_se_forward.7} parent=5 // pred_check
      _
    $region30: #{bottleneck_se_forward.7} parent=5 // pred_check_branch
      %141 = sbr.rel (%p138) target = $region32
    $region31: #{bottleneck_se_forward.7} parent=5 // pred_region
      %s142 = ssub.s32 %s9, 1
      %p143 = scmp.lt.s32.totalorder %s14, 1
      %s144 = scalar_select %p143, %s14, 1
      %s145 = smul.addr %s144, 72
      %s146 = smul.addr %s145, 4
      %s147 = scalar_lea.vmem %s0, %s146
      %p148 = pneg %p35
      %p149 = pneg %p32
      %p150 = pneg %p56
      %p151 = pneg %p53
      %p152 = pneg %p77
      %p153 = pneg %p74
      %p154 = pneg %p103
      %p155 = pneg %p100
      %p156 = scmp.lt.s32.totalorder %s14, 1
      %s157 = scalar_select %p156, %s14, 1
      %s158 = smul.addr %s157, 8
      %s159 = smul.addr %s158, 4
      %s160 = scalar_lea.vmem %s3, %s159
      %p161 = scmp.lt.s32.totalorder %s14, 1
      %s162 = scalar_select %p161, %s14, 1
      %s163 = smul.addr %s162, 72
      %s164 = smul.addr %s163, 4
      %s165 = scalar_lea.vmem %s0, %s164
      %p166 = scmp.lt.s32.totalorder %s14, 1
      %s167 = scalar_select %p166, %s14, 1
      %s168 = smul.addr %s167, 8
      %s169 = smul.addr %s168, 4
      %s170 = scalar_lea.vmem %s3, %s169
      %v172 = vld [vmem:[%s165] sm:$0xf]
      %v173 = vld [vmem:[%s165 + $0x8] sm:$0xf]
      %v174 = vld [vmem:[%s165 + $0x10] sm:$0xf]
      %v175 = vld [vmem:[%s165 + $0x18] sm:$0xf]
      %v176 = vld [vmem:[%s165 + $0x20] sm:$0xf]
      %v177 = vld [vmem:[%s165 + $0x28] sm:$0xf]
      %v178 = vld [vmem:[%s165 + $0x30] sm:$0xf]
      %v179 = vld [vmem:[%s165 + $0x38] sm:$0xf]
      %v180 = vld [vmem:[%s1] sm:$0xf]
      %s181 = scalar_lea.vmem %s165, 72
      %v182 = vld [vmem:[%s181] sm:$0xf]
      %v183 = vld [vmem:[%s181 + $0x8] sm:$0xf]
      %v184 = vld [vmem:[%s181 + $0x10] sm:$0xf]
      %v185 = vld [vmem:[%s181 + $0x18] sm:$0xf]
      %v186 = vld [vmem:[%s181 + $0x20] sm:$0xf]
      %v187 = vld [vmem:[%s181 + $0x28] sm:$0xf]
      %v188 = vld [vmem:[%s181 + $0x30] sm:$0xf]
      %v189 = vld [vmem:[%s181 + $0x38] sm:$0xf]
      %s190 = scalar_lea.vmem %s1, 4
      %v191 = vld [vmem:[%s190] sm:$0xf]
      %v200 = vunpack.c.l.b16 %v182
      %v201 = vunpack.c.l.b16 %v183
      %v202 = vunpack.c.l.b16 %v184
      %v203 = vunpack.c.l.b16 %v185
      %v204 = vunpack.c.l.b16 %v186
      %v205 = vunpack.c.l.b16 %v187
      %v206 = vunpack.c.l.b16 %v188
      %v207 = vunpack.c.l.b16 %v189
      %v208 = vpack.c.b16 %v201, %v200
      %v209 = vpack.c.b16 %v203, %v202
      %v210 = vpack.c.b16 %v205, %v204
      %v211 = vpack.c.b16 %v207, %v206
      %vm212 = vcmask 64512
      %v214 = vsel %vm212, %v208, 0
      %v217 = vsel %vm212, %v209, 0
      %v220 = vsel %vm212, %v210, 0
      %v223 = vsel %vm212, %v211, 0
      %vm225 = vcmask 1043456
      %v227 = vsel %vm225, %v191, 0
      %229 = vmatprep.subr.bf16.mxu0 0
      %230 = vmatpush1.bf16.msra.mxu0 0
      %231 = vmatprep.subr.bf16.mxu0 0
      %232 = vmatpush1.bf16.msra.mxu0 0
      %233 = vmatprep.subr.bf16.mxu0 0
      %234 = vmatpush1.bf16.msra.mxu0 0
      %235 = vmatprep.subr.bf16.mxu0 0
      %236 = vmatpush1.bf16.msra.mxu0 0
      %237 = vmatprep.subr.bf16.mxu0 0
      %238 = vmatpush1.bf16.msra.mxu0 0
      %239 = vmatprep.subr.bf16.mxu0 0
      %240 = vmatpush1.bf16.msra.mxu0 0
      %241 = vmatprep.subr.bf16.mxu0 0
      %242 = vmatpush1.bf16.msra.mxu0 0
      %243 = vmatprep.subr.bf16.mxu0 0
      %244 = vmatpush1.bf16.msra.mxu0 %v227
      %245 = vmatprep.subr.bf16.mxu0 0
      %246 = vmatpush2.bf16.msra.mxu0 0
      %247 = vmatprep.subr.bf16.mxu0 0
      %248 = vmatpush2.bf16.msra.mxu0 0
      %249 = vmatprep.subr.bf16.mxu0 0
      %250 = vmatpush2.bf16.msra.mxu0 0
      %251 = vmatprep.subr.bf16.mxu0 0
      %252 = vmatpush2.bf16.msra.mxu0 0
      %253 = vmatprep.subr.bf16.mxu0 0
      %254 = vmatpush2.bf16.msra.mxu0 0
      %255 = vmatprep.subr.bf16.mxu0 0
      %256 = vmatpush2.bf16.msra.mxu0 0
      %257 = vmatprep.subr.bf16.mxu0 0
      %258 = vmatpush2.bf16.msra.mxu0 0
      %259 = vmatprep.subr.bf16.mxu0 0
      %260 = vmatpush2.bf16.msra.mxu0 0
      %261 = vmatprep.mubr.bf16.mxu0 0
      %262 = vmatmul.mubr.bf16.gmra.mxu0 %v214
      %v263 = vpop.f32.mrf.mxu0
      %v264 = vadd.f32 0.0, %v263
      %v265 = vpop.f32.mrf.mxu0
      %v266 = vpop.f32.mrf.mxu0
      %v267 = vadd.f32 0.0, %v266
      %v268 = vpop.f32.mrf.mxu0
      %269 = vmatprep.mubr.bf16.mxu0 0
      %270 = vmatmul.mubr.bf16.gmra.mxu0 %v217
      %v271 = vpop.f32.mrf.mxu0
      %v272 = vadd.f32 0.0, %v271
      %v273 = vpop.f32.mrf.mxu0
      %v274 = vpop.f32.mrf.mxu0
      %v275 = vadd.f32 0.0, %v274
      %v276 = vpop.f32.mrf.mxu0
      %277 = vmatprep.mubr.bf16.mxu0 0
      %278 = vmatmul.mubr.bf16.gmra.mxu0 %v220
      %v279 = vpop.f32.mrf.mxu0
      %v280 = vadd.f32 0.0, %v279
      %v281 = vpop.f32.mrf.mxu0
      %v282 = vpop.f32.mrf.mxu0
      %v283 = vadd.f32 0.0, %v282
      %v284 = vpop.f32.mrf.mxu0
      %285 = vmatprep.mubr.bf16.mxu0 0
      %286 = vmatmul.mubr.bf16.gmra.mxu0 %v223
      %v287 = vpop.f32.mrf.mxu0
      %v288 = vadd.f32 0.0, %v287
      %v289 = vpop.f32.mrf.mxu0
      %v290 = vpop.f32.mrf.mxu0
      %v291 = vadd.f32 0.0, %v290
      %v292 = vpop.f32.mrf.mxu0
      %293 = vdwg.mxu0
      %v302 = vunpack.c.l.b16 %v172
      %v303 = vunpack.c.l.b16 %v173
      %v304 = vunpack.c.l.b16 %v174
      %v305 = vunpack.c.l.b16 %v175
      %v306 = vunpack.c.l.b16 %v176
      %v307 = vunpack.c.l.b16 %v177
      %v308 = vunpack.c.l.b16 %v178
      %v309 = vunpack.c.l.b16 %v179
      %v310 = vpack.c.b16 %v303, %v302
      %v311 = vpack.c.b16 %v305, %v304
      %v312 = vpack.c.b16 %v307, %v306
      %v313 = vpack.c.b16 %v309, %v308
      %v315 = vsel %vm212, %v310, 0
      %v318 = vsel %vm212, %v311, 0
      %v321 = vsel %vm212, %v312, 0
      %v324 = vsel %vm212, %v313, 0
      %v327 = vsel %vm225, %v180, 0
      %329 = vmatprep.subr.bf16.mxu0 0
      %330 = vmatpush1.bf16.msra.mxu0 0
      %331 = vmatprep.subr.bf16.mxu0 0
      %332 = vmatpush1.bf16.msra.mxu0 0
      %333 = vmatprep.subr.bf16.mxu0 0
      %334 = vmatpush1.bf16.msra.mxu0 0
      %335 = vmatprep.subr.bf16.mxu0 0
      %336 = vmatpush1.bf16.msra.mxu0 0
      %337 = vmatprep.subr.bf16.mxu0 0
      %338 = vmatpush1.bf16.msra.mxu0 0
      %339 = vmatprep.subr.bf16.mxu0 0
      %340 = vmatpush1.bf16.msra.mxu0 0
      %341 = vmatprep.subr.bf16.mxu0 0
      %342 = vmatpush1.bf16.msra.mxu0 0
      %343 = vmatprep.subr.bf16.mxu0 0
      %344 = vmatpush1.bf16.msra.mxu0 %v327
      %345 = vmatprep.subr.bf16.mxu0 0
      %346 = vmatpush2.bf16.msra.mxu0 0
      %347 = vmatprep.subr.bf16.mxu0 0
      %348 = vmatpush2.bf16.msra.mxu0 0
      %349 = vmatprep.subr.bf16.mxu0 0
      %350 = vmatpush2.bf16.msra.mxu0 0
      %351 = vmatprep.subr.bf16.mxu0 0
      %352 = vmatpush2.bf16.msra.mxu0 0
      %353 = vmatprep.subr.bf16.mxu0 0
      %354 = vmatpush2.bf16.msra.mxu0 0
      %355 = vmatprep.subr.bf16.mxu0 0
      %356 = vmatpush2.bf16.msra.mxu0 0
      %357 = vmatprep.subr.bf16.mxu0 0
      %358 = vmatpush2.bf16.msra.mxu0 0
      %359 = vmatprep.subr.bf16.mxu0 0
      %360 = vmatpush2.bf16.msra.mxu0 0
      %361 = vmatprep.mubr.bf16.mxu0 0
      %362 = vmatmul.mubr.bf16.gmra.mxu0 %v315
      %v363 = vpop.f32.mrf.mxu0
      %v364 = vadd.f32 %v264, %v363
      %v365 = vpop.f32.mrf.mxu0
      %v366 = vpop.f32.mrf.mxu0
      %v367 = vadd.f32 %v267, %v366
      %v368 = vpop.f32.mrf.mxu0
      %369 = vmatprep.mubr.bf16.mxu0 0
      %370 = vmatmul.mubr.bf16.gmra.mxu0 %v318
      %v371 = vpop.f32.mrf.mxu0
      %v372 = vadd.f32 %v272, %v371
      %v373 = vpop.f32.mrf.mxu0
      %v374 = vpop.f32.mrf.mxu0
      %v375 = vadd.f32 %v275, %v374
      %v376 = vpop.f32.mrf.mxu0
      %377 = vmatprep.mubr.bf16.mxu0 0
      %378 = vmatmul.mubr.bf16.gmra.mxu0 %v321
      %v379 = vpop.f32.mrf.mxu0
      %v380 = vadd.f32 %v280, %v379
      %v381 = vpop.f32.mrf.mxu0
      %v382 = vpop.f32.mrf.mxu0
      %v383 = vadd.f32 %v283, %v382
      %v384 = vpop.f32.mrf.mxu0
      %385 = vmatprep.mubr.bf16.mxu0 0
      %386 = vmatmul.mubr.bf16.gmra.mxu0 %v324
      %v387 = vpop.f32.mrf.mxu0
      %v388 = vadd.f32 %v288, %v387
      %v389 = vpop.f32.mrf.mxu0
      %v390 = vpop.f32.mrf.mxu0
      %v391 = vadd.f32 %v291, %v390
      %v392 = vpop.f32.mrf.mxu0
      %393 = vdwg.mxu0
      %v394 = vld [vmem:[%s165] sm:$0xf]
      %v395 = vld [vmem:[%s165 + $0x4] sm:$0x1]
      %v396 = vld [vmem:[%s165 + $0x8] sm:$0xf]
      %v397 = vld [vmem:[%s165 + $0xc] sm:$0x1]
      %v398 = vld [vmem:[%s165 + $0x10] sm:$0xf]
      %v399 = vld [vmem:[%s165 + $0x14] sm:$0x1]
      %v400 = vld [vmem:[%s165 + $0x18] sm:$0xf]
      %v401 = vld [vmem:[%s165 + $0x1c] sm:$0x1]
      %v402 = vld [vmem:[%s165 + $0x20] sm:$0xf]
      %v403 = vld [vmem:[%s165 + $0x24] sm:$0x1]
      %v404 = vld [vmem:[%s165 + $0x28] sm:$0xf]
      %v405 = vld [vmem:[%s165 + $0x2c] sm:$0x1]
      %v406 = vld [vmem:[%s165 + $0x30] sm:$0xf]
      %v407 = vld [vmem:[%s165 + $0x34] sm:$0x1]
      %v408 = vld [vmem:[%s165 + $0x38] sm:$0xf]
      %v409 = vld [vmem:[%s165 + $0x3c] sm:$0x1]
      %vm410 = vsmask.f32 3328
      %vm411 = vsmask.f32 7440
      %vm412 = vmor %vm410, %vm411
      %v414 = vshrl.u32 %v394, 16
      %v416 = vrot.slane %v414, 4
      %v417 = vshll.u32 %v394, 16
      %v419 = vrot.slane %v417, 5
      %v420 = vor.u32 %v416, %v419
      %v421 = vrot.slane %v420, 4
      %v423 = vshll.u32 %v395, 16
      %v425 = vrot.slane %v423, 5
      %v426 = vsel %vm412, %v421, %v425
      %v428 = vshrl.u32 %v396, 16
      %v430 = vrot.slane %v428, 4
      %v431 = vshll.u32 %v396, 16
      %v433 = vrot.slane %v431, 5
      %v434 = vor.u32 %v430, %v433
      %v435 = vrot.slane %v434, 4
      %v437 = vshll.u32 %v397, 16
      %v439 = vrot.slane %v437, 5
      %v440 = vsel %vm412, %v435, %v439
      %v442 = vshrl.u32 %v398, 16
      %v444 = vrot.slane %v442, 4
      %v445 = vshll.u32 %v398, 16
      %v447 = vrot.slane %v445, 5
      %v448 = vor.u32 %v444, %v447
      %v449 = vrot.slane %v448, 4
      %v451 = vshll.u32 %v399, 16
      %v453 = vrot.slane %v451, 5
      %v454 = vsel %vm412, %v449, %v453
      %v456 = vshrl.u32 %v400, 16
      %v458 = vrot.slane %v456, 4
      %v459 = vshll.u32 %v400, 16
      %v461 = vrot.slane %v459, 5
      %v462 = vor.u32 %v458, %v461
      %v463 = vrot.slane %v462, 4
      %v465 = vshll.u32 %v401, 16
      %v467 = vrot.slane %v465, 5
      %v468 = vsel %vm412, %v463, %v467
      %v470 = vshrl.u32 %v402, 16
      %v472 = vrot.slane %v470, 4
      %v473 = vshll.u32 %v402, 16
      %v475 = vrot.slane %v473, 5
      %v476 = vor.u32 %v472, %v475
      %v477 = vrot.slane %v476, 4
      %v479 = vshll.u32 %v403, 16
      %v481 = vrot.slane %v479, 5
      %v482 = vsel %vm412, %v477, %v481
      %v484 = vshrl.u32 %v404, 16
      %v486 = vrot.slane %v484, 4
      %v487 = vshll.u32 %v404, 16
      %v489 = vrot.slane %v487, 5
      %v490 = vor.u32 %v486, %v489
      %v491 = vrot.slane %v490, 4
      %v493 = vshll.u32 %v405, 16
      %v495 = vrot.slane %v493, 5
      %v496 = vsel %vm412, %v491, %v495
      %v498 = vshrl.u32 %v406, 16
      %v500 = vrot.slane %v498, 4
      %v501 = vshll.u32 %v406, 16
      %v503 = vrot.slane %v501, 5
      %v504 = vor.u32 %v500, %v503
      %v505 = vrot.slane %v504, 4
      %v507 = vshll.u32 %v407, 16
      %v509 = vrot.slane %v507, 5
      %v510 = vsel %vm412, %v505, %v509
      %v512 = vshrl.u32 %v408, 16
      %v514 = vrot.slane %v512, 4
      %v515 = vshll.u32 %v408, 16
      %v517 = vrot.slane %v515, 5
      %v518 = vor.u32 %v514, %v517
      %v519 = vrot.slane %v518, 4
      %v521 = vshll.u32 %v409, 16
      %v523 = vrot.slane %v521, 5
      %v524 = vsel %vm412, %v519, %v523
      %s525 = scalar_lea.vmem %s1, 8
      %v526 = vld [vmem:[%s525] sm:$0xf]
      %v527 = vunpack.c.l.b16 %v426
      %v528 = vunpack.c.l.b16 %v440
      %v529 = vunpack.c.l.b16 %v454
      %v530 = vunpack.c.l.b16 %v468
      %v531 = vunpack.c.l.b16 %v482
      %v532 = vunpack.c.l.b16 %v496
      %v533 = vunpack.c.l.b16 %v510
      %v534 = vunpack.c.l.b16 %v524
      %v535 = vpack.c.b16 %v528, %v527
      %v536 = vpack.c.b16 %v530, %v529
      %v537 = vpack.c.b16 %v532, %v531
      %v538 = vpack.c.b16 %v534, %v533
      %v540 = vsel %vm212, %v535, 0
      %v543 = vsel %vm212, %v536, 0
      %v546 = vsel %vm212, %v537, 0
      %v549 = vsel %vm212, %v538, 0
      %v552 = vsel %vm225, %v526, 0
      %554 = vmatprep.subr.bf16.mxu0 0
      %555 = vmatpush1.bf16.msra.mxu0 0
      %556 = vmatprep.subr.bf16.mxu0 0
      %557 = vmatpush1.bf16.msra.mxu0 0
      %558 = vmatprep.subr.bf16.mxu0 0
      %559 = vmatpush1.bf16.msra.mxu0 0
      %560 = vmatprep.subr.bf16.mxu0 0
      %561 = vmatpush1.bf16.msra.mxu0 0
      %562 = vmatprep.subr.bf16.mxu0 0
      %563 = vmatpush1.bf16.msra.mxu0 0
      %564 = vmatprep.subr.bf16.mxu0 0
      %565 = vmatpush1.bf16.msra.mxu0 0
      %566 = vmatprep.subr.bf16.mxu0 0
      %567 = vmatpush1.bf16.msra.mxu0 0
      %568 = vmatprep.subr.bf16.mxu0 0
      %569 = vmatpush1.bf16.msra.mxu0 %v552
      %570 = vmatprep.subr.bf16.mxu0 0
      %571 = vmatpush2.bf16.msra.mxu0 0
      %572 = vmatprep.subr.bf16.mxu0 0
      %573 = vmatpush2.bf16.msra.mxu0 0
      %574 = vmatprep.subr.bf16.mxu0 0
      %575 = vmatpush2.bf16.msra.mxu0 0
      %576 = vmatprep.subr.bf16.mxu0 0
      %577 = vmatpush2.bf16.msra.mxu0 0
      %578 = vmatprep.subr.bf16.mxu0 0
      %579 = vmatpush2.bf16.msra.mxu0 0
      %580 = vmatprep.subr.bf16.mxu0 0
      %581 = vmatpush2.bf16.msra.mxu0 0
      %582 = vmatprep.subr.bf16.mxu0 0
      %583 = vmatpush2.bf16.msra.mxu0 0
      %584 = vmatprep.subr.bf16.mxu0 0
      %585 = vmatpush2.bf16.msra.mxu0 0
      %586 = vmatprep.mubr.bf16.mxu0 0
      %587 = vmatmul.mubr.bf16.gmra.mxu0 %v540
      %v588 = vpop.f32.mrf.mxu0
      %v589 = vadd.f32 0.0, %v588
      %v590 = vpop.f32.mrf.mxu0
      %v591 = vpop.f32.mrf.mxu0
      %v592 = vadd.f32 0.0, %v591
      %v593 = vpop.f32.mrf.mxu0
      %594 = vmatprep.mubr.bf16.mxu0 0
      %595 = vmatmul.mubr.bf16.gmra.mxu0 %v543
      %v596 = vpop.f32.mrf.mxu0
      %v597 = vadd.f32 0.0, %v596
      %v598 = vpop.f32.mrf.mxu0
      %v599 = vpop.f32.mrf.mxu0
      %v600 = vadd.f32 0.0, %v599
      %v601 = vpop.f32.mrf.mxu0
      %602 = vmatprep.mubr.bf16.mxu0 0
      %603 = vmatmul.mubr.bf16.gmra.mxu0 %v546
      %v604 = vpop.f32.mrf.mxu0
      %v605 = vadd.f32 0.0, %v604
      %v606 = vpop.f32.mrf.mxu0
      %v607 = vpop.f32.mrf.mxu0
      %v608 = vadd.f32 0.0, %v607
      %v609 = vpop.f32.mrf.mxu0
      %610 = vmatprep.mubr.bf16.mxu0 0
      %611 = vmatmul.mubr.bf16.gmra.mxu0 %v549
      %v612 = vpop.f32.mrf.mxu0
      %v613 = vadd.f32 0.0, %v612
      %v614 = vpop.f32.mrf.mxu0
      %v615 = vpop.f32.mrf.mxu0
      %v616 = vadd.f32 0.0, %v615
      %v617 = vpop.f32.mrf.mxu0
      %618 = vdwg.mxu0
      %v619 = vadd.f32 %v364, %v589
      %v620 = vadd.f32 %v367, %v592
      %v621 = vadd.f32 %v372, %v597
      %v622 = vadd.f32 %v375, %v600
      %v623 = vadd.f32 %v380, %v605
      %v624 = vadd.f32 %v383, %v608
      %v625 = vadd.f32 %v388, %v613
      %v626 = vadd.f32 %v391, %v616
      %s627 = scalar_lea.vmem %s165, 144
      %v628 = vld [vmem:[%s627] sm:$0xf]
      %v629 = vld [vmem:[%s627 + $0x8] sm:$0xf]
      %v630 = vld [vmem:[%s627 + $0x10] sm:$0xf]
      %v631 = vld [vmem:[%s627 + $0x18] sm:$0xf]
      %v632 = vld [vmem:[%s627 + $0x20] sm:$0xf]
      %v633 = vld [vmem:[%s627 + $0x28] sm:$0xf]
      %v634 = vld [vmem:[%s627 + $0x30] sm:$0xf]
      %v635 = vld [vmem:[%s627 + $0x38] sm:$0xf]
      %s636 = scalar_lea.vmem %s1, 12
      %v637 = vld [vmem:[%s636] sm:$0xf]
      %v646 = vunpack.c.l.b16 %v628
      %v647 = vunpack.c.l.b16 %v629
      %v648 = vunpack.c.l.b16 %v630
      %v649 = vunpack.c.l.b16 %v631
      %v650 = vunpack.c.l.b16 %v632
      %v651 = vunpack.c.l.b16 %v633
      %v652 = vunpack.c.l.b16 %v634
      %v653 = vunpack.c.l.b16 %v635
      %v654 = vpack.c.b16 %v647, %v646
      %v655 = vpack.c.b16 %v649, %v648
      %v656 = vpack.c.b16 %v651, %v650
      %v657 = vpack.c.b16 %v653, %v652
      %v659 = vsel %vm212, %v654, 0
      %v662 = vsel %vm212, %v655, 0
      %v665 = vsel %vm212, %v656, 0
      %v668 = vsel %vm212, %v657, 0
      %v671 = vsel %vm225, %v637, 0
      %673 = vmatprep.subr.bf16.mxu0 0
      %674 = vmatpush1.bf16.msra.mxu0 0
      %675 = vmatprep.subr.bf16.mxu0 0
      %676 = vmatpush1.bf16.msra.mxu0 0
      %677 = vmatprep.subr.bf16.mxu0 0
      %678 = vmatpush1.bf16.msra.mxu0 0
      %679 = vmatprep.subr.bf16.mxu0 0
      %680 = vmatpush1.bf16.msra.mxu0 0
      %681 = vmatprep.subr.bf16.mxu0 0
      %682 = vmatpush1.bf16.msra.mxu0 0
      %683 = vmatprep.subr.bf16.mxu0 0
      %684 = vmatpush1.bf16.msra.mxu0 0
      %685 = vmatprep.subr.bf16.mxu0 0
      %686 = vmatpush1.bf16.msra.mxu0 0
      %687 = vmatprep.subr.bf16.mxu0 0
      %688 = vmatpush1.bf16.msra.mxu0 %v671
      %689 = vmatprep.subr.bf16.mxu0 0
      %690 = vmatpush2.bf16.msra.mxu0 0
      %691 = vmatprep.subr.bf16.mxu0 0
      %692 = vmatpush2.bf16.msra.mxu0 0
      %693 = vmatprep.subr.bf16.mxu0 0
      %694 = vmatpush2.bf16.msra.mxu0 0
      %695 = vmatprep.subr.bf16.mxu0 0
      %696 = vmatpush2.bf16.msra.mxu0 0
      %697 = vmatprep.subr.bf16.mxu0 0
      %698 = vmatpush2.bf16.msra.mxu0 0
      %699 = vmatprep.subr.bf16.mxu0 0
      %700 = vmatpush2.bf16.msra.mxu0 0
      %701 = vmatprep.subr.bf16.mxu0 0
      %702 = vmatpush2.bf16.msra.mxu0 0
      %703 = vmatprep.subr.bf16.mxu0 0
      %704 = vmatpush2.bf16.msra.mxu0 0
      %705 = vmatprep.mubr.bf16.mxu0 0
      %706 = vmatmul.mubr.bf16.gmra.mxu0 %v659
      %v707 = vpop.f32.mrf.mxu0
      %v708 = vadd.f32 0.0, %v707
      %v709 = vpop.f32.mrf.mxu0
      %v710 = vpop.f32.mrf.mxu0
      %v711 = vadd.f32 0.0, %v710
      %v712 = vpop.f32.mrf.mxu0
      %713 = vmatprep.mubr.bf16.mxu0 0
      %714 = vmatmul.mubr.bf16.gmra.mxu0 %v662
      %v715 = vpop.f32.mrf.mxu0
      %v716 = vadd.f32 0.0, %v715
      %v717 = vpop.f32.mrf.mxu0
      %v718 = vpop.f32.mrf.mxu0
      %v719 = vadd.f32 0.0, %v718
      %v720 = vpop.f32.mrf.mxu0
      %721 = vmatprep.mubr.bf16.mxu0 0
      %722 = vmatmul.mubr.bf16.gmra.mxu0 %v665
      %v723 = vpop.f32.mrf.mxu0
      %v724 = vadd.f32 0.0, %v723
      %v725 = vpop.f32.mrf.mxu0
      %v726 = vpop.f32.mrf.mxu0
      %v727 = vadd.f32 0.0, %v726
      %v728 = vpop.f32.mrf.mxu0
      %729 = vmatprep.mubr.bf16.mxu0 0
      %730 = vmatmul.mubr.bf16.gmra.mxu0 %v668
      %v731 = vpop.f32.mrf.mxu0
      %v732 = vadd.f32 0.0, %v731
      %v733 = vpop.f32.mrf.mxu0
      %v734 = vpop.f32.mrf.mxu0
      %v735 = vadd.f32 0.0, %v734
      %v736 = vpop.f32.mrf.mxu0
      %737 = vdwg.mxu0
      %v738 = vadd.f32 %v619, %v708
      %v739 = vadd.f32 %v620, %v711
      %v740 = vadd.f32 %v621, %v716
      %v741 = vadd.f32 %v622, %v719
      %v742 = vadd.f32 %v623, %v724
      %v743 = vadd.f32 %v624, %v727
      %v744 = vadd.f32 %v625, %v732
      %v745 = vadd.f32 %v626, %v735
      %s746 = scalar_lea.vmem %s165, 216
      %v747 = vld [vmem:[%s746] sm:$0xf]
      %v748 = vld [vmem:[%s746 + $0x8] sm:$0xf]
      %v749 = vld [vmem:[%s746 + $0x10] sm:$0xf]
      %v750 = vld [vmem:[%s746 + $0x18] sm:$0xf]
      %v751 = vld [vmem:[%s746 + $0x20] sm:$0xf]
      %v752 = vld [vmem:[%s746 + $0x28] sm:$0xf]
      %v753 = vld [vmem:[%s746 + $0x30] sm:$0xf]
      %v754 = vld [vmem:[%s746 + $0x38] sm:$0xf]
      %s755 = scalar_lea.vmem %s1, 16
      %v756 = vld [vmem:[%s755] sm:$0xf]
      %v765 = vunpack.c.l.b16 %v747
      %v766 = vunpack.c.l.b16 %v748
      %v767 = vunpack.c.l.b16 %v749
      %v768 = vunpack.c.l.b16 %v750
      %v769 = vunpack.c.l.b16 %v751
      %v770 = vunpack.c.l.b16 %v752
      %v771 = vunpack.c.l.b16 %v753
      %v772 = vunpack.c.l.b16 %v754
      %v773 = vpack.c.b16 %v766, %v765
      %v774 = vpack.c.b16 %v768, %v767
      %v775 = vpack.c.b16 %v770, %v769
      %v776 = vpack.c.b16 %v772, %v771
      %v778 = vsel %vm212, %v773, 0
      %v781 = vsel %vm212, %v774, 0
      %v784 = vsel %vm212, %v775, 0
      %v787 = vsel %vm212, %v776, 0
      %v790 = vsel %vm225, %v756, 0
      %792 = vmatprep.subr.bf16.mxu0 0
      %793 = vmatpush1.bf16.msra.mxu0 0
      %794 = vmatprep.subr.bf16.mxu0 0
      %795 = vmatpush1.bf16.msra.mxu0 0
      %796 = vmatprep.subr.bf16.mxu0 0
      %797 = vmatpush1.bf16.msra.mxu0 0
      %798 = vmatprep.subr.bf16.mxu0 0
      %799 = vmatpush1.bf16.msra.mxu0 0
      %800 = vmatprep.subr.bf16.mxu0 0
      %801 = vmatpush1.bf16.msra.mxu0 0
      %802 = vmatprep.subr.bf16.mxu0 0
      %803 = vmatpush1.bf16.msra.mxu0 0
      %804 = vmatprep.subr.bf16.mxu0 0
      %805 = vmatpush1.bf16.msra.mxu0 0
      %806 = vmatprep.subr.bf16.mxu0 0
      %807 = vmatpush1.bf16.msra.mxu0 %v790
      %808 = vmatprep.subr.bf16.mxu0 0
      %809 = vmatpush2.bf16.msra.mxu0 0
      %810 = vmatprep.subr.bf16.mxu0 0
      %811 = vmatpush2.bf16.msra.mxu0 0
      %812 = vmatprep.subr.bf16.mxu0 0
      %813 = vmatpush2.bf16.msra.mxu0 0
      %814 = vmatprep.subr.bf16.mxu0 0
      %815 = vmatpush2.bf16.msra.mxu0 0
      %816 = vmatprep.subr.bf16.mxu0 0
      %817 = vmatpush2.bf16.msra.mxu0 0
      %818 = vmatprep.subr.bf16.mxu0 0
      %819 = vmatpush2.bf16.msra.mxu0 0
      %820 = vmatprep.subr.bf16.mxu0 0
      %821 = vmatpush2.bf16.msra.mxu0 0
      %822 = vmatprep.subr.bf16.mxu0 0
      %823 = vmatpush2.bf16.msra.mxu0 0
      %824 = vmatprep.mubr.bf16.mxu0 0
      %825 = vmatmul.mubr.bf16.gmra.mxu0 %v778
      %v826 = vpop.f32.mrf.mxu0
      %v827 = vadd.f32 0.0, %v826
      %v828 = vpop.f32.mrf.mxu0
      %v829 = vpop.f32.mrf.mxu0
      %v830 = vadd.f32 0.0, %v829
      %v831 = vpop.f32.mrf.mxu0
      %832 = vmatprep.mubr.bf16.mxu0 0
      %833 = vmatmul.mubr.bf16.gmra.mxu0 %v781
      %v834 = vpop.f32.mrf.mxu0
      %v835 = vadd.f32 0.0, %v834
      %v836 = vpop.f32.mrf.mxu0
      %v837 = vpop.f32.mrf.mxu0
      %v838 = vadd.f32 0.0, %v837
      %v839 = vpop.f32.mrf.mxu0
      %840 = vmatprep.mubr.bf16.mxu0 0
      %841 = vmatmul.mubr.bf16.gmra.mxu0 %v784
      %v842 = vpop.f32.mrf.mxu0
      %v843 = vadd.f32 0.0, %v842
      %v844 = vpop.f32.mrf.mxu0
      %v845 = vpop.f32.mrf.mxu0
      %v846 = vadd.f32 0.0, %v845
      %v847 = vpop.f32.mrf.mxu0
      %848 = vmatprep.mubr.bf16.mxu0 0
      %849 = vmatmul.mubr.bf16.gmra.mxu0 %v787
      %v850 = vpop.f32.mrf.mxu0
      %v851 = vadd.f32 0.0, %v850
      %v852 = vpop.f32.mrf.mxu0
      %v853 = vpop.f32.mrf.mxu0
      %v854 = vadd.f32 0.0, %v853
      %v855 = vpop.f32.mrf.mxu0
      %856 = vdwg.mxu0
      %v857 = vadd.f32 %v738, %v827
      %v858 = vadd.f32 %v739, %v830
      %v859 = vadd.f32 %v740, %v835
      %v860 = vadd.f32 %v741, %v838
      %v861 = vadd.f32 %v742, %v843
      %v862 = vadd.f32 %v743, %v846
      %v863 = vadd.f32 %v744, %v851
      %v864 = vadd.f32 %v745, %v854
      %v865 = vld [vmem:[%s627] sm:$0xf]
      %v866 = vld [vmem:[%s627 + $0x4] sm:$0x1]
      %v867 = vld [vmem:[%s627 + $0x8] sm:$0xf]
      %v868 = vld [vmem:[%s627 + $0xc] sm:$0x1]
      %v869 = vld [vmem:[%s627 + $0x10] sm:$0xf]
      %v870 = vld [vmem:[%s627 + $0x14] sm:$0x1]
      %v871 = vld [vmem:[%s627 + $0x18] sm:$0xf]
      %v872 = vld [vmem:[%s627 + $0x1c] sm:$0x1]
      %v873 = vld [vmem:[%s627 + $0x20] sm:$0xf]
      %v874 = vld [vmem:[%s627 + $0x24] sm:$0x1]
      %v875 = vld [vmem:[%s627 + $0x28] sm:$0xf]
      %v876 = vld [vmem:[%s627 + $0x2c] sm:$0x1]
      %v877 = vld [vmem:[%s627 + $0x30] sm:$0xf]
      %v878 = vld [vmem:[%s627 + $0x34] sm:$0x1]
      %v879 = vld [vmem:[%s627 + $0x38] sm:$0xf]
      %v880 = vld [vmem:[%s627 + $0x3c] sm:$0x1]
      %v882 = vshrl.u32 %v865, 16
      %v884 = vrot.slane %v882, 4
      %v885 = vshll.u32 %v865, 16
      %v887 = vrot.slane %v885, 5
      %v888 = vor.u32 %v884, %v887
      %v889 = vrot.slane %v888, 4
      %v891 = vshll.u32 %v866, 16
      %v893 = vrot.slane %v891, 5
      %v894 = vsel %vm412, %v889, %v893
      %v896 = vshrl.u32 %v867, 16
      %v898 = vrot.slane %v896, 4
      %v899 = vshll.u32 %v867, 16
      %v901 = vrot.slane %v899, 5
      %v902 = vor.u32 %v898, %v901
      %v903 = vrot.slane %v902, 4
      %v905 = vshll.u32 %v868, 16
      %v907 = vrot.slane %v905, 5
      %v908 = vsel %vm412, %v903, %v907
      %v910 = vshrl.u32 %v869, 16
      %v912 = vrot.slane %v910, 4
      %v913 = vshll.u32 %v869, 16
      %v915 = vrot.slane %v913, 5
      %v916 = vor.u32 %v912, %v915
      %v917 = vrot.slane %v916, 4
      %v919 = vshll.u32 %v870, 16
      %v921 = vrot.slane %v919, 5
      %v922 = vsel %vm412, %v917, %v921
      %v924 = vshrl.u32 %v871, 16
      %v926 = vrot.slane %v924, 4
      %v927 = vshll.u32 %v871, 16
      %v929 = vrot.slane %v927, 5
      %v930 = vor.u32 %v926, %v929
      %v931 = vrot.slane %v930, 4
      %v933 = vshll.u32 %v872, 16
      %v935 = vrot.slane %v933, 5
      %v936 = vsel %vm412, %v931, %v935
      %v938 = vshrl.u32 %v873, 16
      %v940 = vrot.slane %v938, 4
      %v941 = vshll.u32 %v873, 16
      %v943 = vrot.slane %v941, 5
      %v944 = vor.u32 %v940, %v943
      %v945 = vrot.slane %v944, 4
      %v947 = vshll.u32 %v874, 16
      %v949 = vrot.slane %v947, 5
      %v950 = vsel %vm412, %v945, %v949
      %v952 = vshrl.u32 %v875, 16
      %v954 = vrot.slane %v952, 4
      %v955 = vshll.u32 %v875, 16
      %v957 = vrot.slane %v955, 5
      %v958 = vor.u32 %v954, %v957
      %v959 = vrot.slane %v958, 4
      %v961 = vshll.u32 %v876, 16
      %v963 = vrot.slane %v961, 5
      %v964 = vsel %vm412, %v959, %v963
      %v966 = vshrl.u32 %v877, 16
      %v968 = vrot.slane %v966, 4
      %v969 = vshll.u32 %v877, 16
      %v971 = vrot.slane %v969, 5
      %v972 = vor.u32 %v968, %v971
      %v973 = vrot.slane %v972, 4
      %v975 = vshll.u32 %v878, 16
      %v977 = vrot.slane %v975, 5
      %v978 = vsel %vm412, %v973, %v977
      %v980 = vshrl.u32 %v879, 16
      %v982 = vrot.slane %v980, 4
      %v983 = vshll.u32 %v879, 16
      %v985 = vrot.slane %v983, 5
      %v986 = vor.u32 %v982, %v985
      %v987 = vrot.slane %v986, 4
      %v989 = vshll.u32 %v880, 16
      %v991 = vrot.slane %v989, 5
      %v992 = vsel %vm412, %v987, %v991
      %s993 = scalar_lea.vmem %s1, 20
      %v994 = vld [vmem:[%s993] sm:$0xf]
      %v995 = vunpack.c.l.b16 %v894
      %v996 = vunpack.c.l.b16 %v908
      %v997 = vunpack.c.l.b16 %v922
      %v998 = vunpack.c.l.b16 %v936
      %v999 = vunpack.c.l.b16 %v950
      %v1000 = vunpack.c.l.b16 %v964
      %v1001 = vunpack.c.l.b16 %v978
      %v1002 = vunpack.c.l.b16 %v992
      %v1003 = vpack.c.b16 %v996, %v995
      %v1004 = vpack.c.b16 %v998, %v997
      %v1005 = vpack.c.b16 %v1000, %v999
      %v1006 = vpack.c.b16 %v1002, %v1001
      %v1008 = vsel %vm212, %v1003, 0
      %v1011 = vsel %vm212, %v1004, 0
      %v1014 = vsel %vm212, %v1005, 0
      %v1017 = vsel %vm212, %v1006, 0
      %v1020 = vsel %vm225, %v994, 0
      %1022 = vmatprep.subr.bf16.mxu0 0
      %1023 = vmatpush1.bf16.msra.mxu0 0
      %1024 = vmatprep.subr.bf16.mxu0 0
      %1025 = vmatpush1.bf16.msra.mxu0 0
      %1026 = vmatprep.subr.bf16.mxu0 0
      %1027 = vmatpush1.bf16.msra.mxu0 0
      %1028 = vmatprep.subr.bf16.mxu0 0
      %1029 = vmatpush1.bf16.msra.mxu0 0
      %1030 = vmatprep.subr.bf16.mxu0 0
      %1031 = vmatpush1.bf16.msra.mxu0 0
      %1032 = vmatprep.subr.bf16.mxu0 0
      %1033 = vmatpush1.bf16.msra.mxu0 0
      %1034 = vmatprep.subr.bf16.mxu0 0
      %1035 = vmatpush1.bf16.msra.mxu0 0
      %1036 = vmatprep.subr.bf16.mxu0 0
      %1037 = vmatpush1.bf16.msra.mxu0 %v1020
      %1038 = vmatprep.subr.bf16.mxu0 0
      %1039 = vmatpush2.bf16.msra.mxu0 0
      %1040 = vmatprep.subr.bf16.mxu0 0
      %1041 = vmatpush2.bf16.msra.mxu0 0
      %1042 = vmatprep.subr.bf16.mxu0 0
      %1043 = vmatpush2.bf16.msra.mxu0 0
      %1044 = vmatprep.subr.bf16.mxu0 0
      %1045 = vmatpush2.bf16.msra.mxu0 0
      %1046 = vmatprep.subr.bf16.mxu0 0
      %1047 = vmatpush2.bf16.msra.mxu0 0
      %1048 = vmatprep.subr.bf16.mxu0 0
      %1049 = vmatpush2.bf16.msra.mxu0 0
      %1050 = vmatprep.subr.bf16.mxu0 0
      %1051 = vmatpush2.bf16.msra.mxu0 0
      %1052 = vmatprep.subr.bf16.mxu0 0
      %1053 = vmatpush2.bf16.msra.mxu0 0
      %1054 = vmatprep.mubr.bf16.mxu0 0
      %1055 = vmatmul.mubr.bf16.gmra.mxu0 %v1008
      %v1056 = vpop.f32.mrf.mxu0
      %v1057 = vadd.f32 0.0, %v1056
      %v1058 = vpop.f32.mrf.mxu0
      %v1059 = vpop.f32.mrf.mxu0
      %v1060 = vadd.f32 0.0, %v1059
      %v1061 = vpop.f32.mrf.mxu0
      %1062 = vmatprep.mubr.bf16.mxu0 0
      %1063 = vmatmul.mubr.bf16.gmra.mxu0 %v1011
      %v1064 = vpop.f32.mrf.mxu0
      %v1065 = vadd.f32 0.0, %v1064
      %v1066 = vpop.f32.mrf.mxu0
      %v1067 = vpop.f32.mrf.mxu0
      %v1068 = vadd.f32 0.0, %v1067
      %v1069 = vpop.f32.mrf.mxu0
      %1070 = vmatprep.mubr.bf16.mxu0 0
      %1071 = vmatmul.mubr.bf16.gmra.mxu0 %v1014
      %v1072 = vpop.f32.mrf.mxu0
      %v1073 = vadd.f32 0.0, %v1072
      %v1074 = vpop.f32.mrf.mxu0
      %v1075 = vpop.f32.mrf.mxu0
      %v1076 = vadd.f32 0.0, %v1075
      %v1077 = vpop.f32.mrf.mxu0
      %1078 = vmatprep.mubr.bf16.mxu0 0
      %1079 = vmatmul.mubr.bf16.gmra.mxu0 %v1017
      %v1080 = vpop.f32.mrf.mxu0
      %v1081 = vadd.f32 0.0, %v1080
      %v1082 = vpop.f32.mrf.mxu0
      %v1083 = vpop.f32.mrf.mxu0
      %v1084 = vadd.f32 0.0, %v1083
      %v1085 = vpop.f32.mrf.mxu0
      %1086 = vdwg.mxu0
      %v1087 = vadd.f32 %v857, %v1057
      %v1088 = vadd.f32 %v858, %v1060
      %v1089 = vadd.f32 %v859, %v1065
      %v1090 = vadd.f32 %v860, %v1068
      %v1091 = vadd.f32 %v861, %v1073
      %v1092 = vadd.f32 %v862, %v1076
      %v1093 = vadd.f32 %v863, %v1081
      %v1094 = vadd.f32 %v864, %v1084
      %s1095 = scalar_lea.vmem %s165, 8
      %v1096 = vld [vmem:[%s1095] sm:$0xf]
      %v1097 = vld [vmem:[%s1095 + $0x8] sm:$0xf]
      %v1098 = vld [vmem:[%s1095 + $0x10] sm:$0xf]
      %v1099 = vld [vmem:[%s1095 + $0x18] sm:$0xf]
      %v1100 = vld [vmem:[%s1095 + $0x20] sm:$0xf]
      %v1101 = vld [vmem:[%s1095 + $0x28] sm:$0xf]
      %v1102 = vld [vmem:[%s1095 + $0x30] sm:$0xf]
      %v1103 = vld [vmem:[%s1095 + $0x38] sm:$0xf]
      %s1104 = scalar_lea.vmem %s1, 24
      %v1105 = vld [vmem:[%s1104] sm:$0xf]
      %v1114 = vunpack.c.l.b16 %v1096
      %v1115 = vunpack.c.l.b16 %v1097
      %v1116 = vunpack.c.l.b16 %v1098
      %v1117 = vunpack.c.l.b16 %v1099
      %v1118 = vunpack.c.l.b16 %v1100
      %v1119 = vunpack.c.l.b16 %v1101
      %v1120 = vunpack.c.l.b16 %v1102
      %v1121 = vunpack.c.l.b16 %v1103
      %v1122 = vpack.c.b16 %v1115, %v1114
      %v1123 = vpack.c.b16 %v1117, %v1116
      %v1124 = vpack.c.b16 %v1119, %v1118
      %v1125 = vpack.c.b16 %v1121, %v1120
      %v1127 = vsel %vm212, %v1122, 0
      %v1130 = vsel %vm212, %v1123, 0
      %v1133 = vsel %vm212, %v1124, 0
      %v1136 = vsel %vm212, %v1125, 0
      %v1139 = vsel %vm225, %v1105, 0
      %1141 = vmatprep.subr.bf16.mxu0 0
      %1142 = vmatpush1.bf16.msra.mxu0 0
      %1143 = vmatprep.subr.bf16.mxu0 0
      %1144 = vmatpush1.bf16.msra.mxu0 0
      %1145 = vmatprep.subr.bf16.mxu0 0
      %1146 = vmatpush1.bf16.msra.mxu0 0
      %1147 = vmatprep.subr.bf16.mxu0 0
      %1148 = vmatpush1.bf16.msra.mxu0 0
      %1149 = vmatprep.subr.bf16.mxu0 0
      %1150 = vmatpush1.bf16.msra.mxu0 0
      %1151 = vmatprep.subr.bf16.mxu0 0
      %1152 = vmatpush1.bf16.msra.mxu0 0
      %1153 = vmatprep.subr.bf16.mxu0 0
      %1154 = vmatpush1.bf16.msra.mxu0 0
      %1155 = vmatprep.subr.bf16.mxu0 0
      %1156 = vmatpush1.bf16.msra.mxu0 %v1139
      %1157 = vmatprep.subr.bf16.mxu0 0
      %1158 = vmatpush2.bf16.msra.mxu0 0
      %1159 = vmatprep.subr.bf16.mxu0 0
      %1160 = vmatpush2.bf16.msra.mxu0 0
      %1161 = vmatprep.subr.bf16.mxu0 0
      %1162 = vmatpush2.bf16.msra.mxu0 0
      %1163 = vmatprep.subr.bf16.mxu0 0
      %1164 = vmatpush2.bf16.msra.mxu0 0
      %1165 = vmatprep.subr.bf16.mxu0 0
      %1166 = vmatpush2.bf16.msra.mxu0 0
      %1167 = vmatprep.subr.bf16.mxu0 0
      %1168 = vmatpush2.bf16.msra.mxu0 0
      %1169 = vmatprep.subr.bf16.mxu0 0
      %1170 = vmatpush2.bf16.msra.mxu0 0
      %1171 = vmatprep.subr.bf16.mxu0 0
      %1172 = vmatpush2.bf16.msra.mxu0 0
      %1173 = vmatprep.mubr.bf16.mxu0 0
      %1174 = vmatmul.mubr.bf16.gmra.mxu0 %v1127
      %v1175 = vpop.f32.mrf.mxu0
      %v1176 = vadd.f32 0.0, %v1175
      %v1177 = vpop.f32.mrf.mxu0
      %v1178 = vpop.f32.mrf.mxu0
      %v1179 = vadd.f32 0.0, %v1178
      %v1180 = vpop.f32.mrf.mxu0
      %1181 = vmatprep.mubr.bf16.mxu0 0
      %1182 = vmatmul.mubr.bf16.gmra.mxu0 %v1130
      %v1183 = vpop.f32.mrf.mxu0
      %v1184 = vadd.f32 0.0, %v1183
      %v1185 = vpop.f32.mrf.mxu0
      %v1186 = vpop.f32.mrf.mxu0
      %v1187 = vadd.f32 0.0, %v1186
      %v1188 = vpop.f32.mrf.mxu0
      %1189 = vmatprep.mubr.bf16.mxu0 0
      %1190 = vmatmul.mubr.bf16.gmra.mxu0 %v1133
      %v1191 = vpop.f32.mrf.mxu0
      %v1192 = vadd.f32 0.0, %v1191
      %v1193 = vpop.f32.mrf.mxu0
      %v1194 = vpop.f32.mrf.mxu0
      %v1195 = vadd.f32 0.0, %v1194
      %v1196 = vpop.f32.mrf.mxu0
      %1197 = vmatprep.mubr.bf16.mxu0 0
      %1198 = vmatmul.mubr.bf16.gmra.mxu0 %v1136
      %v1199 = vpop.f32.mrf.mxu0
      %v1200 = vadd.f32 0.0, %v1199
      %v1201 = vpop.f32.mrf.mxu0
      %v1202 = vpop.f32.mrf.mxu0
      %v1203 = vadd.f32 0.0, %v1202
      %v1204 = vpop.f32.mrf.mxu0
      %1205 = vdwg.mxu0
      %v1206 = vadd.f32 %v1087, %v1176
      %v1207 = vadd.f32 %v1088, %v1179
      %v1208 = vadd.f32 %v1089, %v1184
      %v1209 = vadd.f32 %v1090, %v1187
      %v1210 = vadd.f32 %v1091, %v1192
      %v1211 = vadd.f32 %v1092, %v1195
      %v1212 = vadd.f32 %v1093, %v1200
      %v1213 = vadd.f32 %v1094, %v1203
      %s1214 = scalar_lea.vmem %s165, 80
      %v1215 = vld [vmem:[%s1214] sm:$0xf]
      %v1216 = vld [vmem:[%s1214 + $0x8] sm:$0xf]
      %v1217 = vld [vmem:[%s1214 + $0x10] sm:$0xf]
      %v1218 = vld [vmem:[%s1214 + $0x18] sm:$0xf]
      %v1219 = vld [vmem:[%s1214 + $0x20] sm:$0xf]
      %v1220 = vld [vmem:[%s1214 + $0x28] sm:$0xf]
      %v1221 = vld [vmem:[%s1214 + $0x30] sm:$0xf]
      %v1222 = vld [vmem:[%s1214 + $0x38] sm:$0xf]
      %s1223 = scalar_lea.vmem %s1, 28
      %v1224 = vld [vmem:[%s1223] sm:$0xf]
      %v1233 = vunpack.c.l.b16 %v1215
      %v1234 = vunpack.c.l.b16 %v1216
      %v1235 = vunpack.c.l.b16 %v1217
      %v1236 = vunpack.c.l.b16 %v1218
      %v1237 = vunpack.c.l.b16 %v1219
      %v1238 = vunpack.c.l.b16 %v1220
      %v1239 = vunpack.c.l.b16 %v1221
      %v1240 = vunpack.c.l.b16 %v1222
      %v1241 = vpack.c.b16 %v1234, %v1233
      %v1242 = vpack.c.b16 %v1236, %v1235
      %v1243 = vpack.c.b16 %v1238, %v1237
      %v1244 = vpack.c.b16 %v1240, %v1239
      %v1246 = vsel %vm212, %v1241, 0
      %v1249 = vsel %vm212, %v1242, 0
      %v1252 = vsel %vm212, %v1243, 0
      %v1255 = vsel %vm212, %v1244, 0
      %v1258 = vsel %vm225, %v1224, 0
      %1260 = vmatprep.subr.bf16.mxu0 0
      %1261 = vmatpush1.bf16.msra.mxu0 0
      %1262 = vmatprep.subr.bf16.mxu0 0
      %1263 = vmatpush1.bf16.msra.mxu0 0
      %1264 = vmatprep.subr.bf16.mxu0 0
      %1265 = vmatpush1.bf16.msra.mxu0 0
      %1266 = vmatprep.subr.bf16.mxu0 0
      %1267 = vmatpush1.bf16.msra.mxu0 0
      %1268 = vmatprep.subr.bf16.mxu0 0
      %1269 = vmatpush1.bf16.msra.mxu0 0
      %1270 = vmatprep.subr.bf16.mxu0 0
      %1271 = vmatpush1.bf16.msra.mxu0 0
      %1272 = vmatprep.subr.bf16.mxu0 0
      %1273 = vmatpush1.bf16.msra.mxu0 0
      %1274 = vmatprep.subr.bf16.mxu0 0
      %1275 = vmatpush1.bf16.msra.mxu0 %v1258
      %1276 = vmatprep.subr.bf16.mxu0 0
      %1277 = vmatpush2.bf16.msra.mxu0 0
      %1278 = vmatprep.subr.bf16.mxu0 0
      %1279 = vmatpush2.bf16.msra.mxu0 0
      %1280 = vmatprep.subr.bf16.mxu0 0
      %1281 = vmatpush2.bf16.msra.mxu0 0
      %1282 = vmatprep.subr.bf16.mxu0 0
      %1283 = vmatpush2.bf16.msra.mxu0 0
      %1284 = vmatprep.subr.bf16.mxu0 0
      %1285 = vmatpush2.bf16.msra.mxu0 0
      %1286 = vmatprep.subr.bf16.mxu0 0
      %1287 = vmatpush2.bf16.msra.mxu0 0
      %1288 = vmatprep.subr.bf16.mxu0 0
      %1289 = vmatpush2.bf16.msra.mxu0 0
      %1290 = vmatprep.subr.bf16.mxu0 0
      %1291 = vmatpush2.bf16.msra.mxu0 0
      %1292 = vmatprep.mubr.bf16.mxu0 0
      %1293 = vmatmul.mubr.bf16.gmra.mxu0 %v1246
      %v1294 = vpop.f32.mrf.mxu0
      %v1295 = vadd.f32 0.0, %v1294
      %v1296 = vpop.f32.mrf.mxu0
      %v1297 = vpop.f32.mrf.mxu0
      %v1298 = vadd.f32 0.0, %v1297
      %v1299 = vpop.f32.mrf.mxu0
      %1300 = vmatprep.mubr.bf16.mxu0 0
      %1301 = vmatmul.mubr.bf16.gmra.mxu0 %v1249
      %v1302 = vpop.f32.mrf.mxu0
      %v1303 = vadd.f32 0.0, %v1302
      %v1304 = vpop.f32.mrf.mxu0
      %v1305 = vpop.f32.mrf.mxu0
      %v1306 = vadd.f32 0.0, %v1305
      %v1307 = vpop.f32.mrf.mxu0
      %1308 = vmatprep.mubr.bf16.mxu0 0
      %1309 = vmatmul.mubr.bf16.gmra.mxu0 %v1252
      %v1310 = vpop.f32.mrf.mxu0
      %v1311 = vadd.f32 0.0, %v1310
      %v1312 = vpop.f32.mrf.mxu0
      %v1313 = vpop.f32.mrf.mxu0
      %v1314 = vadd.f32 0.0, %v1313
      %v1315 = vpop.f32.mrf.mxu0
      %1316 = vmatprep.mubr.bf16.mxu0 0
      %1317 = vmatmul.mubr.bf16.gmra.mxu0 %v1255
      %v1318 = vpop.f32.mrf.mxu0
      %v1319 = vadd.f32 0.0, %v1318
      %v1320 = vpop.f32.mrf.mxu0
      %v1321 = vpop.f32.mrf.mxu0
      %v1322 = vadd.f32 0.0, %v1321
      %v1323 = vpop.f32.mrf.mxu0
      %1324 = vdwg.mxu0
      %v1325 = vadd.f32 %v1206, %v1295
      %v1326 = vadd.f32 %v1207, %v1298
      %v1327 = vadd.f32 %v1208, %v1303
      %v1328 = vadd.f32 %v1209, %v1306
      %v1329 = vadd.f32 %v1210, %v1311
      %v1330 = vadd.f32 %v1211, %v1314
      %v1331 = vadd.f32 %v1212, %v1319
      %v1332 = vadd.f32 %v1213, %v1322
      %v1333 = vld [vmem:[%s1095] sm:$0xf]
      %v1334 = vld [vmem:[%s1095 + $0x4] sm:$0x1]
      %v1335 = vld [vmem:[%s1095 + $0x8] sm:$0xf]
      %v1336 = vld [vmem:[%s1095 + $0xc] sm:$0x1]
      %v1337 = vld [vmem:[%s1095 + $0x10] sm:$0xf]
      %v1338 = vld [vmem:[%s1095 + $0x14] sm:$0x1]
      %v1339 = vld [vmem:[%s1095 + $0x18] sm:$0xf]
      %v1340 = vld [vmem:[%s1095 + $0x1c] sm:$0x1]
      %v1341 = vld [vmem:[%s1095 + $0x20] sm:$0xf]
      %v1342 = vld [vmem:[%s1095 + $0x24] sm:$0x1]
      %v1343 = vld [vmem:[%s1095 + $0x28] sm:$0xf]
      %v1344 = vld [vmem:[%s1095 + $0x2c] sm:$0x1]
      %v1345 = vld [vmem:[%s1095 + $0x30] sm:$0xf]
      %v1346 = vld [vmem:[%s1095 + $0x34] sm:$0x1]
      %v1347 = vld [vmem:[%s1095 + $0x38] sm:$0xf]
      %v1348 = vld [vmem:[%s1095 + $0x3c] sm:$0x1]
      %v1350 = vshrl.u32 %v1333, 16
      %v1352 = vrot.slane %v1350, 4
      %v1353 = vshll.u32 %v1333, 16
      %v1355 = vrot.slane %v1353, 5
      %v1356 = vor.u32 %v1352, %v1355
      %v1357 = vrot.slane %v1356, 4
      %v1359 = vshll.u32 %v1334, 16
      %v1361 = vrot.slane %v1359, 5
      %v1362 = vsel %vm412, %v1357, %v1361
      %v1364 = vshrl.u32 %v1335, 16
      %v1366 = vrot.slane %v1364, 4
      %v1367 = vshll.u32 %v1335, 16
      %v1369 = vrot.slane %v1367, 5
      %v1370 = vor.u32 %v1366, %v1369
      %v1371 = vrot.slane %v1370, 4
      %v1373 = vshll.u32 %v1336, 16
      %v1375 = vrot.slane %v1373, 5
      %v1376 = vsel %vm412, %v1371, %v1375
      %v1378 = vshrl.u32 %v1337, 16
      %v1380 = vrot.slane %v1378, 4
      %v1381 = vshll.u32 %v1337, 16
      %v1383 = vrot.slane %v1381, 5
      %v1384 = vor.u32 %v1380, %v1383
      %v1385 = vrot.slane %v1384, 4
      %v1387 = vshll.u32 %v1338, 16
      %v1389 = vrot.slane %v1387, 5
      %v1390 = vsel %vm412, %v1385, %v1389
      %v1392 = vshrl.u32 %v1339, 16
      %v1394 = vrot.slane %v1392, 4
      %v1395 = vshll.u32 %v1339, 16
      %v1397 = vrot.slane %v1395, 5
      %v1398 = vor.u32 %v1394, %v1397
      %v1399 = vrot.slane %v1398, 4
      %v1401 = vshll.u32 %v1340, 16
      %v1403 = vrot.slane %v1401, 5
      %v1404 = vsel %vm412, %v1399, %v1403
      %v1406 = vshrl.u32 %v1341, 16
      %v1408 = vrot.slane %v1406, 4
      %v1409 = vshll.u32 %v1341, 16
      %v1411 = vrot.slane %v1409, 5
      %v1412 = vor.u32 %v1408, %v1411
      %v1413 = vrot.slane %v1412, 4
      %v1415 = vshll.u32 %v1342, 16
      %v1417 = vrot.slane %v1415, 5
      %v1418 = vsel %vm412, %v1413, %v1417
      %v1420 = vshrl.u32 %v1343, 16
      %v1422 = vrot.slane %v1420, 4
      %v1423 = vshll.u32 %v1343, 16
      %v1425 = vrot.slane %v1423, 5
      %v1426 = vor.u32 %v1422, %v1425
      %v1427 = vrot.slane %v1426, 4
      %v1429 = vshll.u32 %v1344, 16
      %v1431 = vrot.slane %v1429, 5
      %v1432 = vsel %vm412, %v1427, %v1431
      %v1434 = vshrl.u32 %v1345, 16
      %v1436 = vrot.slane %v1434, 4
      %v1437 = vshll.u32 %v1345, 16
      %v1439 = vrot.slane %v1437, 5
      %v1440 = vor.u32 %v1436, %v1439
      %v1441 = vrot.slane %v1440, 4
      %v1443 = vshll.u32 %v1346, 16
      %v1445 = vrot.slane %v1443, 5
      %v1446 = vsel %vm412, %v1441, %v1445
      %v1448 = vshrl.u32 %v1347, 16
      %v1450 = vrot.slane %v1448, 4
      %v1451 = vshll.u32 %v1347, 16
      %v1453 = vrot.slane %v1451, 5
      %v1454 = vor.u32 %v1450, %v1453
      %v1455 = vrot.slane %v1454, 4
      %v1457 = vshll.u32 %v1348, 16
      %v1459 = vrot.slane %v1457, 5
      %v1460 = vsel %vm412, %v1455, %v1459
      %s1461 = scalar_lea.vmem %s1, 32
      %v1462 = vld [vmem:[%s1461] sm:$0xf]
      %v1463 = vunpack.c.l.b16 %v1362
      %v1464 = vunpack.c.l.b16 %v1376
      %v1465 = vunpack.c.l.b16 %v1390
      %v1466 = vunpack.c.l.b16 %v1404
      %v1467 = vunpack.c.l.b16 %v1418
      %v1468 = vunpack.c.l.b16 %v1432
      %v1469 = vunpack.c.l.b16 %v1446
      %v1470 = vunpack.c.l.b16 %v1460
      %v1471 = vpack.c.b16 %v1464, %v1463
      %v1472 = vpack.c.b16 %v1466, %v1465
      %v1473 = vpack.c.b16 %v1468, %v1467
      %v1474 = vpack.c.b16 %v1470, %v1469
      %v1476 = vsel %vm212, %v1471, 0
      %v1479 = vsel %vm212, %v1472, 0
      %v1482 = vsel %vm212, %v1473, 0
      %v1485 = vsel %vm212, %v1474, 0
      %v1488 = vsel %vm225, %v1462, 0
      %1490 = vmatprep.subr.bf16.mxu0 0
      %1491 = vmatpush1.bf16.msra.mxu0 0
      %1492 = vmatprep.subr.bf16.mxu0 0
      %1493 = vmatpush1.bf16.msra.mxu0 0
      %1494 = vmatprep.subr.bf16.mxu0 0
      %1495 = vmatpush1.bf16.msra.mxu0 0
      %1496 = vmatprep.subr.bf16.mxu0 0
      %1497 = vmatpush1.bf16.msra.mxu0 0
      %1498 = vmatprep.subr.bf16.mxu0 0
      %1499 = vmatpush1.bf16.msra.mxu0 0
      %1500 = vmatprep.subr.bf16.mxu0 0
      %1501 = vmatpush1.bf16.msra.mxu0 0
      %1502 = vmatprep.subr.bf16.mxu0 0
      %1503 = vmatpush1.bf16.msra.mxu0 0
      %1504 = vmatprep.subr.bf16.mxu0 0
      %1505 = vmatpush1.bf16.msra.mxu0 %v1488
      %1506 = vmatprep.subr.bf16.mxu0 0
      %1507 = vmatpush2.bf16.msra.mxu0 0
      %1508 = vmatprep.subr.bf16.mxu0 0
      %1509 = vmatpush2.bf16.msra.mxu0 0
      %1510 = vmatprep.subr.bf16.mxu0 0
      %1511 = vmatpush2.bf16.msra.mxu0 0
      %1512 = vmatprep.subr.bf16.mxu0 0
      %1513 = vmatpush2.bf16.msra.mxu0 0
      %1514 = vmatprep.subr.bf16.mxu0 0
      %1515 = vmatpush2.bf16.msra.mxu0 0
      %1516 = vmatprep.subr.bf16.mxu0 0
      %1517 = vmatpush2.bf16.msra.mxu0 0
      %1518 = vmatprep.subr.bf16.mxu0 0
      %1519 = vmatpush2.bf16.msra.mxu0 0
      %1520 = vmatprep.subr.bf16.mxu0 0
      %1521 = vmatpush2.bf16.msra.mxu0 0
      %1522 = vmatprep.mubr.bf16.mxu0 0
      %1523 = vmatmul.mubr.bf16.gmra.mxu0 %v1476
      %v1524 = vpop.f32.mrf.mxu0
      %v1525 = vadd.f32 0.0, %v1524
      %v1526 = vpop.f32.mrf.mxu0
      %v1527 = vpop.f32.mrf.mxu0
      %v1528 = vadd.f32 0.0, %v1527
      %v1529 = vpop.f32.mrf.mxu0
      %1530 = vmatprep.mubr.bf16.mxu0 0
      %1531 = vmatmul.mubr.bf16.gmra.mxu0 %v1479
      %v1532 = vpop.f32.mrf.mxu0
      %v1533 = vadd.f32 0.0, %v1532
      %v1534 = vpop.f32.mrf.mxu0
      %v1535 = vpop.f32.mrf.mxu0
      %v1536 = vadd.f32 0.0, %v1535
      %v1537 = vpop.f32.mrf.mxu0
      %1538 = vmatprep.mubr.bf16.mxu0 0
      %1539 = vmatmul.mubr.bf16.gmra.mxu0 %v1482
      %v1540 = vpop.f32.mrf.mxu0
      %v1541 = vadd.f32 0.0, %v1540
      %v1542 = vpop.f32.mrf.mxu0
      %v1543 = vpop.f32.mrf.mxu0
      %v1544 = vadd.f32 0.0, %v1543
      %v1545 = vpop.f32.mrf.mxu0
      %1546 = vmatprep.mubr.bf16.mxu0 0
      %1547 = vmatmul.mubr.bf16.gmra.mxu0 %v1485
      %v1548 = vpop.f32.mrf.mxu0
      %v1549 = vadd.f32 0.0, %v1548
      %v1550 = vpop.f32.mrf.mxu0
      %v1551 = vpop.f32.mrf.mxu0
      %v1552 = vadd.f32 0.0, %v1551
      %v1553 = vpop.f32.mrf.mxu0
      %1554 = vdwg.mxu0
      %v1555 = vadd.f32 %v1325, %v1525
      %v1556 = vadd.f32 %v1326, %v1528
      %v1557 = vadd.f32 %v1327, %v1533
      %v1558 = vadd.f32 %v1328, %v1536
      %v1559 = vadd.f32 %v1329, %v1541
      %v1560 = vadd.f32 %v1330, %v1544
      %v1561 = vadd.f32 %v1331, %v1549
      %v1562 = vadd.f32 %v1332, %v1552
      %v1563 = vld [vmem:[%s2] sm:$0x1]
      %v1565 = vlaneseq
      %v1566 = vshrl.u32 %v1565, 7
      %v1567 = vsub.s32 0, %v1566
      %v1568 = vrot.slane %v1563, %v1567
      %v1570 = vadd.f32 %v1555, %v1568
      %v1571 = vadd.f32 %v1556, %v1568
      %v1572 = vadd.f32 %v1557, %v1568
      %v1573 = vadd.f32 %v1558, %v1568
      %v1574 = vadd.f32 %v1559, %v1568
      %v1575 = vadd.f32 %v1560, %v1568
      %v1576 = vadd.f32 %v1561, %v1568
      %v1577 = vadd.f32 %v1562, %v1568
      %v1578 = vmax.f32 %v1570, 0.0
      %v1579 = vmax.f32 %v1571, 0.0
      %v1580 = vmax.f32 %v1572, 0.0
      %v1581 = vmax.f32 %v1573, 0.0
      %v1582 = vmax.f32 %v1574, 0.0
      %v1583 = vmax.f32 %v1575, 0.0
      %v1584 = vmax.f32 %v1576, 0.0
      %v1585 = vmax.f32 %v1577, 0.0
      %v1586 = vpack.c.bf16 %v1578, %v1578
      %v1587 = vpack.c.bf16 %v1579, %v1579
      %v1588 = vpack.c.bf16 %v1580, %v1580
      %v1589 = vpack.c.bf16 %v1581, %v1581
      %v1590 = vpack.c.bf16 %v1582, %v1582
      %v1591 = vpack.c.bf16 %v1583, %v1583
      %v1592 = vpack.c.bf16 %v1584, %v1584
      %v1593 = vpack.c.bf16 %v1585, %v1585
      %vm1594 = vcmask 60416
      %1595 = vst.msk [vmem:[%s170] sm:$0xf] %vm1594, %v1586
      %1596 = vst.msk [vmem:[%s170 + $0x4] sm:$0xf] %vm1594, %v1587
      %1597 = vst.msk [vmem:[%s170 + $0x8] sm:$0xf] %vm1594, %v1588
      %1598 = vst.msk [vmem:[%s170 + $0xc] sm:$0xf] %vm1594, %v1589
      %1599 = vst.msk [vmem:[%s170 + $0x10] sm:$0xf] %vm1594, %v1590
      %1600 = vst.msk [vmem:[%s170 + $0x14] sm:$0xf] %vm1594, %v1591
      %1601 = vst.msk [vmem:[%s170 + $0x18] sm:$0xf] %vm1594, %v1592
      %1602 = vst.msk [vmem:[%s170 + $0x1c] sm:$0xf] %vm1594, %v1593
      %p1603 = scmp.lt.s32.totalorder %s14, 1
      %s1604 = scalar_select %p1603, %s14, 1
      %s1605 = smul.addr %s1604, 8
      %s1606 = smul.addr %s1605, 4
      %s1607 = scalar_lea.vmem %s3, %s1606
      // Predicated region
      $region33: #{bottleneck_se_forward.7} parent=31 // pred_check
        %p1608 = pneg %p100
      $region34: #{bottleneck_se_forward.7} parent=31 // pred_check_branch
        %1610 = sbr.rel (%p1608) target = $region36
      $region35: #{bottleneck_se_forward.7} parent=31 // pred_region
        _
      $region36: #{bottleneck_se_forward.7} parent=31 // pred_fallthru
        _
    $region32: #{bottleneck_se_forward.7} parent=5 // pred_fallthru
      _
    %p1611 = scmp.le.s32.totalorder 2, %s9
    // Predicated region
    $region37: #{bottleneck_se_forward.7} parent=5 // pred_check
      %p1612 = pneg %p1611
    $region38: #{bottleneck_se_forward.7} parent=5 // pred_check_branch
      %1614 = sbr.rel (%p1612) target = $region40
    $region39: #{bottleneck_se_forward.7} parent=5 // pred_region
      %s1615 = ssub.s32 %s9, 2
      // Predicated region
      $region41: #{bottleneck_se_forward.7} parent=39 // pred_check
        %p1616 = pneg %p106
      $region42: #{bottleneck_se_forward.7} parent=39 // pred_check_branch
        %1618 = sbr.rel (%p1616) target = $region44
      $region43: #{bottleneck_se_forward.7} parent=39 // pred_region
        %p1619 = scmp.lt.s32.totalorder %s15, 1
        %s1620 = scalar_select %p1619, %s15, 1
        %s1621 = smul.addr %s1620, 8
        %s1622 = smul.addr %s1621, 4
        %s1623 = scalar_lea.vmem %s3, %s1622
      $region44: #{bottleneck_se_forward.7} parent=39 // pred_fallthru
        _
    $region40: #{bottleneck_se_forward.7} parent=5 // pred_fallthru
      _
  $region6: #{bottleneck_se_forward.7} parent=0 // loop_footer
    %s13 = sadd.s32 1, %s9
  $region7: #{bottleneck_se_forward.7} parent=0 // loop_footer_branch
    %8 = sbr.rel target = $region3
  $region8: #{bottleneck_se_forward.7} parent=0 // loop_exit
    _

</llo_original>
